<compile_context>
chip_gen: v6e
topology: v6e:2x2x1
jax: 0.10.0
libtpu: 0.0.40
codegen_flags: <defaults>
</compile_context>

<pallas_src>
import jax
import jax.numpy as jnp
from jax.experimental import pallas as pl
from jax.experimental.pallas import tpu as pltpu

_NP = 128  # lane-dense padded width for the FC weight / bias / logits


# ------------------------------ fused kernel -------------------------------

def _simple_net_kernel(x_ref, m1_ref, b1_ref, m2_ref, b2_ref,
                       mask_ref, sel_ref, fcw_ref, fcb_ref, out_ref):
    """One grid step = Bblk images; all activations stay in VMEM / vregs.

    x_ref   : (R, W*Cin) bf16, R = Bblk*(H+2); one zero guard row above and
              below every image (SAME padding along H + row-shift insulation).
    m1_ref  : (3, W*Cin, W*C1) bf16 banded conv1 matrices (one per kh).
    m2_ref  : (3, W*C1,  W*C2) bf16 banded conv2 matrices.
    b1_ref  : (1, W*C1) f32   conv1 bias tiled over W.
    b2_ref  : (1, W*C2) f32   conv2 bias tiled over W.
    mask_ref: (R, 1) f32      1.0 on real image rows, 0.0 on guard rows.
    sel_ref : (Bblk, R) f32   per-image row-pooling matrix, pre-scaled 1/(H*W).
    fcw_ref : (W*C2, 128) f32 FC weight tiled over W (pools the lane axis).
    fcb_ref : (1, 128) f32    FC bias (zero padded 10 -> 128).
    out_ref : (Bblk, 128) f32 padded logits.
    """
    rows = x_ref.shape[0]
    n1 = m1_ref.shape[-1]
    n2 = m2_ref.shape[-1]

    def row_shifts(v):
        """(v[r-1], v[r], v[r+1]) along rows, zero-filled at the block edges."""
        z = jnp.zeros((1, v.shape[1]), v.dtype)
        return (jnp.concatenate([z, v[:-1, :]], axis=0),
                v,
                jnp.concatenate([v[1:, :], z], axis=0))

    # ---- conv1: kh taps = operand row shifts, kw/channel taps = banded GEMM.
    x = x_ref[...].astype(jnp.float32)
    s1 = jnp.zeros((rows, n1), jnp.float32)
    for kh, xs in enumerate(row_shifts(x)):
        s1 = s1 + jnp.dot(xs.astype(jnp.bfloat16), m1_ref[kh],
                          preferred_element_type=jnp.float32)
    # bias + ReLU; re-zero the guard rows so conv2 sees SAME padding along H.
    a1 = jnp.maximum(s1 + b1_ref[...], 0.0) * mask_ref[...]

    # ---- conv2: identical scheme on the folded conv1 activation.
    s2 = jnp.zeros((rows, n2), jnp.float32)
    for kh, hs in enumerate(row_shifts(a1)):
        s2 = s2 + jnp.dot(hs.astype(jnp.bfloat16), m2_ref[kh],
                          preferred_element_type=jnp.float32)
    a2 = jnp.maximum(s2 + b2_ref[...], 0.0)                    # (R, W*C2) f32

    # ---- global average pool + FC epilogue: two tiny f32 GEMMs ------------
    pooled = jnp.dot(sel_ref[...], a2,
                     preferred_element_type=jnp.float32)       # (Bblk, W*C2)
    logits = jnp.dot(pooled, fcw_ref[...],
                     preferred_element_type=jnp.float32)       # (Bblk, 128)
    out_ref[...] = (logits + fcb_ref[...]).astype(out_ref.dtype)


# ------------------------------- wrapper ------------------------------------

def _banded_conv_matrices(w_oihw, width):
    """PyTorch OIHW (Cout, Cin, 3, 3) -> (3, width*Cin, width*Cout).

    M[kh, wi*Cin+ci, wo*Cout+co] = w[co, ci, kh, wi-wo+1] when
    0 <= wi-wo+1 < 3 (else 0): folds the kw taps, the channel contraction and
    the SAME zero padding along W into one lane-dense GEMM per kh."""
    cout, cin, kh_sz, kw_sz = w_oihw.shape
    w_g = jnp.transpose(w_oihw, (2, 3, 1, 0))                  # (kh, kw, ci, co)
    wi = jnp.arange(width)[:, None]
    wo = jnp.arange(width)[None, :]
    kw = wi - wo + 1                                           # (W, W)
    valid = (kw >= 0) & (kw < kw_sz)
    band = w_g[:, jnp.clip(kw, 0, kw_sz - 1)]                  # (kh, W, W, ci, co)
    band = jnp.where(valid[None, :, :, None, None], band, 0.0)
    band = jnp.transpose(band, (0, 1, 3, 2, 4))                # (kh, wi, ci, wo, co)
    return band.reshape(kh_sz, width * cin, width * cout)


def _pick_block_batch(batch):
    """Images per grid step: big enough to amortize the ~0.35us step overhead
    while keeping >= 2 grid steps so the 'parallel' batch axis can shard
    across the two TensorCores on v7x."""
    for bb in (8, 4, 2, 1):
        if batch % bb == 0 and batch // bb >= 2:
            return bb
    return batch


def simple_net_forward(x_nchw, params):
    """Forward pass equivalent to SimpleNet.forward.  Input NCHW float32."""
    B, Cin, H, W = x_nchw.shape
    C1 = params["conv1_w"].shape[0]          # 16
    C2 = params["conv2_w"].shape[0]          # 32
    NOUT = params["fc_w"].shape[0]           # 10
    Hp = H + 2
    Bblk = _pick_block_batch(B)
    nsteps = B // Bblk
    R = Bblk * Hp
    K1, N1, N2 = W * Cin, W * C1, W * C2

    # Lane-folded bf16 input: (nsteps, Bblk*(H+2), W*Cin) with one zero guard
    # row above/below each image.  This is the only image-sized HBM tensor.
    x_rows = jnp.transpose(x_nchw, (0, 2, 3, 1)).reshape(B, H, K1)
    x_rows = jnp.pad(x_rows.astype(jnp.float32), ((0, 0), (1, 1), (0, 0)))
    x3d = x_rows.reshape(nsteps, R, K1).astype(jnp.bfloat16)

    # Banded conv matrices (bf16, MXU-native) and W-tiled biases (f32).
    m1 = _banded_conv_matrices(params["conv1_w"], W).astype(jnp.bfloat16)
    m2 = _banded_conv_matrices(params["conv2_w"], W).astype(jnp.bfloat16)
    b1f = jnp.tile(params["conv1_b"].astype(jnp.float32), W).reshape(1, N1)
    b2f = jnp.tile(params["conv2_b"].astype(jnp.float32), W).reshape(1, N2)

    # Guard-row mask + per-image pooling/selection matrix (scaled 1/(H*W)).
    hp = jnp.arange(R) % Hp
    real = (hp >= 1) & (hp <= H)
    rowmask = real.astype(jnp.float32).reshape(R, 1)
    img = jnp.arange(R) // Hp
    sel = real[None, :] & (img[None, :] == jnp.arange(Bblk)[:, None])
    sel = sel.astype(jnp.float32) / float(H * W)               # (Bblk, R)

    # FC weight tiled over W (pools the folded lane axis) + padded bias.
    wfc = jnp.pad(params["fc_w"].T.astype(jnp.float32),
                  ((0, 0), (0, _NP - NOUT)))                   # (C2, 128)
    fcw = jnp.tile(wfc, (W, 1))                                # (W*C2, 128)
    fcb = jnp.pad(params["fc_b"].astype(jnp.float32),
                  (0, _NP - NOUT)).reshape(1, _NP)

    flops_step = (2 * R * 3 * (K1 * N1 + N1 * N2)
                  + 2 * Bblk * (R * N2 + N2 * _NP))
    bytes_fixed = ((m1.size + m2.size) * 2
                   + (b1f.size + b2f.size + rowmask.size + sel.size
                      + fcw.size + fcb.size) * 4)
    cost = pl.CostEstimate(
        flops=nsteps * flops_step, transcendentals=0,
        bytes_accessed=nsteps * (R * K1 * 2 + Bblk * _NP * 4) + bytes_fixed)

    const2 = lambda i: (0, 0)
    const3 = lambda i: (0, 0, 0)
    out3 = pl.pallas_call(
        _simple_net_kernel,
        out_shape=jax.ShapeDtypeStruct((nsteps, Bblk, _NP), jnp.float32),
        grid_spec=pltpu.PrefetchScalarGridSpec(
            num_scalar_prefetch=0,
            grid=(nsteps,),
            in_specs=[
                pl.BlockSpec((None, R, K1), lambda i: (i, 0, 0)),   # x slab
                pl.BlockSpec((3, K1, N1), const3),                  # m1 (resident)
                pl.BlockSpec((1, N1), const2),                      # b1
                pl.BlockSpec((3, N1, N2), const3),                  # m2 (resident)
                pl.BlockSpec((1, N2), const2),                      # b2
                pl.BlockSpec((R, 1), const2),                       # guard-row mask
                pl.BlockSpec((Bblk, R), const2),                    # pool/select
                pl.BlockSpec((N2, _NP), const2),                    # FC weight
                pl.BlockSpec((1, _NP), const2),                     # FC bias
            ],
            out_specs=pl.BlockSpec((None, Bblk, _NP), lambda i: (i, 0, 0)),
        ),
        compiler_params=pltpu.CompilerParams(
            dimension_semantics=("parallel",)),
        cost_estimate=cost,
    )(x3d, m1, b1f, m2, b2f, rowmask, sel, fcw, fcb)

    return out3.reshape(B, _NP)[:, :NOUT]


# --------------------------- reference (pure JAX) ---------------------------

def _reference_forward(x_nchw, params):
    y = jax.lax.conv_general_dilated(
        x_nchw, params["conv1_w"], (1, 1), "SAME",
        dimension_numbers=("NCHW", "OIHW", "NCHW"))
    y = jnp.maximum(y + params["conv1_b"][None, :, None, None], 0.0)
    y = jax.lax.conv_general_dilated(
        y, params["conv2_w"], (1, 1), "SAME",
        dimension_numbers=("NCHW", "OIHW", "NCHW"))
    y = jnp.maximum(y + params["conv2_b"][None, :, None, None], 0.0)
    y = jnp.mean(y, axis=(2, 3))                               # (B, 32)
    return y @ params["fc_w"].T + params["fc_b"]


# --------------------------------- main --------------------------------------

def _init_params(key):
    ks = jax.random.split(key, 6)
    return {
        "conv1_w": 0.1 * jax.random.normal(ks[0], (16, 3, 3, 3), jnp.float32),
        "conv1_b": 0.1 * jax.random.normal(ks[1], (16,), jnp.float32),
        "conv2_w": 0.1 * jax.random.normal(ks[2], (32, 16, 3, 3), jnp.float32),
        "conv2_b": 0.1 * jax.random.normal(ks[3], (32,), jnp.float32),
        "fc_w": 0.1 * jax.random.normal(ks[4], (10, 32), jnp.float32),
        "fc_b": 0.1 * jax.random.normal(ks[5], (10,), jnp.float32),
    }


if __name__ == "__main__":
    key = jax.random.PRNGKey(0)
    pkey, xkey = jax.random.split(key)
    params = _init_params(pkey)

    # Small shape consistent with the module: NCHW, 3 input channels.
    # B=8 -> 4 images per grid step, 2 grid steps (both v7x TCs busy).
    x = jax.random.normal(xkey, (8, 3, 16, 16), jnp.float32)

    fwd = jax.jit(simple_net_forward)
    out = jax.block_until_ready(fwd(x, params))
    ref = jax.block_until_ready(_reference_forward(x, params))

    assert out.shape == (8, 10)
    # bf16 MXU operands with f32 accumulation: slightly looser tolerance.
    assert jnp.allclose(out, ref, rtol=2e-2, atol=2e-2), (
        f"max abs err {float(jnp.max(jnp.abs(out - ref)))}")
    print("KERNEL_OK")
</pallas_src>

<mosaic_0001>
module attributes {stable_mosaic.version = 11 : i64} {
  func.func @_simple_net_kernel(%arg0: i32, %arg1: memref<1x72x48xbf16, #tpu.memory_space<vmem>>, %arg2: memref<3x48x256xbf16, #tpu.memory_space<vmem>>, %arg3: memref<1x256xf32, #tpu.memory_space<vmem>>, %arg4: memref<3x256x512xbf16, #tpu.memory_space<vmem>>, %arg5: memref<1x512xf32, #tpu.memory_space<vmem>>, %arg6: memref<72x1xf32, #tpu.memory_space<vmem>>, %arg7: memref<4x72xf32, #tpu.memory_space<vmem>>, %arg8: memref<512x128xf32, #tpu.memory_space<vmem>>, %arg9: memref<1x128xf32, #tpu.memory_space<vmem>>, %arg10: memref<1x4x128xf32, #tpu.memory_space<vmem>>) attributes {dimension_semantics = [#tpu.dimension_semantics<parallel>], iteration_bounds = array<i64: 2>, scalar_prefetch = 0 : i64, scratch_operands = 0 : i64, tpu.core_type = #tpu.core_type<tc>, window_params = [{transform_indices = @transform_0, window_bounds = array<i64: 1, 72, 48>}, {pipeline_mode = #tpu.pipeline_mode<synchronous>, transform_indices = @transform_1, window_bounds = array<i64: 3, 48, 256>}, {pipeline_mode = #tpu.pipeline_mode<synchronous>, transform_indices = @transform_2, window_bounds = array<i64: 1, 256>}, {pipeline_mode = #tpu.pipeline_mode<synchronous>, transform_indices = @transform_3, window_bounds = array<i64: 3, 256, 512>}, {pipeline_mode = #tpu.pipeline_mode<synchronous>, transform_indices = @transform_4, window_bounds = array<i64: 1, 512>}, {pipeline_mode = #tpu.pipeline_mode<synchronous>, transform_indices = @transform_5, window_bounds = array<i64: 72, 1>}, {pipeline_mode = #tpu.pipeline_mode<synchronous>, transform_indices = @transform_6, window_bounds = array<i64: 4, 72>}, {pipeline_mode = #tpu.pipeline_mode<synchronous>, transform_indices = @transform_7, window_bounds = array<i64: 512, 128>}, {pipeline_mode = #tpu.pipeline_mode<synchronous>, transform_indices = @transform_8, window_bounds = array<i64: 1, 128>}, {transform_indices = @transform_9, window_bounds = array<i64: 1, 4, 128>}]} {
    %c0 = arith.constant 0 : index
    %c0_0 = arith.constant 0 : index
    %c0_1 = arith.constant 0 : index
    %0 = vector.load %arg1[%c0, %c0_0, %c0_1] : memref<1x72x48xbf16, #tpu.memory_space<vmem>>, vector<1x72x48xbf16>
    %1 = vector.shape_cast %0 : vector<1x72x48xbf16> to vector<72x48xbf16>
    %2 = arith.extf %1 : vector<72x48xbf16> to vector<72x48xf32>
    %cst = arith.constant 0.000000e+00 : f32
    %3 = vector.broadcast %cst : f32 to vector<72x256xf32>
    %cst_2 = arith.constant 0.000000e+00 : f32
    %4 = vector.broadcast %cst_2 : f32 to vector<1x48xf32>
    %5 = vector.extract_strided_slice %2 {offsets = [0, 0], sizes = [71, 48], strides = [1, 1]} : vector<72x48xf32> to vector<71x48xf32>
    %6 = tpu.concatenate %4, %5 in 0 : vector<1x48xf32>, vector<71x48xf32> -> vector<72x48xf32>
    %7 = vector.extract_strided_slice %2 {offsets = [1, 0], sizes = [71, 48], strides = [1, 1]} : vector<72x48xf32> to vector<71x48xf32>
    %8 = tpu.concatenate %7, %4 in 0 : vector<71x48xf32>, vector<1x48xf32> -> vector<72x48xf32>
    %9 = arith.truncf %6 : vector<72x48xf32> to vector<72x48xbf16>
    %c0_3 = arith.constant 0 : index
    %c0_4 = arith.constant 0 : index
    %c0_5 = arith.constant 0 : index
    %10 = vector.load %arg2[%c0_3, %c0_4, %c0_5] : memref<3x48x256xbf16, #tpu.memory_space<vmem>>, vector<1x48x256xbf16>
    %11 = vector.shape_cast %10 : vector<1x48x256xbf16> to vector<48x256xbf16>
    %cst_6 = arith.constant dense<0.000000e+00> : vector<72x256xf32>
    %12 = tpu.matmul %9, %11, %cst_6 {dimension_numbers = #tpu.dot_dimension_numbers<[1], [0], [0], [1], [0, 0, 1, 1], [], []>} : vector<72x48xbf16>, vector<48x256xbf16>, vector<72x256xf32> -> vector<72x256xf32>
    %13 = arith.addf %3, %12 : vector<72x256xf32>
    %14 = arith.truncf %2 : vector<72x48xf32> to vector<72x48xbf16>
    %c1 = arith.constant 1 : index
    %c0_7 = arith.constant 0 : index
    %c0_8 = arith.constant 0 : index
    %15 = vector.load %arg2[%c1, %c0_7, %c0_8] : memref<3x48x256xbf16, #tpu.memory_space<vmem>>, vector<1x48x256xbf16>
    %16 = vector.shape_cast %15 : vector<1x48x256xbf16> to vector<48x256xbf16>
    %cst_9 = arith.constant dense<0.000000e+00> : vector<72x256xf32>
    %17 = tpu.matmul %14, %16, %cst_9 {dimension_numbers = #tpu.dot_dimension_numbers<[1], [0], [0], [1], [0, 0, 1, 1], [], []>} : vector<72x48xbf16>, vector<48x256xbf16>, vector<72x256xf32> -> vector<72x256xf32>
    %18 = arith.addf %13, %17 : vector<72x256xf32>
    %19 = arith.truncf %8 : vector<72x48xf32> to vector<72x48xbf16>
    %c2 = arith.constant 2 : index
    %c0_10 = arith.constant 0 : index
    %c0_11 = arith.constant 0 : index
    %20 = vector.load %arg2[%c2, %c0_10, %c0_11] : memref<3x48x256xbf16, #tpu.memory_space<vmem>>, vector<1x48x256xbf16>
    %21 = vector.shape_cast %20 : vector<1x48x256xbf16> to vector<48x256xbf16>
    %cst_12 = arith.constant dense<0.000000e+00> : vector<72x256xf32>
    %22 = tpu.matmul %19, %21, %cst_12 {dimension_numbers = #tpu.dot_dimension_numbers<[1], [0], [0], [1], [0, 0, 1, 1], [], []>} : vector<72x48xbf16>, vector<48x256xbf16>, vector<72x256xf32> -> vector<72x256xf32>
    %23 = arith.addf %18, %22 : vector<72x256xf32>
    %c0_13 = arith.constant 0 : index
    %c0_14 = arith.constant 0 : index
    %24 = vector.load %arg3[%c0_13, %c0_14] : memref<1x256xf32, #tpu.memory_space<vmem>>, vector<1x256xf32>
    %25 = vector.broadcast %24 : vector<1x256xf32> to vector<72x256xf32>
    %26 = arith.addf %23, %25 : vector<72x256xf32>
    %cst_15 = arith.constant 0.000000e+00 : f32
    %27 = vector.broadcast %cst_15 : f32 to vector<72x256xf32>
    %28 = arith.maximumf %26, %27 : vector<72x256xf32>
    %c0_16 = arith.constant 0 : index
    %c0_17 = arith.constant 0 : index
    %29 = vector.load %arg6[%c0_16, %c0_17] : memref<72x1xf32, #tpu.memory_space<vmem>>, vector<72x1xf32>
    %30 = vector.broadcast %29 : vector<72x1xf32> to vector<72x256xf32>
    %31 = arith.mulf %28, %30 : vector<72x256xf32>
    %cst_18 = arith.constant 0.000000e+00 : f32
    %32 = vector.broadcast %cst_18 : f32 to vector<72x512xf32>
    %cst_19 = arith.constant 0.000000e+00 : f32
    %33 = vector.broadcast %cst_19 : f32 to vector<1x256xf32>
    %34 = vector.extract_strided_slice %31 {offsets = [0, 0], sizes = [71, 256], strides = [1, 1]} : vector<72x256xf32> to vector<71x256xf32>
    %35 = tpu.concatenate %33, %34 in 0 : vector<1x256xf32>, vector<71x256xf32> -> vector<72x256xf32>
    %36 = vector.extract_strided_slice %31 {offsets = [1, 0], sizes = [71, 256], strides = [1, 1]} : vector<72x256xf32> to vector<71x256xf32>
    %37 = tpu.concatenate %36, %33 in 0 : vector<71x256xf32>, vector<1x256xf32> -> vector<72x256xf32>
    %38 = arith.truncf %35 : vector<72x256xf32> to vector<72x256xbf16>
    %c0_20 = arith.constant 0 : index
    %c0_21 = arith.constant 0 : index
    %c0_22 = arith.constant 0 : index
    %39 = vector.load %arg4[%c0_20, %c0_21, %c0_22] : memref<3x256x512xbf16, #tpu.memory_space<vmem>>, vector<1x256x512xbf16>
    %40 = vector.shape_cast %39 : vector<1x256x512xbf16> to vector<256x512xbf16>
    %cst_23 = arith.constant dense<0.000000e+00> : vector<72x512xf32>
    %41 = tpu.matmul %38, %40, %cst_23 {dimension_numbers = #tpu.dot_dimension_numbers<[1], [0], [0], [1], [0, 0, 1, 1], [], []>} : vector<72x256xbf16>, vector<256x512xbf16>, vector<72x512xf32> -> vector<72x512xf32>
    %42 = arith.addf %32, %41 : vector<72x512xf32>
    %43 = arith.truncf %31 : vector<72x256xf32> to vector<72x256xbf16>
    %c1_24 = arith.constant 1 : index
    %c0_25 = arith.constant 0 : index
    %c0_26 = arith.constant 0 : index
    %44 = vector.load %arg4[%c1_24, %c0_25, %c0_26] : memref<3x256x512xbf16, #tpu.memory_space<vmem>>, vector<1x256x512xbf16>
    %45 = vector.shape_cast %44 : vector<1x256x512xbf16> to vector<256x512xbf16>
    %cst_27 = arith.constant dense<0.000000e+00> : vector<72x512xf32>
    %46 = tpu.matmul %43, %45, %cst_27 {dimension_numbers = #tpu.dot_dimension_numbers<[1], [0], [0], [1], [0, 0, 1, 1], [], []>} : vector<72x256xbf16>, vector<256x512xbf16>, vector<72x512xf32> -> vector<72x512xf32>
    %47 = arith.addf %42, %46 : vector<72x512xf32>
    %48 = arith.truncf %37 : vector<72x256xf32> to vector<72x256xbf16>
    %c2_28 = arith.constant 2 : index
    %c0_29 = arith.constant 0 : index
    %c0_30 = arith.constant 0 : index
    %49 = vector.load %arg4[%c2_28, %c0_29, %c0_30] : memref<3x256x512xbf16, #tpu.memory_space<vmem>>, vector<1x256x512xbf16>
    %50 = vector.shape_cast %49 : vector<1x256x512xbf16> to vector<256x512xbf16>
    %cst_31 = arith.constant dense<0.000000e+00> : vector<72x512xf32>
    %51 = tpu.matmul %48, %50, %cst_31 {dimension_numbers = #tpu.dot_dimension_numbers<[1], [0], [0], [1], [0, 0, 1, 1], [], []>} : vector<72x256xbf16>, vector<256x512xbf16>, vector<72x512xf32> -> vector<72x512xf32>
    %52 = arith.addf %47, %51 : vector<72x512xf32>
    %c0_32 = arith.constant 0 : index
    %c0_33 = arith.constant 0 : index
    %53 = vector.load %arg5[%c0_32, %c0_33] : memref<1x512xf32, #tpu.memory_space<vmem>>, vector<1x512xf32>
    %54 = vector.broadcast %53 : vector<1x512xf32> to vector<72x512xf32>
    %55 = arith.addf %52, %54 : vector<72x512xf32>
    %cst_34 = arith.constant 0.000000e+00 : f32
    %56 = vector.broadcast %cst_34 : f32 to vector<72x512xf32>
    %57 = arith.maximumf %55, %56 : vector<72x512xf32>
    %c0_35 = arith.constant 0 : index
    %c0_36 = arith.constant 0 : index
    %58 = vector.load %arg7[%c0_35, %c0_36] : memref<4x72xf32, #tpu.memory_space<vmem>>, vector<4x72xf32>
    %cst_37 = arith.constant dense<0.000000e+00> : vector<4x512xf32>
    %59 = tpu.matmul %58, %57, %cst_37 {dimension_numbers = #tpu.dot_dimension_numbers<[1], [0], [0], [1], [0, 0, 1, 1], [], []>} : vector<4x72xf32>, vector<72x512xf32>, vector<4x512xf32> -> vector<4x512xf32>
    %c0_38 = arith.constant 0 : index
    %c0_39 = arith.constant 0 : index
    %60 = vector.load %arg8[%c0_38, %c0_39] : memref<512x128xf32, #tpu.memory_space<vmem>>, vector<512x128xf32>
    %cst_40 = arith.constant dense<0.000000e+00> : vector<4x128xf32>
    %61 = tpu.matmul %59, %60, %cst_40 {dimension_numbers = #tpu.dot_dimension_numbers<[1], [0], [0], [1], [0, 0, 1, 1], [], []>} : vector<4x512xf32>, vector<512x128xf32>, vector<4x128xf32> -> vector<4x128xf32>
    %c0_41 = arith.constant 0 : index
    %c0_42 = arith.constant 0 : index
    %62 = vector.load %arg9[%c0_41, %c0_42] : memref<1x128xf32, #tpu.memory_space<vmem>>, vector<1x128xf32>
    %63 = vector.broadcast %62 : vector<1x128xf32> to vector<4x128xf32>
    %64 = arith.addf %61, %63 : vector<4x128xf32>
    %c0_43 = arith.constant 0 : index
    %c0_44 = arith.constant 0 : index
    %c0_45 = arith.constant 0 : index
    %65 = vector.load %arg10[%c0_43, %c0_44, %c0_45] : memref<1x4x128xf32, #tpu.memory_space<vmem>>, vector<1x4x128xf32>
    %66 = vector.shape_cast %65 : vector<1x4x128xf32> to vector<4x128xf32>
    %67 = vector.shape_cast %64 : vector<4x128xf32> to vector<1x4x128xf32>
    tpu.vector_store %arg10[%c0_43, %c0_44, %c0_45], %67 {strides = array<i32>} : memref<1x4x128xf32, #tpu.memory_space<vmem>>, vector<1x4x128xf32>,
    return
  }
  func.func @transform_0(%arg0: i32) -> (i32, i32, i32) {
    %c0_i32 = arith.constant 0 : i32
    %c0_i32_0 = arith.constant 0 : i32
    %c0_i32_1 = arith.constant 0 : i32
    return %arg0, %c0_i32, %c0_i32_0 : i32, i32, i32
  }
  func.func @transform_1(%arg0: i32) -> (i32, i32, i32) {
    %c0_i32 = arith.constant 0 : i32
    %c0_i32_0 = arith.constant 0 : i32
    %c0_i32_1 = arith.constant 0 : i32
    %c0_i32_2 = arith.constant 0 : i32
    return %c0_i32, %c0_i32_0, %c0_i32_1 : i32, i32, i32
  }
  func.func @transform_2(%arg0: i32) -> (i32, i32) {
    %c0_i32 = arith.constant 0 : i32
    %c0_i32_0 = arith.constant 0 : i32
    %c0_i32_1 = arith.constant 0 : i32
    return %c0_i32, %c0_i32_0 : i32, i32
  }
  func.func @transform_3(%arg0: i32) -> (i32, i32, i32) {
    %c0_i32 = arith.constant 0 : i32
    %c0_i32_0 = arith.constant 0 : i32
    %c0_i32_1 = arith.constant 0 : i32
    %c0_i32_2 = arith.constant 0 : i32
    return %c0_i32, %c0_i32_0, %c0_i32_1 : i32, i32, i32
  }
  func.func @transform_4(%arg0: i32) -> (i32, i32) {
    %c0_i32 = arith.constant 0 : i32
    %c0_i32_0 = arith.constant 0 : i32
    %c0_i32_1 = arith.constant 0 : i32
    return %c0_i32, %c0_i32_0 : i32, i32
  }
  func.func @transform_5(%arg0: i32) -> (i32, i32) {
    %c0_i32 = arith.constant 0 : i32
    %c0_i32_0 = arith.constant 0 : i32
    %c0_i32_1 = arith.constant 0 : i32
    return %c0_i32, %c0_i32_0 : i32, i32
  }
  func.func @transform_6(%arg0: i32) -> (i32, i32) {
    %c0_i32 = arith.constant 0 : i32
    %c0_i32_0 = arith.constant 0 : i32
    %c0_i32_1 = arith.constant 0 : i32
    return %c0_i32, %c0_i32_0 : i32, i32
  }
  func.func @transform_7(%arg0: i32) -> (i32, i32) {
    %c0_i32 = arith.constant 0 : i32
    %c0_i32_0 = arith.constant 0 : i32
    %c0_i32_1 = arith.constant 0 : i32
    return %c0_i32, %c0_i32_0 : i32, i32
  }
  func.func @transform_8(%arg0: i32) -> (i32, i32) {
    %c0_i32 = arith.constant 0 : i32
    %c0_i32_0 = arith.constant 0 : i32
    %c0_i32_1 = arith.constant 0 : i32
    return %c0_i32, %c0_i32_0 : i32, i32
  }
  func.func @transform_9(%arg0: i32) -> (i32, i32, i32) {
    %c0_i32 = arith.constant 0 : i32
    %c0_i32_0 = arith.constant 0 : i32
    %c0_i32_1 = arith.constant 0 : i32
    return %arg0, %c0_i32, %c0_i32_0 : i32, i32, i32
  }
}

</mosaic_0001>

<llo_original>
// kernel: tile.23
$region0: #{tile.23}
  #allocation0 [shape = 's32[1]{0}', space=sflag, size = 0x4, scoped, tag = 'scoped memory for tile.23']
  %s0 = inlined_call_operand.vmem [shape: f32[32], index: 0, kind: input, shape index: {}]
  %s1 = inlined_call_operand.vmem [shape: f32[16,32], index: 1, kind: output, shape index: {}]
  // Predicated region
  $region2: #{tile.23} parent=0 // pred_check
    _
  $region3: #{tile.23} parent=0 // pred_check_branch
    %3 = sbr.rel (0) target = $region5
  $region4: #{tile.23} parent=0 // pred_region
    _
  $region5: #{tile.23} parent=0 // pred_fallthru
    _
  %v4 = vld [vmem:[%s0] ss:$0 sm:$0xff]
  %5 = vst [vmem:[%s1] sm:$0xff] %v4
  %s6 = scalar_lea.vmem %s1, 8
  %7 = vst [vmem:[%s6] sm:$0xff] %v4

// kernel: tile.24
$region0: #{tile.24}
  %s0 = inlined_call_operand.vmem [shape: f32[16,32], index: 0, kind: input, shape index: {}]
  %s1 = inlined_call_operand.vmem [shape: f32[1,512], index: 1, kind: output, shape index: {}]
  $region1: #{tile.24} parent=0
    #allocation0 [shape = 'u8[16384]{0}', space=vmem, size = 0x4000, scoped, tag = 'scoped mem for output reshape']
    %v2 = vld [vmem:[%s0] ss:$4 sm:$0xf]
    %vm3 = vcmask 261120
    %4 = vst.msk [vmem:[#allocation0] ss:$8 sm:$0xf] %vm3, %v2
    %s5 = scalar_lea.vmem %s0, 3
    %v6 = vld [vmem:[%s5] ss:$4 sm:$0xf]
    %7 = vrot.lane.b32.xlu0 %v6, 96
    %v8 = vpop.permute.xlu0 %7
    %vm9 = vcmask 1048320
    %10 = vst.msk [vmem:[#allocation0] ss:$8 sm:$0xf] %vm9, %v8
    %s11 = scalar_lea.vmem %s0, 2
    %v12 = vld [vmem:[%s11] ss:$4 sm:$0xf]
    %13 = vrot.lane.b32.xlu0 %v12, 64
    %v14 = vpop.permute.xlu0 %13
    %vm15 = vcmask 785920
    %16 = vst.msk [vmem:[#allocation0] ss:$8 sm:$0xf] %vm15, %v14
    %s17 = scalar_lea.vmem %s0, 1
    %v18 = vld [vmem:[%s17] ss:$4 sm:$0xf]
    %19 = vrot.lane.b32.xlu0 %v18, 32
    %v20 = vpop.permute.xlu0 %19
    %vm21 = vcmask 523520
    %22 = vst.msk [vmem:[#allocation0] ss:$8 sm:$0xf] %vm21, %v20
    %s24 = sshll.u32 1, 1
    %s25 = ssub.s32 %s24, 1
    %v27 = vld [vmem:[#allocation0] sm:%s25]
    %s28 = sshll.u32 1, 1
    %s29 = ssub.s32 %s28, 1
    %30 = vst [vmem:[%s1] sm:%s29] %v27
    %s31 = scalar_lea.vmem [#allocation0], 8
    %v32 = vld [vmem:[%s31] sm:%s25]
    %s33 = sshll.u32 1, 1
    %s34 = ssub.s32 %s33, 1
    %s35 = scalar_lea.vmem %s1, 1
    %36 = vst [vmem:[%s35] sm:%s34] %v32
    %s37 = scalar_lea.vmem [#allocation0], 16
    %v38 = vld [vmem:[%s37] sm:%s25]
    %s39 = sshll.u32 1, 1
    %s40 = ssub.s32 %s39, 1
    %s41 = smul.addr 1, 2
    %s42 = scalar_lea.vmem %s1, %s41
    %43 = vst [vmem:[%s42] sm:%s40] %v38
    %s44 = scalar_lea.vmem [#allocation0], 24
    %v45 = vld [vmem:[%s44] sm:%s25]
    %s46 = sshll.u32 1, 1
    %s47 = ssub.s32 %s46, 1
    %s48 = smul.addr 1, 3
    %s49 = scalar_lea.vmem %s1, %s48
    %50 = vst [vmem:[%s49] sm:%s47] %v45

// kernel: tile.18
$region0: #{tile.18}
  #allocation0 [shape = 's32[1]{0}', space=sflag, size = 0x4, scoped, tag = 'scoped memory for tile.18']
  %s0 = inlined_call_operand.vmem [shape: f32[16], index: 0, kind: input, shape index: {}]
  %s1 = inlined_call_operand.vmem [shape: f32[16,16], index: 1, kind: output, shape index: {}]
  // Predicated region
  $region2: #{tile.18} parent=0 // pred_check
    _
  $region3: #{tile.18} parent=0 // pred_check_branch
    %3 = sbr.rel (0) target = $region5
  $region4: #{tile.18} parent=0 // pred_region
    _
  $region5: #{tile.18} parent=0 // pred_fallthru
    _
  %v4 = vld [vmem:[%s0] ss:$0 sm:$0xff]
  %5 = vst [vmem:[%s1] sm:$0xff] %v4
  %s6 = scalar_lea.vmem %s1, 8
  %7 = vst [vmem:[%s6] sm:$0xff] %v4

// kernel: tile.19
$region0: #{tile.19}
  %s0 = inlined_call_operand.vmem [shape: f32[16,16], index: 0, kind: input, shape index: {}]
  %s1 = inlined_call_operand.vmem [shape: f32[1,256], index: 1, kind: output, shape index: {}]
  $region1: #{tile.19} parent=0
    #allocation0 [shape = 'u8[8192]{0}', space=vmem, size = 0x2000, scoped, tag = 'scoped mem for output reshape']
    %s2 = smov 3
    %v3 = vld [vmem:[%s0] ss:$8 sm:%s2]
    %vm4 = vcmask 130048
    %5 = vst.msk [vmem:[#allocation0] ss:$8 sm:$0x3] %vm4, %v3
    %s6 = scalar_lea.vmem %s0, 7
    %s7 = smov 3
    %v8 = vld [vmem:[%s6] ss:$8 sm:%s7]
    %9 = vrot.lane.b32.xlu0 %v8, 112
    %v10 = vpop.permute.xlu0 %9
    %vm11 = vcmask 1048448
    %12 = vst.msk [vmem:[#allocation0] ss:$8 sm:$0x3] %vm11, %v10
    %s13 = scalar_lea.vmem %s0, 6
    %s14 = smov 3
    %v15 = vld [vmem:[%s13] ss:$8 sm:%s14]
    %16 = vrot.lane.b32.xlu0 %v15, 96
    %v17 = vpop.permute.xlu0 %16
    %vm18 = vcmask 917248
    %19 = vst.msk [vmem:[#allocation0] ss:$8 sm:$0x3] %vm18, %v17
    %s20 = scalar_lea.vmem %s0, 5
    %s21 = smov 3
    %v22 = vld [vmem:[%s20] ss:$8 sm:%s21]
    %23 = vrot.lane.b32.xlu0 %v22, 80
    %v24 = vpop.permute.xlu0 %23
    %vm25 = vcmask 786048
    %26 = vst.msk [vmem:[#allocation0] ss:$8 sm:$0x3] %vm25, %v24
    %s27 = scalar_lea.vmem %s0, 4
    %s28 = smov 3
    %v29 = vld [vmem:[%s27] ss:$8 sm:%s28]
    %30 = vrot.lane.b32.xlu0 %v29, 64
    %v31 = vpop.permute.xlu0 %30
    %vm32 = vcmask 654848
    %33 = vst.msk [vmem:[#allocation0] ss:$8 sm:$0x3] %vm32, %v31
    %s34 = scalar_lea.vmem %s0, 3
    %s35 = smov 3
    %v36 = vld [vmem:[%s34] ss:$8 sm:%s35]
    %37 = vrot.lane.b32.xlu0 %v36, 48
    %v38 = vpop.permute.xlu0 %37
    %vm39 = vcmask 523648
    %40 = vst.msk [vmem:[#allocation0] ss:$8 sm:$0x3] %vm39, %v38
    %s41 = scalar_lea.vmem %s0, 2
    %s42 = smov 3
    %v43 = vld [vmem:[%s41] ss:$8 sm:%s42]
    %44 = vrot.lane.b32.xlu0 %v43, 32
    %v45 = vpop.permute.xlu0 %44
    %vm46 = vcmask 392448
    %47 = vst.msk [vmem:[#allocation0] ss:$8 sm:$0x3] %vm46, %v45
    %s48 = scalar_lea.vmem %s0, 1
    %s49 = smov 3
    %v50 = vld [vmem:[%s48] ss:$8 sm:%s49]
    %51 = vrot.lane.b32.xlu0 %v50, 16
    %v52 = vpop.permute.xlu0 %51
    %vm53 = vcmask 261248
    %54 = vst.msk [vmem:[#allocation0] ss:$8 sm:$0x3] %vm53, %v52
    %s56 = sshll.u32 1, 1
    %s57 = ssub.s32 %s56, 1
    %v59 = vld [vmem:[#allocation0] sm:%s57]
    %s60 = sshll.u32 1, 1
    %s61 = ssub.s32 %s60, 1
    %62 = vst [vmem:[%s1] sm:%s61] %v59
    %s63 = scalar_lea.vmem [#allocation0], 8
    %v64 = vld [vmem:[%s63] sm:%s57]
    %s65 = sshll.u32 1, 1
    %s66 = ssub.s32 %s65, 1
    %s67 = scalar_lea.vmem %s1, 1
    %68 = vst [vmem:[%s67] sm:%s66] %v64

// kernel: simple_net_forward.1
$region0: #{simple_net_forward.1}
  #allocation0 [shape = 'u32[]', space=smem, size = 0x4, offset = 0x4, fixed_abs, tag = 'smem constant byte address 0x4 - core index']
  #allocation1 [shape = 'u32[144,128]{1,0:T(1,128)}', space=vmem, size = 0x12000, scoped, tag = 'internal scratch']
  %s0 = inlined_call_operand.vmem [shape: bf16[2,72,48], index: 0, kind: input, shape index: {}]
  %s1 = inlined_call_operand.vmem [shape: bf16[3,48,256], index: 1, kind: input, shape index: {}]
  %s2 = inlined_call_operand.vmem [shape: f32[1,256], index: 2, kind: input, shape index: {}]
  %s3 = inlined_call_operand.vmem [shape: bf16[3,256,512], index: 3, kind: input, shape index: {}]
  %s4 = inlined_call_operand.vmem [shape: f32[1,512], index: 4, kind: input, shape index: {}]
  %s5 = inlined_call_operand.vmem [shape: f32[72,1], index: 5, kind: input, shape index: {}]
  %s6 = inlined_call_operand.vmem [shape: f32[4,72], index: 6, kind: input, shape index: {}]
  %s7 = inlined_call_operand.vmem [shape: f32[512,128], index: 7, kind: input, shape index: {}]
  %s8 = inlined_call_operand.vmem [shape: f32[1,128], index: 8, kind: input, shape index: {}]
  %s9 = inlined_call_operand.hbm [shape: f32[2,4,128], index: 9, kind: output, shape index: {}]
  %s10 = sld [smem:[#allocation0]]
  $region69: #{simple_net_forward.1} parent=0
    _
  %s12 = ssub.s32 1, %s10
  %s13 = scalar_select 0, %s12, %s10
  $region1: #{simple_net_forward.1} parent=0
    #allocation2 [shape = 'u8[4096]{0}', space=vmem, size = 0x1000, scoped, tag = 'output window, operand 0']
    #allocation3 [shape = 's32[2]{0}', space=sflag, size = 0x8, scoped, tag = 'scoped memory for simple_net_forward.1']
    %14 = vsyncpa [#allocation3], 0
    %s15 = scalar_lea.sflag [#allocation3], 1
    %16 = vsyncpa %s15, 0
    loop: start=0, step=1, limit=4
    $region2: #{simple_net_forward.1} parent=1 // loop_pre_header
      _
    $region3: #{simple_net_forward.1} parent=1 // loop_header
      %s18 = sphi 0, %s22
      %p19 = scmp.ge.s32.totalorder %s18, 4
      %s28 = sphi 0, %s30
      %s31 = sphi 0, %s28
      %s32 = sphi 0, %s31
      %s48 = sphi 0, %s32
      %s52 = sphi 0, %s52
      %s54 = sphi 0, %s52
      %s55 = sphi 0, %s54
      %s69 = sphi 0, %s55
      %s73 = sphi 0, %s73
      %s75 = sphi 0, %s73
      %s76 = sphi 0, %s75
      %s90 = sphi 0, %s76
      %s94 = sphi 0, %s94
      %s96 = sphi 0, %s94
      %s97 = sphi 0, %s96
      %s111 = sphi 0, %s97
      %s115 = sphi 0, %s115
      %s117 = sphi 0, %s115
      %s118 = sphi 0, %s117
      %s132 = sphi 0, %s118
      %s136 = sphi 0, %s136
      %s138 = sphi 0, %s136
      %s139 = sphi 0, %s138
      %s153 = sphi 0, %s139
      %s157 = sphi 0, %s157
      %s159 = sphi 0, %s157
      %s160 = sphi 0, %s159
      %s174 = sphi 0, %s160
      %s178 = sphi 0, %s178
      %s180 = sphi 0, %s178
      %s181 = sphi 0, %s180
      %s195 = sphi 0, %s181
      %s199 = sphi 0, %s199
      %s201 = sphi 0, %s199
      %s202 = sphi 0, %s201
      %s216 = sphi 0, %s202
      %s222 = sphi 0, %s224
      %s225 = sphi 0, %s222
      %s226 = sphi 0, %s225
      %s242 = sphi 0, %s226
    $region4: #{simple_net_forward.1} parent=1 // loop_header_branch
      %21 = sbr.rel (%p19) target = $region8
    $region5: #{simple_net_forward.1} parent=1 // loop_body
      %s23 = ssub.s32 %s18, 1
      %s24 = ssub.s32 %s18, 2
      %s25 = sadd.s32 %s18, 1
      %s26 = ssub.s32 %s18, %s25
      %p27 = scmp.eq.s32.totalorder %s26, 0
      %s29 = sadd.s32 %s28, 1
      %s30 = scalar_select %p27, %s28, %s29
      %p33 = pneg %p27
      %p34 = scmp.eq.s32.totalorder %s18, 1
      %p35 = por %p33, %p34
      %p36 = scmp.ne.s32.totalorder %s28, %s31
      %p37 = scmp.eq.s32.totalorder %s18, 0
      %p38 = por %p36, %p37
      %p39 = scmp.ne.s32.totalorder %s28, %s31
      %p40 = scmp.eq.s32.totalorder %s23, 1
      %p41 = por %p39, %p40
      %p42 = scmp.ne.s32.totalorder %s31, %s32
      %p43 = scmp.eq.s32.totalorder %s23, 0
      %p44 = por %p42, %p43
      %p45 = scmp.ne.s32.totalorder %s31, %s32
      %p46 = scmp.eq.s32.totalorder %s24, 1
      %p47 = por %p45, %p46
      %p49 = scmp.ne.s32.totalorder %s32, %s48
      %p50 = scmp.eq.s32.totalorder %s24, 0
      %p51 = por %p49, %p50
      %s53 = sadd.s32 %s52, 1
      %p56 = scmp.eq.s32.totalorder %s18, 1
      %p57 = scmp.ne.s32.totalorder %s52, %s54
      %p58 = scmp.eq.s32.totalorder %s18, 0
      %p59 = por %p57, %p58
      %p60 = scmp.ne.s32.totalorder %s52, %s54
      %p61 = scmp.eq.s32.totalorder %s23, 1
      %p62 = por %p60, %p61
      %p63 = scmp.ne.s32.totalorder %s54, %s55
      %p64 = scmp.eq.s32.totalorder %s23, 0
      %p65 = por %p63, %p64
      %p66 = scmp.ne.s32.totalorder %s54, %s55
      %p67 = scmp.eq.s32.totalorder %s24, 1
      %p68 = por %p66, %p67
      %p70 = scmp.ne.s32.totalorder %s55, %s69
      %p71 = scmp.eq.s32.totalorder %s24, 0
      %p72 = por %p70, %p71
      %s74 = sadd.s32 %s73, 1
      %p77 = scmp.eq.s32.totalorder %s18, 1
      %p78 = scmp.ne.s32.totalorder %s73, %s75
      %p79 = scmp.eq.s32.totalorder %s18, 0
      %p80 = por %p78, %p79
      %p81 = scmp.ne.s32.totalorder %s73, %s75
      %p82 = scmp.eq.s32.totalorder %s23, 1
      %p83 = por %p81, %p82
      %p84 = scmp.ne.s32.totalorder %s75, %s76
      %p85 = scmp.eq.s32.totalorder %s23, 0
      %p86 = por %p84, %p85
      %p87 = scmp.ne.s32.totalorder %s75, %s76
      %p88 = scmp.eq.s32.totalorder %s24, 1
      %p89 = por %p87, %p88
      %p91 = scmp.ne.s32.totalorder %s76, %s90
      %p92 = scmp.eq.s32.totalorder %s24, 0
      %p93 = por %p91, %p92
      %s95 = sadd.s32 %s94, 1
      %p98 = scmp.eq.s32.totalorder %s18, 1
      %p99 = scmp.ne.s32.totalorder %s94, %s96
      %p100 = scmp.eq.s32.totalorder %s18, 0
      %p101 = por %p99, %p100
      %p102 = scmp.ne.s32.totalorder %s94, %s96
      %p103 = scmp.eq.s32.totalorder %s23, 1
      %p104 = por %p102, %p103
      %p105 = scmp.ne.s32.totalorder %s96, %s97
      %p106 = scmp.eq.s32.totalorder %s23, 0
      %p107 = por %p105, %p106
      %p108 = scmp.ne.s32.totalorder %s96, %s97
      %p109 = scmp.eq.s32.totalorder %s24, 1
      %p110 = por %p108, %p109
      %p112 = scmp.ne.s32.totalorder %s97, %s111
      %p113 = scmp.eq.s32.totalorder %s24, 0
      %p114 = por %p112, %p113
      %s116 = sadd.s32 %s115, 1
      %p119 = scmp.eq.s32.totalorder %s18, 1
      %p120 = scmp.ne.s32.totalorder %s115, %s117
      %p121 = scmp.eq.s32.totalorder %s18, 0
      %p122 = por %p120, %p121
      %p123 = scmp.ne.s32.totalorder %s115, %s117
      %p124 = scmp.eq.s32.totalorder %s23, 1
      %p125 = por %p123, %p124
      %p126 = scmp.ne.s32.totalorder %s117, %s118
      %p127 = scmp.eq.s32.totalorder %s23, 0
      %p128 = por %p126, %p127
      %p129 = scmp.ne.s32.totalorder %s117, %s118
      %p130 = scmp.eq.s32.totalorder %s24, 1
      %p131 = por %p129, %p130
      %p133 = scmp.ne.s32.totalorder %s118, %s132
      %p134 = scmp.eq.s32.totalorder %s24, 0
      %p135 = por %p133, %p134
      %s137 = sadd.s32 %s136, 1
      %p140 = scmp.eq.s32.totalorder %s18, 1
      %p141 = scmp.ne.s32.totalorder %s136, %s138
      %p142 = scmp.eq.s32.totalorder %s18, 0
      %p143 = por %p141, %p142
      %p144 = scmp.ne.s32.totalorder %s136, %s138
      %p145 = scmp.eq.s32.totalorder %s23, 1
      %p146 = por %p144, %p145
      %p147 = scmp.ne.s32.totalorder %s138, %s139
      %p148 = scmp.eq.s32.totalorder %s23, 0
      %p149 = por %p147, %p148
      %p150 = scmp.ne.s32.totalorder %s138, %s139
      %p151 = scmp.eq.s32.totalorder %s24, 1
      %p152 = por %p150, %p151
      %p154 = scmp.ne.s32.totalorder %s139, %s153
      %p155 = scmp.eq.s32.totalorder %s24, 0
      %p156 = por %p154, %p155
      %s158 = sadd.s32 %s157, 1
      %p161 = scmp.eq.s32.totalorder %s18, 1
      %p162 = scmp.ne.s32.totalorder %s157, %s159
      %p163 = scmp.eq.s32.totalorder %s18, 0
      %p164 = por %p162, %p163
      %p165 = scmp.ne.s32.totalorder %s157, %s159
      %p166 = scmp.eq.s32.totalorder %s23, 1
      %p167 = por %p165, %p166
      %p168 = scmp.ne.s32.totalorder %s159, %s160
      %p169 = scmp.eq.s32.totalorder %s23, 0
      %p170 = por %p168, %p169
      %p171 = scmp.ne.s32.totalorder %s159, %s160
      %p172 = scmp.eq.s32.totalorder %s24, 1
      %p173 = por %p171, %p172
      %p175 = scmp.ne.s32.totalorder %s160, %s174
      %p176 = scmp.eq.s32.totalorder %s24, 0
      %p177 = por %p175, %p176
      %s179 = sadd.s32 %s178, 1
      %p182 = scmp.eq.s32.totalorder %s18, 1
      %p183 = scmp.ne.s32.totalorder %s178, %s180
      %p184 = scmp.eq.s32.totalorder %s18, 0
      %p185 = por %p183, %p184
      %p186 = scmp.ne.s32.totalorder %s178, %s180
      %p187 = scmp.eq.s32.totalorder %s23, 1
      %p188 = por %p186, %p187
      %p189 = scmp.ne.s32.totalorder %s180, %s181
      %p190 = scmp.eq.s32.totalorder %s23, 0
      %p191 = por %p189, %p190
      %p192 = scmp.ne.s32.totalorder %s180, %s181
      %p193 = scmp.eq.s32.totalorder %s24, 1
      %p194 = por %p192, %p193
      %p196 = scmp.ne.s32.totalorder %s181, %s195
      %p197 = scmp.eq.s32.totalorder %s24, 0
      %p198 = por %p196, %p197
      %s200 = sadd.s32 %s199, 1
      %p203 = scmp.eq.s32.totalorder %s18, 1
      %p204 = scmp.ne.s32.totalorder %s199, %s201
      %p205 = scmp.eq.s32.totalorder %s18, 0
      %p206 = por %p204, %p205
      %p207 = scmp.ne.s32.totalorder %s199, %s201
      %p208 = scmp.eq.s32.totalorder %s23, 1
      %p209 = por %p207, %p208
      %p210 = scmp.ne.s32.totalorder %s201, %s202
      %p211 = scmp.eq.s32.totalorder %s23, 0
      %p212 = por %p210, %p211
      %p213 = scmp.ne.s32.totalorder %s201, %s202
      %p214 = scmp.eq.s32.totalorder %s24, 1
      %p215 = por %p213, %p214
      %p217 = scmp.ne.s32.totalorder %s202, %s216
      %p218 = scmp.eq.s32.totalorder %s24, 0
      %p219 = por %p217, %p218
      %s220 = ssub.s32 %s18, %s25
      %p221 = scmp.eq.s32.totalorder %s220, 0
      %s223 = sadd.s32 %s222, 1
      %s224 = scalar_select %p221, %s222, %s223
      %p227 = pneg %p221
      %p228 = scmp.eq.s32.totalorder %s18, 1
      %p229 = por %p227, %p228
      %p230 = scmp.ne.s32.totalorder %s222, %s225
      %p231 = scmp.eq.s32.totalorder %s18, 0
      %p232 = por %p230, %p231
      %p233 = scmp.ne.s32.totalorder %s222, %s225
      %p234 = scmp.eq.s32.totalorder %s23, 1
      %p235 = por %p233, %p234
      %p236 = scmp.ne.s32.totalorder %s225, %s226
      %p237 = scmp.eq.s32.totalorder %s23, 0
      %p238 = por %p236, %p237
      %p239 = scmp.ne.s32.totalorder %s225, %s226
      %p240 = scmp.eq.s32.totalorder %s24, 1
      %p241 = por %p239, %p240
      %p243 = scmp.ne.s32.totalorder %s226, %s242
      %p244 = scmp.eq.s32.totalorder %s24, 0
      %p245 = por %p243, %p244
      %p246 = scmp.le.s32.totalorder 1, %s18
      %p247 = scmp.lt.s32.totalorder %s18, 3
      %p248 = pnand %p246, %p247
      %p249 = pneg %p248
      // Predicated region
      $region9: #{simple_net_forward.1} parent=5 // pred_check
        _
      $region10: #{simple_net_forward.1} parent=5 // pred_check_branch
        %251 = sbr.rel (%p248) target = $region12
      $region11: #{simple_net_forward.1} parent=5 // pred_region
        %s252 = ssub.s32 %s18, 1
        // Predicated region
        $region13: #{simple_net_forward.1} parent=11 // pred_check
          %p253 = pneg %p65
        $region14: #{simple_net_forward.1} parent=11 // pred_check_branch
          %255 = sbr.rel (%p253) target = $region16
        $region15: #{simple_net_forward.1} parent=11 // pred_region
          _
        $region16: #{simple_net_forward.1} parent=11 // pred_fallthru
          _
        // Predicated region
        $region17: #{simple_net_forward.1} parent=11 // pred_check
          %p256 = pneg %p86
        $region18: #{simple_net_forward.1} parent=11 // pred_check_branch
          %258 = sbr.rel (%p256) target = $region20
        $region19: #{simple_net_forward.1} parent=11 // pred_region
          _
        $region20: #{simple_net_forward.1} parent=11 // pred_fallthru
          _
        // Predicated region
        $region21: #{simple_net_forward.1} parent=11 // pred_check
          %p259 = pneg %p107
        $region22: #{simple_net_forward.1} parent=11 // pred_check_branch
          %261 = sbr.rel (%p259) target = $region24
        $region23: #{simple_net_forward.1} parent=11 // pred_region
          _
        $region24: #{simple_net_forward.1} parent=11 // pred_fallthru
          _
        // Predicated region
        $region25: #{simple_net_forward.1} parent=11 // pred_check
          %p262 = pneg %p128
        $region26: #{simple_net_forward.1} parent=11 // pred_check_branch
          %264 = sbr.rel (%p262) target = $region28
        $region27: #{simple_net_forward.1} parent=11 // pred_region
          _
        $region28: #{simple_net_forward.1} parent=11 // pred_fallthru
          _
        // Predicated region
        $region29: #{simple_net_forward.1} parent=11 // pred_check
          %p265 = pneg %p149
        $region30: #{simple_net_forward.1} parent=11 // pred_check_branch
          %267 = sbr.rel (%p265) target = $region32
        $region31: #{simple_net_forward.1} parent=11 // pred_region
          _
        $region32: #{simple_net_forward.1} parent=11 // pred_fallthru
          _
        // Predicated region
        $region33: #{simple_net_forward.1} parent=11 // pred_check
          %p268 = pneg %p170
        $region34: #{simple_net_forward.1} parent=11 // pred_check_branch
          %270 = sbr.rel (%p268) target = $region36
        $region35: #{simple_net_forward.1} parent=11 // pred_region
          _
        $region36: #{simple_net_forward.1} parent=11 // pred_fallthru
          _
        // Predicated region
        $region37: #{simple_net_forward.1} parent=11 // pred_check
          %p271 = pneg %p191
        $region38: #{simple_net_forward.1} parent=11 // pred_check_branch
          %273 = sbr.rel (%p271) target = $region40
        $region39: #{simple_net_forward.1} parent=11 // pred_region
          _
        $region40: #{simple_net_forward.1} parent=11 // pred_fallthru
          _
        // Predicated region
        $region41: #{simple_net_forward.1} parent=11 // pred_check
          %p274 = pneg %p212
        $region42: #{simple_net_forward.1} parent=11 // pred_check_branch
          %276 = sbr.rel (%p274) target = $region44
        $region43: #{simple_net_forward.1} parent=11 // pred_region
          _
        $region44: #{simple_net_forward.1} parent=11 // pred_fallthru
          _
      $region12: #{simple_net_forward.1} parent=5 // pred_fallthru
        _
      %p277 = scmp.lt.s32.totalorder %s18, 2
      // Predicated region
      $region45: #{simple_net_forward.1} parent=5 // pred_check
        %p278 = pneg %p277
      $region46: #{simple_net_forward.1} parent=5 // pred_check_branch
        %280 = sbr.rel (%p278) target = $region48
      $region47: #{simple_net_forward.1} parent=5 // pred_region
        // Predicated region
        $region49: #{simple_net_forward.1} parent=47 // pred_check
          %p281 = pneg %p38
        $region50: #{simple_net_forward.1} parent=47 // pred_check_branch
          %283 = sbr.rel (%p281) target = $region52
        $region51: #{simple_net_forward.1} parent=47 // pred_region
          %p284 = scmp.lt.s32.totalorder %s18, 1
          %s285 = scalar_select %p284, %s18, 1
          %s286 = smul.addr %s285, 9
          %s287 = smul.addr %s286, 4
          %s288 = scalar_lea.vmem %s0, %s287
        $region52: #{simple_net_forward.1} parent=47 // pred_fallthru
          _
      $region48: #{simple_net_forward.1} parent=5 // pred_fallthru
        _
      %p289 = scmp.le.s32.totalorder 1, %s18
      %p290 = scmp.lt.s32.totalorder %s18, 3
      %p291 = pnand %p289, %p290
      %p292 = pneg %p291
      // Predicated region
      $region53: #{simple_net_forward.1} parent=5 // pred_check
        _
      $region54: #{simple_net_forward.1} parent=5 // pred_check_branch
        %294 = sbr.rel (%p291) target = $region56
      $region55: #{simple_net_forward.1} parent=5 // pred_region
        %s295 = ssub.s32 %s18, 1
        %p296 = scmp.lt.s32.totalorder %s23, 1
        %s297 = scalar_select %p296, %s23, 1
        %s298 = smul.addr %s297, 9
        %s299 = smul.addr %s298, 4
        %s300 = scalar_lea.vmem %s0, %s299
        %p301 = pneg %p44
        %p302 = pneg %p41
        %p303 = pneg %p65
        %p304 = pneg %p62
        %p305 = pneg %p86
        %p306 = pneg %p83
        %p307 = pneg %p107
        %p308 = pneg %p104
        %p309 = pneg %p128
        %p310 = pneg %p125
        %p311 = pneg %p149
        %p312 = pneg %p146
        %p313 = pneg %p170
        %p314 = pneg %p167
        %p315 = pneg %p191
        %p316 = pneg %p188
        %p317 = pneg %p212
        %p318 = pneg %p209
        %p319 = pneg %p238
        %p320 = pneg %p235
        %s321 = sand.u32 %s225, 1
        %s322 = scalar_lea.sflag [#allocation3], %s321
        %s323 = sand.u32 %s225, 1
        %s324 = smul.addr %s323, 4
        %s325 = scalar_lea.vmem [#allocation2], %s324
        %p326 = scmp.lt.s32.totalorder %s23, 1
        %s327 = scalar_select %p326, %s23, 1
        %s328 = smul.addr %s327, 9
        %s329 = smul.addr %s328, 4
        %s330 = scalar_lea.vmem %s0, %s329
        %v332 = vld [vmem:[%s330] sm:$0xf]
        %v333 = vld [vmem:[%s330 + $0x4] sm:$0xf]
        %v334 = vld [vmem:[%s330 + $0x8] sm:$0xf]
        %v335 = vld [vmem:[%s330 + $0xc] sm:$0xf]
        %v336 = vld [vmem:[%s330 + $0x10] sm:$0xf]
        %v337 = vld [vmem:[%s330 + $0x14] sm:$0xf]
        %v338 = vld [vmem:[%s330 + $0x18] sm:$0xf]
        %v339 = vld [vmem:[%s330 + $0x1c] sm:$0xf]
        %v340 = vld [vmem:[%s330 + $0x20] sm:$0xf]
        %v341 = vunpack.c.l.bf16 %v332
        %v342 = vunpack.c.l.bf16 %v333
        %v343 = vunpack.c.l.bf16 %v334
        %v344 = vunpack.c.l.bf16 %v335
        %v345 = vunpack.c.l.bf16 %v336
        %v346 = vunpack.c.l.bf16 %v337
        %v347 = vunpack.c.l.bf16 %v338
        %v348 = vunpack.c.l.bf16 %v339
        %v349 = vunpack.c.l.bf16 %v340
        %vm359 = vcmask 1040384
        %v360 = vrot.slane %v341, 7
        %v361 = vrot.slane %v342, 7
        %v362 = vsel %vm359, %v360, %v361
        %v363 = vrot.slane %v343, 7
        %v364 = vsel %vm359, %v361, %v363
        %v365 = vrot.slane %v344, 7
        %v366 = vsel %vm359, %v363, %v365
        %v367 = vrot.slane %v345, 7
        %v368 = vsel %vm359, %v365, %v367
        %v369 = vrot.slane %v346, 7
        %v370 = vsel %vm359, %v367, %v369
        %v371 = vrot.slane %v347, 7
        %v372 = vsel %vm359, %v369, %v371
        %v373 = vrot.slane %v348, 7
        %v374 = vsel %vm359, %v371, %v373
        %v375 = vrot.slane %v349, 7
        %v376 = vsel %vm359, %v373, %v375
        %v386 = vsel %vm359, 0.0, %v360
        %vm387 = vcmask 1046528
        %v388 = vrot.slane %v341, 1
        %v389 = vrot.slane %v342, 1
        %v390 = vsel %vm387, %v388, %v389
        %v391 = vrot.slane %v343, 1
        %v392 = vsel %vm387, %v389, %v391
        %v393 = vrot.slane %v344, 1
        %v394 = vsel %vm387, %v391, %v393
        %v395 = vrot.slane %v345, 1
        %v396 = vsel %vm387, %v393, %v395
        %v397 = vrot.slane %v346, 1
        %v398 = vsel %vm387, %v395, %v397
        %v399 = vrot.slane %v347, 1
        %v400 = vsel %vm387, %v397, %v399
        %v401 = vrot.slane %v348, 1
        %v402 = vsel %vm387, %v399, %v401
        %v403 = vrot.slane %v349, 1
        %v404 = vsel %vm387, %v401, %v403
        %v414 = vsel %vm387, %v403, 0.0
        %v415 = vpack.c.bf16 %v362, %v386
        %v416 = vpack.c.bf16 %v366, %v364
        %v417 = vpack.c.bf16 %v370, %v368
        %v418 = vpack.c.bf16 %v374, %v372
        %v419 = vpack.c.bf16 %v376, %v376
        %v420 = vld [vmem:[%s1] sm:$0xff]
        %v421 = vld [vmem:[%s1 + $0x8] sm:$0xff]
        %v422 = vld [vmem:[%s1 + $0x10] sm:$0xff]
        %v423 = vld [vmem:[%s1 + $0x18] sm:$0xff]
        %v424 = vld [vmem:[%s1 + $0x20] sm:$0xff]
        %v425 = vld [vmem:[%s1 + $0x28] sm:$0xff]
        %s426 = scalar_lea.vmem %s1, 48
        %v427 = vld [vmem:[%s426] sm:$0xff]
        %v428 = vld [vmem:[%s426 + $0x8] sm:$0xff]
        %v429 = vld [vmem:[%s426 + $0x10] sm:$0xff]
        %v430 = vld [vmem:[%s426 + $0x18] sm:$0xff]
        %v431 = vld [vmem:[%s426 + $0x20] sm:$0xff]
        %v432 = vld [vmem:[%s426 + $0x28] sm:$0xff]
        %v442 = vunpack.c.l.b16 %v332
        %v443 = vunpack.c.l.b16 %v333
        %v444 = vunpack.c.l.b16 %v334
        %v445 = vunpack.c.l.b16 %v335
        %v446 = vunpack.c.l.b16 %v336
        %v447 = vunpack.c.l.b16 %v337
        %v448 = vunpack.c.l.b16 %v338
        %v449 = vunpack.c.l.b16 %v339
        %v450 = vunpack.c.l.b16 %v340
        %v451 = vpack.c.b16 %v443, %v442
        %v452 = vpack.c.b16 %v445, %v444
        %v453 = vpack.c.b16 %v447, %v446
        %v454 = vpack.c.b16 %v449, %v448
        %v455 = vpack.c.b16 %v450, %v450
        %v462 = vunpack.c.l.b16 %v427
        %v463 = vunpack.c.h.b16 %v427
        %v464 = vunpack.c.l.b16 %v428
        %v465 = vunpack.c.h.b16 %v428
        %v466 = vunpack.c.l.b16 %v429
        %v467 = vunpack.c.h.b16 %v429
        %v468 = vunpack.c.l.b16 %v430
        %v469 = vunpack.c.h.b16 %v430
        %v470 = vunpack.c.l.b16 %v431
        %v471 = vunpack.c.h.b16 %v431
        %v472 = vunpack.c.l.b16 %v432
        %v473 = vunpack.c.h.b16 %v432
        %v474 = vpack.c.b16 %v464, %v462
        %v475 = vpack.c.b16 %v465, %v463
        %v476 = vpack.c.b16 %v468, %v466
        %v477 = vpack.c.b16 %v469, %v467
        %v478 = vpack.c.b16 %v472, %v470
        %v479 = vpack.c.b16 %v473, %v471
        %vm486 = vcmask 392192
        %v488 = vsel %vm486, %v451, 0
        %v491 = vsel %vm486, %v452, 0
        %v494 = vsel %vm486, %v453, 0
        %v497 = vsel %vm486, %v454, 0
        %v500 = vsel %vm486, %v455, 0
        %502 = vmatprep.subr.bf16.mxu0 0
        %503 = vmatpush1.bf16.msra.mxu0 0
        %504 = vmatprep.subr.bf16.mxu0 0
        %505 = vmatpush1.bf16.msra.mxu0 0
        %506 = vmatprep.subr.bf16.mxu0 0
        %507 = vmatpush1.bf16.msra.mxu0 0
        %508 = vmatprep.subr.bf16.mxu0 0
        %509 = vmatpush1.bf16.msra.mxu0 0
        %510 = vmatprep.subr.bf16.mxu0 0
        %511 = vmatpush1.bf16.msra.mxu0 0
        %512 = vmatprep.subr.bf16.mxu0 %v479
        %513 = vmatpush1.bf16.msra.mxu0 %v478
        %514 = vmatprep.subr.bf16.mxu0 %v477
        %515 = vmatpush1.bf16.msra.mxu0 %v476
        %516 = vmatprep.subr.bf16.mxu0 %v475
        %517 = vmatpush1.bf16.msra.mxu0 %v474
        %518 = vmatprep.subr.bf16.mxu0 0
        %519 = vmatpush2.bf16.msra.mxu0 0
        %520 = vmatprep.subr.bf16.mxu0 0
        %521 = vmatpush2.bf16.msra.mxu0 0
        %522 = vmatprep.subr.bf16.mxu0 0
        %523 = vmatpush2.bf16.msra.mxu0 0
        %524 = vmatprep.subr.bf16.mxu0 0
        %525 = vmatpush2.bf16.msra.mxu0 0
        %526 = vmatprep.subr.bf16.mxu0 0
        %527 = vmatpush2.bf16.msra.mxu0 0
        %528 = vmatprep.subr.bf16.mxu0 0
        %529 = vmatpush2.bf16.msra.mxu0 0
        %530 = vmatprep.subr.bf16.mxu0 0
        %531 = vmatpush2.bf16.msra.mxu0 0
        %532 = vmatprep.subr.bf16.mxu0 0
        %533 = vmatpush2.bf16.msra.mxu0 0
        %534 = vmatprep.mubr.bf16.mxu0 0
        %535 = vmatmul.mubr.bf16.gmra.mxu0 %v488
        %v536 = vpop.f32.mrf.mxu0
        %v537 = vadd.f32 0.0, %v536
        %v538 = vpop.f32.mrf.mxu0
        %v539 = vadd.f32 0.0, %v538
        %v540 = vpop.f32.mrf.mxu0
        %v541 = vadd.f32 0.0, %v540
        %v542 = vpop.f32.mrf.mxu0
        %v543 = vadd.f32 0.0, %v542
        %544 = vmatprep.mubr.bf16.mxu0 0
        %545 = vmatmul.mubr.bf16.gmra.mxu0 %v491
        %v546 = vpop.f32.mrf.mxu0
        %v547 = vadd.f32 0.0, %v546
        %v548 = vpop.f32.mrf.mxu0
        %v549 = vadd.f32 0.0, %v548
        %v550 = vpop.f32.mrf.mxu0
        %v551 = vadd.f32 0.0, %v550
        %v552 = vpop.f32.mrf.mxu0
        %v553 = vadd.f32 0.0, %v552
        %554 = vmatprep.mubr.bf16.mxu0 0
        %555 = vmatmul.mubr.bf16.gmra.mxu0 %v494
        %v556 = vpop.f32.mrf.mxu0
        %v557 = vadd.f32 0.0, %v556
        %v558 = vpop.f32.mrf.mxu0
        %v559 = vadd.f32 0.0, %v558
        %v560 = vpop.f32.mrf.mxu0
        %v561 = vadd.f32 0.0, %v560
        %v562 = vpop.f32.mrf.mxu0
        %v563 = vadd.f32 0.0, %v562
        %564 = vmatprep.mubr.bf16.mxu0 0
        %565 = vmatmul.mubr.bf16.gmra.mxu0 %v497
        %v566 = vpop.f32.mrf.mxu0
        %v567 = vadd.f32 0.0, %v566
        %v568 = vpop.f32.mrf.mxu0
        %v569 = vadd.f32 0.0, %v568
        %v570 = vpop.f32.mrf.mxu0
        %v571 = vadd.f32 0.0, %v570
        %v572 = vpop.f32.mrf.mxu0
        %v573 = vadd.f32 0.0, %v572
        %574 = vmatprep.mubr.bf16.mxu0 0
        %575 = vmatmul.mubr.bf16.gmra.mxu0 %v500
        %v576 = vpop.f32.mrf.mxu0
        %v577 = vadd.f32 0.0, %v576
        %v578 = vpop.f32.mrf.mxu0
        %v579 = vadd.f32 0.0, %v578
        %v580 = vpop.f32.mrf.mxu0
        %v581 = vpop.f32.mrf.mxu0
        %582 = vdwg.mxu0
        %v589 = vunpack.c.l.b16 %v420
        %v590 = vunpack.c.h.b16 %v420
        %v591 = vunpack.c.l.b16 %v421
        %v592 = vunpack.c.h.b16 %v421
        %v593 = vunpack.c.l.b16 %v422
        %v594 = vunpack.c.h.b16 %v422
        %v595 = vunpack.c.l.b16 %v423
        %v596 = vunpack.c.h.b16 %v423
        %v597 = vunpack.c.l.b16 %v424
        %v598 = vunpack.c.h.b16 %v424
        %v599 = vunpack.c.l.b16 %v425
        %v600 = vunpack.c.h.b16 %v425
        %v601 = vpack.c.b16 %v591, %v589
        %v602 = vpack.c.b16 %v592, %v590
        %v603 = vpack.c.b16 %v595, %v593
        %v604 = vpack.c.b16 %v596, %v594
        %v605 = vpack.c.b16 %v599, %v597
        %v606 = vpack.c.b16 %v600, %v598
        %v614 = vsel %vm486, %v415, 0
        %v617 = vsel %vm486, %v416, 0
        %v620 = vsel %vm486, %v417, 0
        %v623 = vsel %vm486, %v418, 0
        %v626 = vsel %vm486, %v419, 0
        %628 = vmatprep.subr.bf16.mxu0 0
        %629 = vmatpush1.bf16.msra.mxu0 0
        %630 = vmatprep.subr.bf16.mxu0 0
        %631 = vmatpush1.bf16.msra.mxu0 0
        %632 = vmatprep.subr.bf16.mxu0 0
        %633 = vmatpush1.bf16.msra.mxu0 0
        %634 = vmatprep.subr.bf16.mxu0 0
        %635 = vmatpush1.bf16.msra.mxu0 0
        %636 = vmatprep.subr.bf16.mxu0 0
        %637 = vmatpush1.bf16.msra.mxu0 0
        %638 = vmatprep.subr.bf16.mxu0 %v606
        %639 = vmatpush1.bf16.msra.mxu0 %v605
        %640 = vmatprep.subr.bf16.mxu0 %v604
        %641 = vmatpush1.bf16.msra.mxu0 %v603
        %642 = vmatprep.subr.bf16.mxu0 %v602
        %643 = vmatpush1.bf16.msra.mxu0 %v601
        %644 = vmatprep.subr.bf16.mxu0 0
        %645 = vmatpush2.bf16.msra.mxu0 0
        %646 = vmatprep.subr.bf16.mxu0 0
        %647 = vmatpush2.bf16.msra.mxu0 0
        %648 = vmatprep.subr.bf16.mxu0 0
        %649 = vmatpush2.bf16.msra.mxu0 0
        %650 = vmatprep.subr.bf16.mxu0 0
        %651 = vmatpush2.bf16.msra.mxu0 0
        %652 = vmatprep.subr.bf16.mxu0 0
        %653 = vmatpush2.bf16.msra.mxu0 0
        %654 = vmatprep.subr.bf16.mxu0 0
        %655 = vmatpush2.bf16.msra.mxu0 0
        %656 = vmatprep.subr.bf16.mxu0 0
        %657 = vmatpush2.bf16.msra.mxu0 0
        %658 = vmatprep.subr.bf16.mxu0 0
        %659 = vmatpush2.bf16.msra.mxu0 0
        %660 = vmatprep.mubr.bf16.mxu0 0
        %661 = vmatmul.mubr.bf16.gmra.mxu0 %v614
        %v662 = vpop.f32.mrf.mxu0
        %v663 = vadd.f32 %v537, %v662
        %v664 = vpop.f32.mrf.mxu0
        %v665 = vadd.f32 %v539, %v664
        %v666 = vpop.f32.mrf.mxu0
        %v667 = vadd.f32 %v541, %v666
        %v668 = vpop.f32.mrf.mxu0
        %v669 = vadd.f32 %v543, %v668
        %670 = vmatprep.mubr.bf16.mxu0 0
        %671 = vmatmul.mubr.bf16.gmra.mxu0 %v617
        %v672 = vpop.f32.mrf.mxu0
        %v673 = vadd.f32 %v547, %v672
        %v674 = vpop.f32.mrf.mxu0
        %v675 = vadd.f32 %v549, %v674
        %v676 = vpop.f32.mrf.mxu0
        %v677 = vadd.f32 %v551, %v676
        %v678 = vpop.f32.mrf.mxu0
        %v679 = vadd.f32 %v553, %v678
        %680 = vmatprep.mubr.bf16.mxu0 0
        %681 = vmatmul.mubr.bf16.gmra.mxu0 %v620
        %v682 = vpop.f32.mrf.mxu0
        %v683 = vadd.f32 %v557, %v682
        %v684 = vpop.f32.mrf.mxu0
        %v685 = vadd.f32 %v559, %v684
        %v686 = vpop.f32.mrf.mxu0
        %v687 = vadd.f32 %v561, %v686
        %v688 = vpop.f32.mrf.mxu0
        %v689 = vadd.f32 %v563, %v688
        %690 = vmatprep.mubr.bf16.mxu0 0
        %691 = vmatmul.mubr.bf16.gmra.mxu0 %v623
        %v692 = vpop.f32.mrf.mxu0
        %v693 = vadd.f32 %v567, %v692
        %v694 = vpop.f32.mrf.mxu0
        %v695 = vadd.f32 %v569, %v694
        %v696 = vpop.f32.mrf.mxu0
        %v697 = vadd.f32 %v571, %v696
        %v698 = vpop.f32.mrf.mxu0
        %v699 = vadd.f32 %v573, %v698
        %700 = vmatprep.mubr.bf16.mxu0 0
        %701 = vmatmul.mubr.bf16.gmra.mxu0 %v626
        %v702 = vpop.f32.mrf.mxu0
        %v703 = vadd.f32 %v577, %v702
        %v704 = vpop.f32.mrf.mxu0
        %v705 = vadd.f32 %v579, %v704
        %v706 = vpop.f32.mrf.mxu0
        %v707 = vpop.f32.mrf.mxu0
        %708 = vdwg.mxu0
        %v709 = vpack.c.bf16 %v392, %v390
        %v710 = vpack.c.bf16 %v396, %v394
        %v711 = vpack.c.bf16 %v400, %v398
        %v712 = vpack.c.bf16 %v404, %v402
        %v713 = vpack.c.bf16 %v414, %v414
        %s714 = scalar_lea.vmem %s1, 96
        %v715 = vld [vmem:[%s714] sm:$0xff]
        %v716 = vld [vmem:[%s714 + $0x8] sm:$0xff]
        %v717 = vld [vmem:[%s714 + $0x10] sm:$0xff]
        %v718 = vld [vmem:[%s714 + $0x18] sm:$0xff]
        %v719 = vld [vmem:[%s714 + $0x20] sm:$0xff]
        %v720 = vld [vmem:[%s714 + $0x28] sm:$0xff]
        %v727 = vunpack.c.l.b16 %v715
        %v728 = vunpack.c.h.b16 %v715
        %v729 = vunpack.c.l.b16 %v716
        %v730 = vunpack.c.h.b16 %v716
        %v731 = vunpack.c.l.b16 %v717
        %v732 = vunpack.c.h.b16 %v717
        %v733 = vunpack.c.l.b16 %v718
        %v734 = vunpack.c.h.b16 %v718
        %v735 = vunpack.c.l.b16 %v719
        %v736 = vunpack.c.h.b16 %v719
        %v737 = vunpack.c.l.b16 %v720
        %v738 = vunpack.c.h.b16 %v720
        %v739 = vpack.c.b16 %v729, %v727
        %v740 = vpack.c.b16 %v730, %v728
        %v741 = vpack.c.b16 %v733, %v731
        %v742 = vpack.c.b16 %v734, %v732
        %v743 = vpack.c.b16 %v737, %v735
        %v744 = vpack.c.b16 %v738, %v736
        %v752 = vsel %vm486, %v709, 0
        %v755 = vsel %vm486, %v710, 0
        %v758 = vsel %vm486, %v711, 0
        %v761 = vsel %vm486, %v712, 0
        %v764 = vsel %vm486, %v713, 0
        %766 = vmatprep.subr.bf16.mxu0 0
        %767 = vmatpush1.bf16.msra.mxu0 0
        %768 = vmatprep.subr.bf16.mxu0 0
        %769 = vmatpush1.bf16.msra.mxu0 0
        %770 = vmatprep.subr.bf16.mxu0 0
        %771 = vmatpush1.bf16.msra.mxu0 0
        %772 = vmatprep.subr.bf16.mxu0 0
        %773 = vmatpush1.bf16.msra.mxu0 0
        %774 = vmatprep.subr.bf16.mxu0 0
        %775 = vmatpush1.bf16.msra.mxu0 0
        %776 = vmatprep.subr.bf16.mxu0 %v744
        %777 = vmatpush1.bf16.msra.mxu0 %v743
        %778 = vmatprep.subr.bf16.mxu0 %v742
        %779 = vmatpush1.bf16.msra.mxu0 %v741
        %780 = vmatprep.subr.bf16.mxu0 %v740
        %781 = vmatpush1.bf16.msra.mxu0 %v739
        %782 = vmatprep.subr.bf16.mxu0 0
        %783 = vmatpush2.bf16.msra.mxu0 0
        %784 = vmatprep.subr.bf16.mxu0 0
        %785 = vmatpush2.bf16.msra.mxu0 0
        %786 = vmatprep.subr.bf16.mxu0 0
        %787 = vmatpush2.bf16.msra.mxu0 0
        %788 = vmatprep.subr.bf16.mxu0 0
        %789 = vmatpush2.bf16.msra.mxu0 0
        %790 = vmatprep.subr.bf16.mxu0 0
        %791 = vmatpush2.bf16.msra.mxu0 0
        %792 = vmatprep.subr.bf16.mxu0 0
        %793 = vmatpush2.bf16.msra.mxu0 0
        %794 = vmatprep.subr.bf16.mxu0 0
        %795 = vmatpush2.bf16.msra.mxu0 0
        %796 = vmatprep.subr.bf16.mxu0 0
        %797 = vmatpush2.bf16.msra.mxu0 0
        %798 = vmatprep.mubr.bf16.mxu0 0
        %799 = vmatmul.mubr.bf16.gmra.mxu0 %v752
        %v800 = vpop.f32.mrf.mxu0
        %v801 = vadd.f32 0.0, %v800
        %v802 = vpop.f32.mrf.mxu0
        %v803 = vadd.f32 0.0, %v802
        %v804 = vpop.f32.mrf.mxu0
        %v805 = vadd.f32 0.0, %v804
        %v806 = vpop.f32.mrf.mxu0
        %v807 = vadd.f32 0.0, %v806
        %808 = vmatprep.mubr.bf16.mxu0 0
        %809 = vmatmul.mubr.bf16.gmra.mxu0 %v755
        %v810 = vpop.f32.mrf.mxu0
        %v811 = vadd.f32 0.0, %v810
        %v812 = vpop.f32.mrf.mxu0
        %v813 = vadd.f32 0.0, %v812
        %v814 = vpop.f32.mrf.mxu0
        %v815 = vadd.f32 0.0, %v814
        %v816 = vpop.f32.mrf.mxu0
        %v817 = vadd.f32 0.0, %v816
        %818 = vmatprep.mubr.bf16.mxu0 0
        %819 = vmatmul.mubr.bf16.gmra.mxu0 %v758
        %v820 = vpop.f32.mrf.mxu0
        %v821 = vadd.f32 0.0, %v820
        %v822 = vpop.f32.mrf.mxu0
        %v823 = vadd.f32 0.0, %v822
        %v824 = vpop.f32.mrf.mxu0
        %v825 = vadd.f32 0.0, %v824
        %v826 = vpop.f32.mrf.mxu0
        %v827 = vadd.f32 0.0, %v826
        %828 = vmatprep.mubr.bf16.mxu0 0
        %829 = vmatmul.mubr.bf16.gmra.mxu0 %v761
        %v830 = vpop.f32.mrf.mxu0
        %v831 = vadd.f32 0.0, %v830
        %v832 = vpop.f32.mrf.mxu0
        %v833 = vadd.f32 0.0, %v832
        %v834 = vpop.f32.mrf.mxu0
        %v835 = vadd.f32 0.0, %v834
        %v836 = vpop.f32.mrf.mxu0
        %v837 = vadd.f32 0.0, %v836
        %838 = vmatprep.mubr.bf16.mxu0 0
        %839 = vmatmul.mubr.bf16.gmra.mxu0 %v764
        %v840 = vpop.f32.mrf.mxu0
        %v841 = vadd.f32 0.0, %v840
        %v842 = vpop.f32.mrf.mxu0
        %v843 = vadd.f32 0.0, %v842
        %v844 = vpop.f32.mrf.mxu0
        %v845 = vpop.f32.mrf.mxu0
        %846 = vdwg.mxu0
        %v847 = vadd.f32 %v663, %v801
        %v848 = vadd.f32 %v665, %v803
        %v849 = vadd.f32 %v667, %v805
        %v850 = vadd.f32 %v669, %v807
        %v851 = vadd.f32 %v673, %v811
        %v852 = vadd.f32 %v675, %v813
        %v853 = vadd.f32 %v677, %v815
        %v854 = vadd.f32 %v679, %v817
        %v855 = vadd.f32 %v683, %v821
        %v856 = vadd.f32 %v685, %v823
        %v857 = vadd.f32 %v687, %v825
        %v858 = vadd.f32 %v689, %v827
        %v859 = vadd.f32 %v693, %v831
        %v860 = vadd.f32 %v695, %v833
        %v861 = vadd.f32 %v697, %v835
        %v862 = vadd.f32 %v699, %v837
        %v863 = vadd.f32 %v703, %v841
        %v864 = vadd.f32 %v705, %v843
        %v865 = vld [vmem:[%s2] sm:$0x3]
        %v867 = vlaneseq
        %v868 = vshrl.u32 %v867, 7
        %v869 = vsub.s32 0, %v868
        %v870 = vrot.slane %v865, %v869
        %v871 = vlaneseq
        %v872 = vshrl.u32 %v871, 7
        %v873 = vsub.s32 1, %v872
        %v874 = vrot.slane %v865, %v873
        %v877 = vadd.f32 %v847, %v870
        %v878 = vadd.f32 %v848, %v874
        %v879 = vadd.f32 %v849, %v870
        %v880 = vadd.f32 %v850, %v874
        %v881 = vadd.f32 %v851, %v870
        %v882 = vadd.f32 %v852, %v874
        %v883 = vadd.f32 %v853, %v870
        %v884 = vadd.f32 %v854, %v874
        %v885 = vadd.f32 %v855, %v870
        %v886 = vadd.f32 %v856, %v874
        %v887 = vadd.f32 %v857, %v870
        %v888 = vadd.f32 %v858, %v874
        %v889 = vadd.f32 %v859, %v870
        %v890 = vadd.f32 %v860, %v874
        %v891 = vadd.f32 %v861, %v870
        %v892 = vadd.f32 %v862, %v874
        %v893 = vadd.f32 %v863, %v870
        %v894 = vadd.f32 %v864, %v874
        %v895 = vmax.f32 %v877, 0.0
        %v896 = vmax.f32 %v878, 0.0
        %v897 = vmax.f32 %v879, 0.0
        %v898 = vmax.f32 %v880, 0.0
        %v899 = vmax.f32 %v881, 0.0
        %v900 = vmax.f32 %v882, 0.0
        %v901 = vmax.f32 %v883, 0.0
        %v902 = vmax.f32 %v884, 0.0
        %v903 = vmax.f32 %v885, 0.0
        %v904 = vmax.f32 %v886, 0.0
        %v905 = vmax.f32 %v887, 0.0
        %v906 = vmax.f32 %v888, 0.0
        %v907 = vmax.f32 %v889, 0.0
        %v908 = vmax.f32 %v890, 0.0
        %v909 = vmax.f32 %v891, 0.0
        %v910 = vmax.f32 %v892, 0.0
        %v911 = vmax.f32 %v893, 0.0
        %v912 = vmax.f32 %v894, 0.0
        %v913 = vld [vmem:[%s5] sm:$0xff]
        %v914 = vld [vmem:[%s5 + $0x8] sm:$0xff]
        %v915 = vld [vmem:[%s5 + $0x10] sm:$0xff]
        %v916 = vld [vmem:[%s5 + $0x18] sm:$0xff]
        %v917 = vld [vmem:[%s5 + $0x20] sm:$0xff]
        %v918 = vld [vmem:[%s5 + $0x28] sm:$0xff]
        %v919 = vld [vmem:[%s5 + $0x30] sm:$0xff]
        %v920 = vld [vmem:[%s5 + $0x38] sm:$0xff]
        %v921 = vld [vmem:[%s5 + $0x40] sm:$0xff]
        %923 = vset.pattern.permute.xlu0 0
        %924 = vperm.xlu0 %923, %v913
        %v925 = vpop.permute.xlu0 %924
        %928 = vset.pattern.permute.xlu0 0
        %929 = vperm.xlu0 %928, %v914
        %v930 = vpop.permute.xlu0 %929
        %933 = vset.pattern.permute.xlu0 0
        %934 = vperm.xlu0 %933, %v915
        %v935 = vpop.permute.xlu0 %934
        %938 = vset.pattern.permute.xlu0 0
        %939 = vperm.xlu0 %938, %v916
        %v940 = vpop.permute.xlu0 %939
        %943 = vset.pattern.permute.xlu0 0
        %944 = vperm.xlu0 %943, %v917
        %v945 = vpop.permute.xlu0 %944
        %948 = vset.pattern.permute.xlu0 0
        %949 = vperm.xlu0 %948, %v918
        %v950 = vpop.permute.xlu0 %949
        %953 = vset.pattern.permute.xlu0 0
        %954 = vperm.xlu0 %953, %v919
        %v955 = vpop.permute.xlu0 %954
        %958 = vset.pattern.permute.xlu0 0
        %959 = vperm.xlu0 %958, %v920
        %v960 = vpop.permute.xlu0 %959
        %963 = vset.pattern.permute.xlu0 0
        %964 = vperm.xlu0 %963, %v921
        %v965 = vpop.permute.xlu0 %964
        %v967 = vmul.f32 %v895, %v925
        %v968 = vmul.f32 %v896, %v925
        %v969 = vmul.f32 %v897, %v930
        %v970 = vmul.f32 %v898, %v930
        %v971 = vmul.f32 %v899, %v935
        %v972 = vmul.f32 %v900, %v935
        %v973 = vmul.f32 %v901, %v940
        %v974 = vmul.f32 %v902, %v940
        %v975 = vmul.f32 %v903, %v945
        %v976 = vmul.f32 %v904, %v945
        %v977 = vmul.f32 %v905, %v950
        %v978 = vmul.f32 %v906, %v950
        %v979 = vmul.f32 %v907, %v955
        %v980 = vmul.f32 %v908, %v955
        %v981 = vmul.f32 %v909, %v960
        %v982 = vmul.f32 %v910, %v960
        %v983 = vmul.f32 %v911, %v965
        %v984 = vmul.f32 %v912, %v965
        %v1003 = vrot.slane %v967, 7
        %v1004 = vrot.slane %v968, 7
        %v1005 = vrot.slane %v969, 7
        %v1006 = vsel %vm359, %v1003, %v1005
        %v1007 = vrot.slane %v970, 7
        %v1008 = vsel %vm359, %v1004, %v1007
        %v1009 = vrot.slane %v971, 7
        %v1010 = vsel %vm359, %v1005, %v1009
        %v1011 = vrot.slane %v972, 7
        %v1012 = vsel %vm359, %v1007, %v1011
        %v1013 = vrot.slane %v973, 7
        %v1014 = vsel %vm359, %v1009, %v1013
        %v1015 = vrot.slane %v974, 7
        %v1016 = vsel %vm359, %v1011, %v1015
        %v1017 = vrot.slane %v975, 7
        %v1018 = vsel %vm359, %v1013, %v1017
        %v1019 = vrot.slane %v976, 7
        %v1020 = vsel %vm359, %v1015, %v1019
        %v1021 = vrot.slane %v977, 7
        %v1022 = vsel %vm359, %v1017, %v1021
        %v1023 = vrot.slane %v978, 7
        %v1024 = vsel %vm359, %v1019, %v1023
        %v1025 = vrot.slane %v979, 7
        %v1026 = vsel %vm359, %v1021, %v1025
        %v1027 = vrot.slane %v980, 7
        %v1028 = vsel %vm359, %v1023, %v1027
        %v1029 = vrot.slane %v981, 7
        %v1030 = vsel %vm359, %v1025, %v1029
        %v1031 = vrot.slane %v982, 7
        %v1032 = vsel %vm359, %v1027, %v1031
        %v1033 = vrot.slane %v983, 7
        %v1034 = vsel %vm359, %v1029, %v1033
        %v1035 = vrot.slane %v984, 7
        %v1036 = vsel %vm359, %v1031, %v1035
        %v1055 = vsel %vm359, 0.0, %v1003
        %v1056 = vsel %vm359, 0.0, %v1004
        %v1057 = vrot.slane %v967, 1
        %v1058 = vrot.slane %v969, 1
        %v1059 = vsel %vm387, %v1057, %v1058
        %v1060 = vrot.slane %v968, 1
        %v1061 = vrot.slane %v970, 1
        %v1062 = vsel %vm387, %v1060, %v1061
        %v1063 = vrot.slane %v971, 1
        %v1064 = vsel %vm387, %v1058, %v1063
        %v1065 = vrot.slane %v972, 1
        %v1066 = vsel %vm387, %v1061, %v1065
        %v1067 = vrot.slane %v973, 1
        %v1068 = vsel %vm387, %v1063, %v1067
        %v1069 = vrot.slane %v974, 1
        %v1070 = vsel %vm387, %v1065, %v1069
        %v1071 = vrot.slane %v975, 1
        %v1072 = vsel %vm387, %v1067, %v1071
        %v1073 = vrot.slane %v976, 1
        %v1074 = vsel %vm387, %v1069, %v1073
        %v1075 = vrot.slane %v977, 1
        %v1076 = vsel %vm387, %v1071, %v1075
        %v1077 = vrot.slane %v978, 1
        %v1078 = vsel %vm387, %v1073, %v1077
        %v1079 = vrot.slane %v979, 1
        %v1080 = vsel %vm387, %v1075, %v1079
        %v1081 = vrot.slane %v980, 1
        %v1082 = vsel %vm387, %v1077, %v1081
        %v1083 = vrot.slane %v981, 1
        %v1084 = vsel %vm387, %v1079, %v1083
        %v1085 = vrot.slane %v982, 1
        %v1086 = vsel %vm387, %v1081, %v1085
        %v1087 = vrot.slane %v983, 1
        %v1088 = vsel %vm387, %v1083, %v1087
        %v1089 = vrot.slane %v984, 1
        %v1090 = vsel %vm387, %v1085, %v1089
        %v1109 = vsel %vm387, %v1087, 0.0
        %v1110 = vsel %vm387, %v1089, 0.0
        %v1111 = vpack.c.bf16 %v1006, %v1055
        %v1112 = vpack.c.bf16 %v1008, %v1056
        %v1113 = vpack.c.bf16 %v1014, %v1010
        %v1114 = vpack.c.bf16 %v1016, %v1012
        %v1115 = vpack.c.bf16 %v1022, %v1018
        %v1116 = vpack.c.bf16 %v1024, %v1020
        %v1117 = vpack.c.bf16 %v1030, %v1026
        %v1118 = vpack.c.bf16 %v1032, %v1028
        %v1119 = vpack.c.bf16 %v1034, %v1034
        %v1120 = vpack.c.bf16 %v1036, %v1036
        %v1121 = vld [vmem:[%s3] sm:$0xff]
        %v1122 = vld [vmem:[%s3 + $0x8] sm:$0xff]
        %v1123 = vld [vmem:[%s3 + $0x10] sm:$0xff]
        %v1124 = vld [vmem:[%s3 + $0x18] sm:$0xff]
        %v1125 = vld [vmem:[%s3 + $0x20] sm:$0xff]
        %v1126 = vld [vmem:[%s3 + $0x28] sm:$0xff]
        %v1127 = vld [vmem:[%s3 + $0x30] sm:$0xff]
        %v1128 = vld [vmem:[%s3 + $0x38] sm:$0xff]
        %v1129 = vld [vmem:[%s3 + $0x40] sm:$0xff]
        %v1130 = vld [vmem:[%s3 + $0x48] sm:$0xff]
        %v1131 = vld [vmem:[%s3 + $0x50] sm:$0xff]
        %v1132 = vld [vmem:[%s3 + $0x58] sm:$0xff]
        %v1133 = vld [vmem:[%s3 + $0x60] sm:$0xff]
        %v1134 = vld [vmem:[%s3 + $0x68] sm:$0xff]
        %v1135 = vld [vmem:[%s3 + $0x70] sm:$0xff]
        %v1136 = vld [vmem:[%s3 + $0x78] sm:$0xff]
        %v1137 = vld [vmem:[%s3 + $0x80] sm:$0xff]
        %v1138 = vld [vmem:[%s3 + $0x88] sm:$0xff]
        %v1139 = vld [vmem:[%s3 + $0x90] sm:$0xff]
        %v1140 = vld [vmem:[%s3 + $0x98] sm:$0xff]
        %v1141 = vld [vmem:[%s3 + $0xa0] sm:$0xff]
        %v1142 = vld [vmem:[%s3 + $0xa8] sm:$0xff]
        %v1143 = vld [vmem:[%s3 + $0xb0] sm:$0xff]
        %v1144 = vld [vmem:[%s3 + $0xb8] sm:$0xff]
        %v1145 = vld [vmem:[%s3 + $0xc0] sm:$0xff]
        %v1146 = vld [vmem:[%s3 + $0xc8] sm:$0xff]
        %v1147 = vld [vmem:[%s3 + $0xd0] sm:$0xff]
        %v1148 = vld [vmem:[%s3 + $0xd8] sm:$0xff]
        %v1149 = vld [vmem:[%s3 + $0xe0] sm:$0xff]
        %v1150 = vld [vmem:[%s3 + $0xe8] sm:$0xff]
        %v1151 = vld [vmem:[%s3 + $0xf0] sm:$0xff]
        %v1152 = vld [vmem:[%s3 + $0xf8] sm:$0xff]
        %v1153 = vld [vmem:[%s3 + $0x100] sm:$0xff]
        %v1154 = vld [vmem:[%s3 + $0x108] sm:$0xff]
        %v1155 = vld [vmem:[%s3 + $0x110] sm:$0xff]
        %v1156 = vld [vmem:[%s3 + $0x118] sm:$0xff]
        %v1157 = vld [vmem:[%s3 + $0x120] sm:$0xff]
        %v1158 = vld [vmem:[%s3 + $0x128] sm:$0xff]
        %v1159 = vld [vmem:[%s3 + $0x130] sm:$0xff]
        %v1160 = vld [vmem:[%s3 + $0x138] sm:$0xff]
        %v1161 = vld [vmem:[%s3 + $0x140] sm:$0xff]
        %v1162 = vld [vmem:[%s3 + $0x148] sm:$0xff]
        %v1163 = vld [vmem:[%s3 + $0x150] sm:$0xff]
        %v1164 = vld [vmem:[%s3 + $0x158] sm:$0xff]
        %v1165 = vld [vmem:[%s3 + $0x160] sm:$0xff]
        %v1166 = vld [vmem:[%s3 + $0x168] sm:$0xff]
        %v1167 = vld [vmem:[%s3 + $0x170] sm:$0xff]
        %v1168 = vld [vmem:[%s3 + $0x178] sm:$0xff]
        %v1169 = vld [vmem:[%s3 + $0x180] sm:$0xff]
        %v1170 = vld [vmem:[%s3 + $0x188] sm:$0xff]
        %v1171 = vld [vmem:[%s3 + $0x190] sm:$0xff]
        %v1172 = vld [vmem:[%s3 + $0x198] sm:$0xff]
        %v1173 = vld [vmem:[%s3 + $0x1a0] sm:$0xff]
        %v1174 = vld [vmem:[%s3 + $0x1a8] sm:$0xff]
        %v1175 = vld [vmem:[%s3 + $0x1b0] sm:$0xff]
        %v1176 = vld [vmem:[%s3 + $0x1b8] sm:$0xff]
        %v1177 = vld [vmem:[%s3 + $0x1c0] sm:$0xff]
        %v1178 = vld [vmem:[%s3 + $0x1c8] sm:$0xff]
        %v1179 = vld [vmem:[%s3 + $0x1d0] sm:$0xff]
        %v1180 = vld [vmem:[%s3 + $0x1d8] sm:$0xff]
        %v1181 = vld [vmem:[%s3 + $0x1e0] sm:$0xff]
        %v1182 = vld [vmem:[%s3 + $0x1e8] sm:$0xff]
        %v1183 = vld [vmem:[%s3 + $0x1f0] sm:$0xff]
        %v1184 = vld [vmem:[%s3 + $0x1f8] sm:$0xff]
        %v1185 = vpack.c.bf16 %v969, %v967
        %v1186 = vpack.c.bf16 %v970, %v968
        %v1187 = vpack.c.bf16 %v973, %v971
        %v1188 = vpack.c.bf16 %v974, %v972
        %v1189 = vpack.c.bf16 %v977, %v975
        %v1190 = vpack.c.bf16 %v978, %v976
        %v1191 = vpack.c.bf16 %v981, %v979
        %v1192 = vpack.c.bf16 %v982, %v980
        %v1193 = vpack.c.bf16 %v983, %v983
        %v1194 = vpack.c.bf16 %v984, %v984
        %s1195 = scalar_lea.vmem %s3, 512
        %v1196 = vld [vmem:[%s1195] sm:$0xff]
        %v1197 = vld [vmem:[%s1195 + $0x8] sm:$0xff]
        %v1198 = vld [vmem:[%s1195 + $0x10] sm:$0xff]
        %v1199 = vld [vmem:[%s1195 + $0x18] sm:$0xff]
        %v1200 = vld [vmem:[%s1195 + $0x20] sm:$0xff]
        %v1201 = vld [vmem:[%s1195 + $0x28] sm:$0xff]
        %v1202 = vld [vmem:[%s1195 + $0x30] sm:$0xff]
        %v1203 = vld [vmem:[%s1195 + $0x38] sm:$0xff]
        %v1204 = vld [vmem:[%s1195 + $0x40] sm:$0xff]
        %v1205 = vld [vmem:[%s1195 + $0x48] sm:$0xff]
        %v1206 = vld [vmem:[%s1195 + $0x50] sm:$0xff]
        %v1207 = vld [vmem:[%s1195 + $0x58] sm:$0xff]
        %v1208 = vld [vmem:[%s1195 + $0x60] sm:$0xff]
        %v1209 = vld [vmem:[%s1195 + $0x68] sm:$0xff]
        %v1210 = vld [vmem:[%s1195 + $0x70] sm:$0xff]
        %v1211 = vld [vmem:[%s1195 + $0x78] sm:$0xff]
        %v1212 = vld [vmem:[%s1195 + $0x80] sm:$0xff]
        %v1213 = vld [vmem:[%s1195 + $0x88] sm:$0xff]
        %v1214 = vld [vmem:[%s1195 + $0x90] sm:$0xff]
        %v1215 = vld [vmem:[%s1195 + $0x98] sm:$0xff]
        %v1216 = vld [vmem:[%s1195 + $0xa0] sm:$0xff]
        %v1217 = vld [vmem:[%s1195 + $0xa8] sm:$0xff]
        %v1218 = vld [vmem:[%s1195 + $0xb0] sm:$0xff]
        %v1219 = vld [vmem:[%s1195 + $0xb8] sm:$0xff]
        %v1220 = vld [vmem:[%s1195 + $0xc0] sm:$0xff]
        %v1221 = vld [vmem:[%s1195 + $0xc8] sm:$0xff]
        %v1222 = vld [vmem:[%s1195 + $0xd0] sm:$0xff]
        %v1223 = vld [vmem:[%s1195 + $0xd8] sm:$0xff]
        %v1224 = vld [vmem:[%s1195 + $0xe0] sm:$0xff]
        %v1225 = vld [vmem:[%s1195 + $0xe8] sm:$0xff]
        %v1226 = vld [vmem:[%s1195 + $0xf0] sm:$0xff]
        %v1227 = vld [vmem:[%s1195 + $0xf8] sm:$0xff]
        %v1228 = vld [vmem:[%s1195 + $0x100] sm:$0xff]
        %v1229 = vld [vmem:[%s1195 + $0x108] sm:$0xff]
        %v1230 = vld [vmem:[%s1195 + $0x110] sm:$0xff]
        %v1231 = vld [vmem:[%s1195 + $0x118] sm:$0xff]
        %v1232 = vld [vmem:[%s1195 + $0x120] sm:$0xff]
        %v1233 = vld [vmem:[%s1195 + $0x128] sm:$0xff]
        %v1234 = vld [vmem:[%s1195 + $0x130] sm:$0xff]
        %v1235 = vld [vmem:[%s1195 + $0x138] sm:$0xff]
        %v1236 = vld [vmem:[%s1195 + $0x140] sm:$0xff]
        %v1237 = vld [vmem:[%s1195 + $0x148] sm:$0xff]
        %v1238 = vld [vmem:[%s1195 + $0x150] sm:$0xff]
        %v1239 = vld [vmem:[%s1195 + $0x158] sm:$0xff]
        %v1240 = vld [vmem:[%s1195 + $0x160] sm:$0xff]
        %v1241 = vld [vmem:[%s1195 + $0x168] sm:$0xff]
        %v1242 = vld [vmem:[%s1195 + $0x170] sm:$0xff]
        %v1243 = vld [vmem:[%s1195 + $0x178] sm:$0xff]
        %v1244 = vld [vmem:[%s1195 + $0x180] sm:$0xff]
        %v1245 = vld [vmem:[%s1195 + $0x188] sm:$0xff]
        %v1246 = vld [vmem:[%s1195 + $0x190] sm:$0xff]
        %v1247 = vld [vmem:[%s1195 + $0x198] sm:$0xff]
        %v1248 = vld [vmem:[%s1195 + $0x1a0] sm:$0xff]
        %v1249 = vld [vmem:[%s1195 + $0x1a8] sm:$0xff]
        %v1250 = vld [vmem:[%s1195 + $0x1b0] sm:$0xff]
        %v1251 = vld [vmem:[%s1195 + $0x1b8] sm:$0xff]
        %v1252 = vld [vmem:[%s1195 + $0x1c0] sm:$0xff]
        %v1253 = vld [vmem:[%s1195 + $0x1c8] sm:$0xff]
        %v1254 = vld [vmem:[%s1195 + $0x1d0] sm:$0xff]
        %v1255 = vld [vmem:[%s1195 + $0x1d8] sm:$0xff]
        %v1256 = vld [vmem:[%s1195 + $0x1e0] sm:$0xff]
        %v1257 = vld [vmem:[%s1195 + $0x1e8] sm:$0xff]
        %v1258 = vld [vmem:[%s1195 + $0x1f0] sm:$0xff]
        %v1259 = vld [vmem:[%s1195 + $0x1f8] sm:$0xff]
        %v1324 = vunpack.c.l.b16 %v1196
        %v1325 = vunpack.c.h.b16 %v1196
        %v1326 = vunpack.c.l.b16 %v1197
        %v1327 = vunpack.c.h.b16 %v1197
        %v1328 = vunpack.c.l.b16 %v1198
        %v1329 = vunpack.c.h.b16 %v1198
        %v1330 = vunpack.c.l.b16 %v1199
        %v1331 = vunpack.c.h.b16 %v1199
        %v1332 = vunpack.c.l.b16 %v1200
        %v1333 = vunpack.c.h.b16 %v1200
        %v1334 = vunpack.c.l.b16 %v1201
        %v1335 = vunpack.c.h.b16 %v1201
        %v1336 = vunpack.c.l.b16 %v1202
        %v1337 = vunpack.c.h.b16 %v1202
        %v1338 = vunpack.c.l.b16 %v1203
        %v1339 = vunpack.c.h.b16 %v1203
        %v1340 = vunpack.c.l.b16 %v1204
        %v1341 = vunpack.c.h.b16 %v1204
        %v1342 = vunpack.c.l.b16 %v1205
        %v1343 = vunpack.c.h.b16 %v1205
        %v1344 = vunpack.c.l.b16 %v1206
        %v1345 = vunpack.c.h.b16 %v1206
        %v1346 = vunpack.c.l.b16 %v1207
        %v1347 = vunpack.c.h.b16 %v1207
        %v1348 = vunpack.c.l.b16 %v1208
        %v1349 = vunpack.c.h.b16 %v1208
        %v1350 = vunpack.c.l.b16 %v1209
        %v1351 = vunpack.c.h.b16 %v1209
        %v1352 = vunpack.c.l.b16 %v1210
        %v1353 = vunpack.c.h.b16 %v1210
        %v1354 = vunpack.c.l.b16 %v1211
        %v1355 = vunpack.c.h.b16 %v1211
        %v1356 = vunpack.c.l.b16 %v1212
        %v1357 = vunpack.c.h.b16 %v1212
        %v1358 = vunpack.c.l.b16 %v1213
        %v1359 = vunpack.c.h.b16 %v1213
        %v1360 = vunpack.c.l.b16 %v1214
        %v1361 = vunpack.c.h.b16 %v1214
        %v1362 = vunpack.c.l.b16 %v1215
        %v1363 = vunpack.c.h.b16 %v1215
        %v1364 = vunpack.c.l.b16 %v1216
        %v1365 = vunpack.c.h.b16 %v1216
        %v1366 = vunpack.c.l.b16 %v1217
        %v1367 = vunpack.c.h.b16 %v1217
        %v1368 = vunpack.c.l.b16 %v1218
        %v1369 = vunpack.c.h.b16 %v1218
        %v1370 = vunpack.c.l.b16 %v1219
        %v1371 = vunpack.c.h.b16 %v1219
        %v1372 = vunpack.c.l.b16 %v1220
        %v1373 = vunpack.c.h.b16 %v1220
        %v1374 = vunpack.c.l.b16 %v1221
        %v1375 = vunpack.c.h.b16 %v1221
        %v1376 = vunpack.c.l.b16 %v1222
        %v1377 = vunpack.c.h.b16 %v1222
        %v1378 = vunpack.c.l.b16 %v1223
        %v1379 = vunpack.c.h.b16 %v1223
        %v1380 = vunpack.c.l.b16 %v1224
        %v1381 = vunpack.c.h.b16 %v1224
        %v1382 = vunpack.c.l.b16 %v1225
        %v1383 = vunpack.c.h.b16 %v1225
        %v1384 = vunpack.c.l.b16 %v1226
        %v1385 = vunpack.c.h.b16 %v1226
        %v1386 = vunpack.c.l.b16 %v1227
        %v1387 = vunpack.c.h.b16 %v1227
        %v1388 = vunpack.c.l.b16 %v1228
        %v1389 = vunpack.c.h.b16 %v1228
        %v1390 = vunpack.c.l.b16 %v1229
        %v1391 = vunpack.c.h.b16 %v1229
        %v1392 = vunpack.c.l.b16 %v1230
        %v1393 = vunpack.c.h.b16 %v1230
        %v1394 = vunpack.c.l.b16 %v1231
        %v1395 = vunpack.c.h.b16 %v1231
        %v1396 = vunpack.c.l.b16 %v1232
        %v1397 = vunpack.c.h.b16 %v1232
        %v1398 = vunpack.c.l.b16 %v1233
        %v1399 = vunpack.c.h.b16 %v1233
        %v1400 = vunpack.c.l.b16 %v1234
        %v1401 = vunpack.c.h.b16 %v1234
        %v1402 = vunpack.c.l.b16 %v1235
        %v1403 = vunpack.c.h.b16 %v1235
        %v1404 = vunpack.c.l.b16 %v1236
        %v1405 = vunpack.c.h.b16 %v1236
        %v1406 = vunpack.c.l.b16 %v1237
        %v1407 = vunpack.c.h.b16 %v1237
        %v1408 = vunpack.c.l.b16 %v1238
        %v1409 = vunpack.c.h.b16 %v1238
        %v1410 = vunpack.c.l.b16 %v1239
        %v1411 = vunpack.c.h.b16 %v1239
        %v1412 = vunpack.c.l.b16 %v1240
        %v1413 = vunpack.c.h.b16 %v1240
        %v1414 = vunpack.c.l.b16 %v1241
        %v1415 = vunpack.c.h.b16 %v1241
        %v1416 = vunpack.c.l.b16 %v1242
        %v1417 = vunpack.c.h.b16 %v1242
        %v1418 = vunpack.c.l.b16 %v1243
        %v1419 = vunpack.c.h.b16 %v1243
        %v1420 = vunpack.c.l.b16 %v1244
        %v1421 = vunpack.c.h.b16 %v1244
        %v1422 = vunpack.c.l.b16 %v1245
        %v1423 = vunpack.c.h.b16 %v1245
        %v1424 = vunpack.c.l.b16 %v1246
        %v1425 = vunpack.c.h.b16 %v1246
        %v1426 = vunpack.c.l.b16 %v1247
        %v1427 = vunpack.c.h.b16 %v1247
        %v1428 = vunpack.c.l.b16 %v1248
        %v1429 = vunpack.c.h.b16 %v1248
        %v1430 = vunpack.c.l.b16 %v1249
        %v1431 = vunpack.c.h.b16 %v1249
        %v1432 = vunpack.c.l.b16 %v1250
        %v1433 = vunpack.c.h.b16 %v1250
        %v1434 = vunpack.c.l.b16 %v1251
        %v1435 = vunpack.c.h.b16 %v1251
        %v1436 = vunpack.c.l.b16 %v1252
        %v1437 = vunpack.c.h.b16 %v1252
        %v1438 = vunpack.c.l.b16 %v1253
        %v1439 = vunpack.c.h.b16 %v1253
        %v1440 = vunpack.c.l.b16 %v1254
        %v1441 = vunpack.c.h.b16 %v1254
        %v1442 = vunpack.c.l.b16 %v1255
        %v1443 = vunpack.c.h.b16 %v1255
        %v1444 = vunpack.c.l.b16 %v1256
        %v1445 = vunpack.c.h.b16 %v1256
        %v1446 = vunpack.c.l.b16 %v1257
        %v1447 = vunpack.c.h.b16 %v1257
        %v1448 = vunpack.c.l.b16 %v1258
        %v1449 = vunpack.c.h.b16 %v1258
        %v1450 = vunpack.c.l.b16 %v1259
        %v1451 = vunpack.c.h.b16 %v1259
        %v1452 = vpack.c.b16 %v1328, %v1324
        %v1453 = vpack.c.b16 %v1329, %v1325
        %v1454 = vpack.c.b16 %v1330, %v1326
        %v1455 = vpack.c.b16 %v1331, %v1327
        %v1456 = vpack.c.b16 %v1336, %v1332
        %v1457 = vpack.c.b16 %v1337, %v1333
        %v1458 = vpack.c.b16 %v1338, %v1334
        %v1459 = vpack.c.b16 %v1339, %v1335
        %v1460 = vpack.c.b16 %v1344, %v1340
        %v1461 = vpack.c.b16 %v1345, %v1341
        %v1462 = vpack.c.b16 %v1346, %v1342
        %v1463 = vpack.c.b16 %v1347, %v1343
        %v1464 = vpack.c.b16 %v1352, %v1348
        %v1465 = vpack.c.b16 %v1353, %v1349
        %v1466 = vpack.c.b16 %v1354, %v1350
        %v1467 = vpack.c.b16 %v1355, %v1351
        %v1468 = vpack.c.b16 %v1360, %v1356
        %v1469 = vpack.c.b16 %v1361, %v1357
        %v1470 = vpack.c.b16 %v1362, %v1358
        %v1471 = vpack.c.b16 %v1363, %v1359
        %v1472 = vpack.c.b16 %v1368, %v1364
        %v1473 = vpack.c.b16 %v1369, %v1365
        %v1474 = vpack.c.b16 %v1370, %v1366
        %v1475 = vpack.c.b16 %v1371, %v1367
        %v1476 = vpack.c.b16 %v1376, %v1372
        %v1477 = vpack.c.b16 %v1377, %v1373
        %v1478 = vpack.c.b16 %v1378, %v1374
        %v1479 = vpack.c.b16 %v1379, %v1375
        %v1480 = vpack.c.b16 %v1384, %v1380
        %v1481 = vpack.c.b16 %v1385, %v1381
        %v1482 = vpack.c.b16 %v1386, %v1382
        %v1483 = vpack.c.b16 %v1387, %v1383
        %v1484 = vpack.c.b16 %v1392, %v1388
        %v1485 = vpack.c.b16 %v1393, %v1389
        %v1486 = vpack.c.b16 %v1394, %v1390
        %v1487 = vpack.c.b16 %v1395, %v1391
        %v1488 = vpack.c.b16 %v1400, %v1396
        %v1489 = vpack.c.b16 %v1401, %v1397
        %v1490 = vpack.c.b16 %v1402, %v1398
        %v1491 = vpack.c.b16 %v1403, %v1399
        %v1492 = vpack.c.b16 %v1408, %v1404
        %v1493 = vpack.c.b16 %v1409, %v1405
        %v1494 = vpack.c.b16 %v1410, %v1406
        %v1495 = vpack.c.b16 %v1411, %v1407
        %v1496 = vpack.c.b16 %v1416, %v1412
        %v1497 = vpack.c.b16 %v1417, %v1413
        %v1498 = vpack.c.b16 %v1418, %v1414
        %v1499 = vpack.c.b16 %v1419, %v1415
        %v1500 = vpack.c.b16 %v1424, %v1420
        %v1501 = vpack.c.b16 %v1425, %v1421
        %v1502 = vpack.c.b16 %v1426, %v1422
        %v1503 = vpack.c.b16 %v1427, %v1423
        %v1504 = vpack.c.b16 %v1432, %v1428
        %v1505 = vpack.c.b16 %v1433, %v1429
        %v1506 = vpack.c.b16 %v1434, %v1430
        %v1507 = vpack.c.b16 %v1435, %v1431
        %v1508 = vpack.c.b16 %v1440, %v1436
        %v1509 = vpack.c.b16 %v1441, %v1437
        %v1510 = vpack.c.b16 %v1442, %v1438
        %v1511 = vpack.c.b16 %v1443, %v1439
        %v1512 = vpack.c.b16 %v1448, %v1444
        %v1513 = vpack.c.b16 %v1449, %v1445
        %v1514 = vpack.c.b16 %v1450, %v1446
        %v1515 = vpack.c.b16 %v1451, %v1447
        %1580 = vmatprep.subr.bf16.mxu0 %v1481
        %1581 = vmatpush1.bf16.msra.mxu0 %v1480
        %1582 = vmatprep.subr.bf16.mxu0 %v1477
        %1583 = vmatpush1.bf16.msra.mxu0 %v1476
        %1584 = vmatprep.subr.bf16.mxu0 %v1473
        %1585 = vmatpush1.bf16.msra.mxu0 %v1472
        %1586 = vmatprep.subr.bf16.mxu0 %v1469
        %1587 = vmatpush1.bf16.msra.mxu0 %v1468
        %1588 = vmatprep.subr.bf16.mxu0 %v1465
        %1589 = vmatpush1.bf16.msra.mxu0 %v1464
        %1590 = vmatprep.subr.bf16.mxu0 %v1461
        %1591 = vmatpush1.bf16.msra.mxu0 %v1460
        %1592 = vmatprep.subr.bf16.mxu0 %v1457
        %1593 = vmatpush1.bf16.msra.mxu0 %v1456
        %1594 = vmatprep.subr.bf16.mxu0 %v1453
        %1595 = vmatpush1.bf16.msra.mxu0 %v1452
        %1596 = vmatprep.subr.bf16.mxu0 %v1513
        %1597 = vmatpush2.bf16.msra.mxu0 %v1512
        %1598 = vmatprep.subr.bf16.mxu0 %v1509
        %1599 = vmatpush2.bf16.msra.mxu0 %v1508
        %1600 = vmatprep.subr.bf16.mxu0 %v1505
        %1601 = vmatpush2.bf16.msra.mxu0 %v1504
        %1602 = vmatprep.subr.bf16.mxu0 %v1501
        %1603 = vmatpush2.bf16.msra.mxu0 %v1500
        %1604 = vmatprep.subr.bf16.mxu0 %v1497
        %1605 = vmatpush2.bf16.msra.mxu0 %v1496
        %1606 = vmatprep.subr.bf16.mxu0 %v1493
        %1607 = vmatpush2.bf16.msra.mxu0 %v1492
        %1608 = vmatprep.subr.bf16.mxu0 %v1489
        %1609 = vmatpush2.bf16.msra.mxu0 %v1488
        %1610 = vmatprep.subr.bf16.mxu0 %v1485
        %1611 = vmatpush2.bf16.msra.mxu0 %v1484
        %1612 = vmatprep.mubr.bf16.mxu0 %v1186
        %1613 = vmatmul.mubr.bf16.gmra.mxu0 %v1185
        %v1614 = vpop.f32.mrf.mxu0
        %v1615 = vadd.f32 0.0, %v1614
        %v1616 = vpop.f32.mrf.mxu0
        %v1617 = vadd.f32 0.0, %v1616
        %v1618 = vpop.f32.mrf.mxu0
        %v1619 = vadd.f32 0.0, %v1618
        %v1620 = vpop.f32.mrf.mxu0
        %v1621 = vadd.f32 0.0, %v1620
        %1622 = vmatprep.mubr.bf16.mxu0 %v1188
        %1623 = vmatmul.mubr.bf16.gmra.mxu0 %v1187
        %v1624 = vpop.f32.mrf.mxu0
        %v1625 = vadd.f32 0.0, %v1624
        %v1626 = vpop.f32.mrf.mxu0
        %v1627 = vadd.f32 0.0, %v1626
        %v1628 = vpop.f32.mrf.mxu0
        %v1629 = vadd.f32 0.0, %v1628
        %v1630 = vpop.f32.mrf.mxu0
        %v1631 = vadd.f32 0.0, %v1630
        %1632 = vmatprep.mubr.bf16.mxu0 %v1190
        %1633 = vmatmul.mubr.bf16.gmra.mxu0 %v1189
        %v1634 = vpop.f32.mrf.mxu0
        %v1635 = vadd.f32 0.0, %v1634
        %v1636 = vpop.f32.mrf.mxu0
        %v1637 = vadd.f32 0.0, %v1636
        %v1638 = vpop.f32.mrf.mxu0
        %v1639 = vadd.f32 0.0, %v1638
        %v1640 = vpop.f32.mrf.mxu0
        %v1641 = vadd.f32 0.0, %v1640
        %1642 = vmatprep.mubr.bf16.mxu0 %v1192
        %1643 = vmatmul.mubr.bf16.gmra.mxu0 %v1191
        %v1644 = vpop.f32.mrf.mxu0
        %v1645 = vadd.f32 0.0, %v1644
        %v1646 = vpop.f32.mrf.mxu0
        %v1647 = vadd.f32 0.0, %v1646
        %v1648 = vpop.f32.mrf.mxu0
        %v1649 = vadd.f32 0.0, %v1648
        %v1650 = vpop.f32.mrf.mxu0
        %v1651 = vadd.f32 0.0, %v1650
        %1652 = vmatprep.mubr.bf16.mxu0 %v1194
        %1653 = vmatmul.mubr.bf16.gmra.mxu0 %v1193
        %v1654 = vpop.f32.mrf.mxu0
        %v1655 = vadd.f32 0.0, %v1654
        %v1656 = vpop.f32.mrf.mxu0
        %v1657 = vadd.f32 0.0, %v1656
        %v1658 = vpop.f32.mrf.mxu0
        %v1659 = vpop.f32.mrf.mxu0
        %1660 = vdwg.mxu0
        %1661 = vmatprep.subr.bf16.mxu0 %v1483
        %1662 = vmatpush1.bf16.msra.mxu0 %v1482
        %1663 = vmatprep.subr.bf16.mxu0 %v1479
        %1664 = vmatpush1.bf16.msra.mxu0 %v1478
        %1665 = vmatprep.subr.bf16.mxu0 %v1475
        %1666 = vmatpush1.bf16.msra.mxu0 %v1474
        %1667 = vmatprep.subr.bf16.mxu0 %v1471
        %1668 = vmatpush1.bf16.msra.mxu0 %v1470
        %1669 = vmatprep.subr.bf16.mxu0 %v1467
        %1670 = vmatpush1.bf16.msra.mxu0 %v1466
        %1671 = vmatprep.subr.bf16.mxu0 %v1463
        %1672 = vmatpush1.bf16.msra.mxu0 %v1462
        %1673 = vmatprep.subr.bf16.mxu0 %v1459
        %1674 = vmatpush1.bf16.msra.mxu0 %v1458
        %1675 = vmatprep.subr.bf16.mxu0 %v1455
        %1676 = vmatpush1.bf16.msra.mxu0 %v1454
        %1677 = vmatprep.subr.bf16.mxu0 %v1515
        %1678 = vmatpush2.bf16.msra.mxu0 %v1514
        %1679 = vmatprep.subr.bf16.mxu0 %v1511
        %1680 = vmatpush2.bf16.msra.mxu0 %v1510
        %1681 = vmatprep.subr.bf16.mxu0 %v1507
        %1682 = vmatpush2.bf16.msra.mxu0 %v1506
        %1683 = vmatprep.subr.bf16.mxu0 %v1503
        %1684 = vmatpush2.bf16.msra.mxu0 %v1502
        %1685 = vmatprep.subr.bf16.mxu0 %v1499
        %1686 = vmatpush2.bf16.msra.mxu0 %v1498
        %1687 = vmatprep.subr.bf16.mxu0 %v1495
        %1688 = vmatpush2.bf16.msra.mxu0 %v1494
        %1689 = vmatprep.subr.bf16.mxu0 %v1491
        %1690 = vmatpush2.bf16.msra.mxu0 %v1490
        %1691 = vmatprep.subr.bf16.mxu0 %v1487
        %1692 = vmatpush2.bf16.msra.mxu0 %v1486
        %1693 = vmatprep.mubr.bf16.mxu0 %v1186
        %1694 = vmatmul.mubr.bf16.gmra.mxu0 %v1185
        %v1695 = vpop.f32.mrf.mxu0
        %v1696 = vadd.f32 0.0, %v1695
        %v1697 = vpop.f32.mrf.mxu0
        %v1698 = vadd.f32 0.0, %v1697
        %v1699 = vpop.f32.mrf.mxu0
        %v1700 = vadd.f32 0.0, %v1699
        %v1701 = vpop.f32.mrf.mxu0
        %v1702 = vadd.f32 0.0, %v1701
        %1703 = vmatprep.mubr.bf16.mxu0 %v1188
        %1704 = vmatmul.mubr.bf16.gmra.mxu0 %v1187
        %v1705 = vpop.f32.mrf.mxu0
        %v1706 = vadd.f32 0.0, %v1705
        %v1707 = vpop.f32.mrf.mxu0
        %v1708 = vadd.f32 0.0, %v1707
        %v1709 = vpop.f32.mrf.mxu0
        %v1710 = vadd.f32 0.0, %v1709
        %v1711 = vpop.f32.mrf.mxu0
        %v1712 = vadd.f32 0.0, %v1711
        %1713 = vmatprep.mubr.bf16.mxu0 %v1190
        %1714 = vmatmul.mubr.bf16.gmra.mxu0 %v1189
        %v1715 = vpop.f32.mrf.mxu0
        %v1716 = vadd.f32 0.0, %v1715
        %v1717 = vpop.f32.mrf.mxu0
        %v1718 = vadd.f32 0.0, %v1717
        %v1719 = vpop.f32.mrf.mxu0
        %v1720 = vadd.f32 0.0, %v1719
        %v1721 = vpop.f32.mrf.mxu0
        %v1722 = vadd.f32 0.0, %v1721
        %1723 = vmatprep.mubr.bf16.mxu0 %v1192
        %1724 = vmatmul.mubr.bf16.gmra.mxu0 %v1191
        %v1725 = vpop.f32.mrf.mxu0
        %v1726 = vadd.f32 0.0, %v1725
        %v1727 = vpop.f32.mrf.mxu0
        %v1728 = vadd.f32 0.0, %v1727
        %v1729 = vpop.f32.mrf.mxu0
        %v1730 = vadd.f32 0.0, %v1729
        %v1731 = vpop.f32.mrf.mxu0
        %v1732 = vadd.f32 0.0, %v1731
        %1733 = vmatprep.mubr.bf16.mxu0 %v1194
        %1734 = vmatmul.mubr.bf16.gmra.mxu0 %v1193
        %v1735 = vpop.f32.mrf.mxu0
        %v1736 = vadd.f32 0.0, %v1735
        %v1737 = vpop.f32.mrf.mxu0
        %v1738 = vadd.f32 0.0, %v1737
        %v1739 = vpop.f32.mrf.mxu0
        %v1740 = vpop.f32.mrf.mxu0
        %1741 = vdwg.mxu0
        %v1806 = vunpack.c.l.b16 %v1121
        %v1807 = vunpack.c.h.b16 %v1121
        %v1808 = vunpack.c.l.b16 %v1122
        %v1809 = vunpack.c.h.b16 %v1122
        %v1810 = vunpack.c.l.b16 %v1123
        %v1811 = vunpack.c.h.b16 %v1123
        %v1812 = vunpack.c.l.b16 %v1124
        %v1813 = vunpack.c.h.b16 %v1124
        %v1814 = vunpack.c.l.b16 %v1125
        %v1815 = vunpack.c.h.b16 %v1125
        %v1816 = vunpack.c.l.b16 %v1126
        %v1817 = vunpack.c.h.b16 %v1126
        %v1818 = vunpack.c.l.b16 %v1127
        %v1819 = vunpack.c.h.b16 %v1127
        %v1820 = vunpack.c.l.b16 %v1128
        %v1821 = vunpack.c.h.b16 %v1128
        %v1822 = vunpack.c.l.b16 %v1129
        %v1823 = vunpack.c.h.b16 %v1129
        %v1824 = vunpack.c.l.b16 %v1130
        %v1825 = vunpack.c.h.b16 %v1130
        %v1826 = vunpack.c.l.b16 %v1131
        %v1827 = vunpack.c.h.b16 %v1131
        %v1828 = vunpack.c.l.b16 %v1132
        %v1829 = vunpack.c.h.b16 %v1132
        %v1830 = vunpack.c.l.b16 %v1133
        %v1831 = vunpack.c.h.b16 %v1133
        %v1832 = vunpack.c.l.b16 %v1134
        %v1833 = vunpack.c.h.b16 %v1134
        %v1834 = vunpack.c.l.b16 %v1135
        %v1835 = vunpack.c.h.b16 %v1135
        %v1836 = vunpack.c.l.b16 %v1136
        %v1837 = vunpack.c.h.b16 %v1136
        %v1838 = vunpack.c.l.b16 %v1137
        %v1839 = vunpack.c.h.b16 %v1137
        %v1840 = vunpack.c.l.b16 %v1138
        %v1841 = vunpack.c.h.b16 %v1138
        %v1842 = vunpack.c.l.b16 %v1139
        %v1843 = vunpack.c.h.b16 %v1139
        %v1844 = vunpack.c.l.b16 %v1140
        %v1845 = vunpack.c.h.b16 %v1140
        %v1846 = vunpack.c.l.b16 %v1141
        %v1847 = vunpack.c.h.b16 %v1141
        %v1848 = vunpack.c.l.b16 %v1142
        %v1849 = vunpack.c.h.b16 %v1142
        %v1850 = vunpack.c.l.b16 %v1143
        %v1851 = vunpack.c.h.b16 %v1143
        %v1852 = vunpack.c.l.b16 %v1144
        %v1853 = vunpack.c.h.b16 %v1144
        %v1854 = vunpack.c.l.b16 %v1145
        %v1855 = vunpack.c.h.b16 %v1145
        %v1856 = vunpack.c.l.b16 %v1146
        %v1857 = vunpack.c.h.b16 %v1146
        %v1858 = vunpack.c.l.b16 %v1147
        %v1859 = vunpack.c.h.b16 %v1147
        %v1860 = vunpack.c.l.b16 %v1148
        %v1861 = vunpack.c.h.b16 %v1148
        %v1862 = vunpack.c.l.b16 %v1149
        %v1863 = vunpack.c.h.b16 %v1149
        %v1864 = vunpack.c.l.b16 %v1150
        %v1865 = vunpack.c.h.b16 %v1150
        %v1866 = vunpack.c.l.b16 %v1151
        %v1867 = vunpack.c.h.b16 %v1151
        %v1868 = vunpack.c.l.b16 %v1152
        %v1869 = vunpack.c.h.b16 %v1152
        %v1870 = vunpack.c.l.b16 %v1153
        %v1871 = vunpack.c.h.b16 %v1153
        %v1872 = vunpack.c.l.b16 %v1154
        %v1873 = vunpack.c.h.b16 %v1154
        %v1874 = vunpack.c.l.b16 %v1155
        %v1875 = vunpack.c.h.b16 %v1155
        %v1876 = vunpack.c.l.b16 %v1156
        %v1877 = vunpack.c.h.b16 %v1156
        %v1878 = vunpack.c.l.b16 %v1157
        %v1879 = vunpack.c.h.b16 %v1157
        %v1880 = vunpack.c.l.b16 %v1158
        %v1881 = vunpack.c.h.b16 %v1158
        %v1882 = vunpack.c.l.b16 %v1159
        %v1883 = vunpack.c.h.b16 %v1159
        %v1884 = vunpack.c.l.b16 %v1160
        %v1885 = vunpack.c.h.b16 %v1160
        %v1886 = vunpack.c.l.b16 %v1161
        %v1887 = vunpack.c.h.b16 %v1161
        %v1888 = vunpack.c.l.b16 %v1162
        %v1889 = vunpack.c.h.b16 %v1162
        %v1890 = vunpack.c.l.b16 %v1163
        %v1891 = vunpack.c.h.b16 %v1163
        %v1892 = vunpack.c.l.b16 %v1164
        %v1893 = vunpack.c.h.b16 %v1164
        %v1894 = vunpack.c.l.b16 %v1165
        %v1895 = vunpack.c.h.b16 %v1165
        %v1896 = vunpack.c.l.b16 %v1166
        %v1897 = vunpack.c.h.b16 %v1166
        %v1898 = vunpack.c.l.b16 %v1167
        %v1899 = vunpack.c.h.b16 %v1167
        %v1900 = vunpack.c.l.b16 %v1168
        %v1901 = vunpack.c.h.b16 %v1168
        %v1902 = vunpack.c.l.b16 %v1169
        %v1903 = vunpack.c.h.b16 %v1169
        %v1904 = vunpack.c.l.b16 %v1170
        %v1905 = vunpack.c.h.b16 %v1170
        %v1906 = vunpack.c.l.b16 %v1171
        %v1907 = vunpack.c.h.b16 %v1171
        %v1908 = vunpack.c.l.b16 %v1172
        %v1909 = vunpack.c.h.b16 %v1172
        %v1910 = vunpack.c.l.b16 %v1173
        %v1911 = vunpack.c.h.b16 %v1173
        %v1912 = vunpack.c.l.b16 %v1174
        %v1913 = vunpack.c.h.b16 %v1174
        %v1914 = vunpack.c.l.b16 %v1175
        %v1915 = vunpack.c.h.b16 %v1175
        %v1916 = vunpack.c.l.b16 %v1176
        %v1917 = vunpack.c.h.b16 %v1176
        %v1918 = vunpack.c.l.b16 %v1177
        %v1919 = vunpack.c.h.b16 %v1177
        %v1920 = vunpack.c.l.b16 %v1178
        %v1921 = vunpack.c.h.b16 %v1178
        %v1922 = vunpack.c.l.b16 %v1179
        %v1923 = vunpack.c.h.b16 %v1179
        %v1924 = vunpack.c.l.b16 %v1180
        %v1925 = vunpack.c.h.b16 %v1180
        %v1926 = vunpack.c.l.b16 %v1181
        %v1927 = vunpack.c.h.b16 %v1181
        %v1928 = vunpack.c.l.b16 %v1182
        %v1929 = vunpack.c.h.b16 %v1182
        %v1930 = vunpack.c.l.b16 %v1183
        %v1931 = vunpack.c.h.b16 %v1183
        %v1932 = vunpack.c.l.b16 %v1184
        %v1933 = vunpack.c.h.b16 %v1184
        %v1934 = vpack.c.b16 %v1810, %v1806
        %v1935 = vpack.c.b16 %v1811, %v1807
        %v1936 = vpack.c.b16 %v1812, %v1808
        %v1937 = vpack.c.b16 %v1813, %v1809
        %v1938 = vpack.c.b16 %v1818, %v1814
        %v1939 = vpack.c.b16 %v1819, %v1815
        %v1940 = vpack.c.b16 %v1820, %v1816
        %v1941 = vpack.c.b16 %v1821, %v1817
        %v1942 = vpack.c.b16 %v1826, %v1822
        %v1943 = vpack.c.b16 %v1827, %v1823
        %v1944 = vpack.c.b16 %v1828, %v1824
        %v1945 = vpack.c.b16 %v1829, %v1825
        %v1946 = vpack.c.b16 %v1834, %v1830
        %v1947 = vpack.c.b16 %v1835, %v1831
        %v1948 = vpack.c.b16 %v1836, %v1832
        %v1949 = vpack.c.b16 %v1837, %v1833
        %v1950 = vpack.c.b16 %v1842, %v1838
        %v1951 = vpack.c.b16 %v1843, %v1839
        %v1952 = vpack.c.b16 %v1844, %v1840
        %v1953 = vpack.c.b16 %v1845, %v1841
        %v1954 = vpack.c.b16 %v1850, %v1846
        %v1955 = vpack.c.b16 %v1851, %v1847
        %v1956 = vpack.c.b16 %v1852, %v1848
        %v1957 = vpack.c.b16 %v1853, %v1849
        %v1958 = vpack.c.b16 %v1858, %v1854
        %v1959 = vpack.c.b16 %v1859, %v1855
        %v1960 = vpack.c.b16 %v1860, %v1856
        %v1961 = vpack.c.b16 %v1861, %v1857
        %v1962 = vpack.c.b16 %v1866, %v1862
        %v1963 = vpack.c.b16 %v1867, %v1863
        %v1964 = vpack.c.b16 %v1868, %v1864
        %v1965 = vpack.c.b16 %v1869, %v1865
        %v1966 = vpack.c.b16 %v1874, %v1870
        %v1967 = vpack.c.b16 %v1875, %v1871
        %v1968 = vpack.c.b16 %v1876, %v1872
        %v1969 = vpack.c.b16 %v1877, %v1873
        %v1970 = vpack.c.b16 %v1882, %v1878
        %v1971 = vpack.c.b16 %v1883, %v1879
        %v1972 = vpack.c.b16 %v1884, %v1880
        %v1973 = vpack.c.b16 %v1885, %v1881
        %v1974 = vpack.c.b16 %v1890, %v1886
        %v1975 = vpack.c.b16 %v1891, %v1887
        %v1976 = vpack.c.b16 %v1892, %v1888
        %v1977 = vpack.c.b16 %v1893, %v1889
        %v1978 = vpack.c.b16 %v1898, %v1894
        %v1979 = vpack.c.b16 %v1899, %v1895
        %v1980 = vpack.c.b16 %v1900, %v1896
        %v1981 = vpack.c.b16 %v1901, %v1897
        %v1982 = vpack.c.b16 %v1906, %v1902
        %v1983 = vpack.c.b16 %v1907, %v1903
        %v1984 = vpack.c.b16 %v1908, %v1904
        %v1985 = vpack.c.b16 %v1909, %v1905
        %v1986 = vpack.c.b16 %v1914, %v1910
        %v1987 = vpack.c.b16 %v1915, %v1911
        %v1988 = vpack.c.b16 %v1916, %v1912
        %v1989 = vpack.c.b16 %v1917, %v1913
        %v1990 = vpack.c.b16 %v1922, %v1918
        %v1991 = vpack.c.b16 %v1923, %v1919
        %v1992 = vpack.c.b16 %v1924, %v1920
        %v1993 = vpack.c.b16 %v1925, %v1921
        %v1994 = vpack.c.b16 %v1930, %v1926
        %v1995 = vpack.c.b16 %v1931, %v1927
        %v1996 = vpack.c.b16 %v1932, %v1928
        %v1997 = vpack.c.b16 %v1933, %v1929
        %2062 = vmatprep.subr.bf16.mxu0 %v1963
        %2063 = vmatpush1.bf16.msra.mxu0 %v1962
        %2064 = vmatprep.subr.bf16.mxu0 %v1959
        %2065 = vmatpush1.bf16.msra.mxu0 %v1958
        %2066 = vmatprep.subr.bf16.mxu0 %v1955
        %2067 = vmatpush1.bf16.msra.mxu0 %v1954
        %2068 = vmatprep.subr.bf16.mxu0 %v1951
        %2069 = vmatpush1.bf16.msra.mxu0 %v1950
        %2070 = vmatprep.subr.bf16.mxu0 %v1947
        %2071 = vmatpush1.bf16.msra.mxu0 %v1946
        %2072 = vmatprep.subr.bf16.mxu0 %v1943
        %2073 = vmatpush1.bf16.msra.mxu0 %v1942
        %2074 = vmatprep.subr.bf16.mxu0 %v1939
        %2075 = vmatpush1.bf16.msra.mxu0 %v1938
        %2076 = vmatprep.subr.bf16.mxu0 %v1935
        %2077 = vmatpush1.bf16.msra.mxu0 %v1934
        %2078 = vmatprep.subr.bf16.mxu0 %v1995
        %2079 = vmatpush2.bf16.msra.mxu0 %v1994
        %2080 = vmatprep.subr.bf16.mxu0 %v1991
        %2081 = vmatpush2.bf16.msra.mxu0 %v1990
        %2082 = vmatprep.subr.bf16.mxu0 %v1987
        %2083 = vmatpush2.bf16.msra.mxu0 %v1986
        %2084 = vmatprep.subr.bf16.mxu0 %v1983
        %2085 = vmatpush2.bf16.msra.mxu0 %v1982
        %2086 = vmatprep.subr.bf16.mxu0 %v1979
        %2087 = vmatpush2.bf16.msra.mxu0 %v1978
        %2088 = vmatprep.subr.bf16.mxu0 %v1975
        %2089 = vmatpush2.bf16.msra.mxu0 %v1974
        %2090 = vmatprep.subr.bf16.mxu0 %v1971
        %2091 = vmatpush2.bf16.msra.mxu0 %v1970
        %2092 = vmatprep.subr.bf16.mxu0 %v1967
        %2093 = vmatpush2.bf16.msra.mxu0 %v1966
        %2094 = vmatprep.mubr.bf16.mxu0 %v1112
        %2095 = vmatmul.mubr.bf16.gmra.mxu0 %v1111
        %v2096 = vpop.f32.mrf.mxu0
        %v2097 = vadd.f32 %v1615, %v2096
        %v2098 = vpop.f32.mrf.mxu0
        %v2099 = vadd.f32 %v1617, %v2098
        %v2100 = vpop.f32.mrf.mxu0
        %v2101 = vadd.f32 %v1619, %v2100
        %v2102 = vpop.f32.mrf.mxu0
        %v2103 = vadd.f32 %v1621, %v2102
        %2104 = vmatprep.mubr.bf16.mxu0 %v1114
        %2105 = vmatmul.mubr.bf16.gmra.mxu0 %v1113
        %v2106 = vpop.f32.mrf.mxu0
        %v2107 = vadd.f32 %v1625, %v2106
        %v2108 = vpop.f32.mrf.mxu0
        %v2109 = vadd.f32 %v1627, %v2108
        %v2110 = vpop.f32.mrf.mxu0
        %v2111 = vadd.f32 %v1629, %v2110
        %v2112 = vpop.f32.mrf.mxu0
        %v2113 = vadd.f32 %v1631, %v2112
        %2114 = vmatprep.mubr.bf16.mxu0 %v1116
        %2115 = vmatmul.mubr.bf16.gmra.mxu0 %v1115
        %v2116 = vpop.f32.mrf.mxu0
        %v2117 = vadd.f32 %v1635, %v2116
        %v2118 = vpop.f32.mrf.mxu0
        %v2119 = vadd.f32 %v1637, %v2118
        %v2120 = vpop.f32.mrf.mxu0
        %v2121 = vadd.f32 %v1639, %v2120
        %v2122 = vpop.f32.mrf.mxu0
        %v2123 = vadd.f32 %v1641, %v2122
        %2124 = vmatprep.mubr.bf16.mxu0 %v1118
        %2125 = vmatmul.mubr.bf16.gmra.mxu0 %v1117
        %v2126 = vpop.f32.mrf.mxu0
        %v2127 = vadd.f32 %v1645, %v2126
        %v2128 = vpop.f32.mrf.mxu0
        %v2129 = vadd.f32 %v1647, %v2128
        %v2130 = vpop.f32.mrf.mxu0
        %v2131 = vadd.f32 %v1649, %v2130
        %v2132 = vpop.f32.mrf.mxu0
        %v2133 = vadd.f32 %v1651, %v2132
        %2134 = vmatprep.mubr.bf16.mxu0 %v1120
        %2135 = vmatmul.mubr.bf16.gmra.mxu0 %v1119
        %v2136 = vpop.f32.mrf.mxu0
        %v2137 = vadd.f32 %v1655, %v2136
        %v2138 = vpop.f32.mrf.mxu0
        %v2139 = vadd.f32 %v1657, %v2138
        %v2140 = vpop.f32.mrf.mxu0
        %v2141 = vpop.f32.mrf.mxu0
        %2142 = vdwg.mxu0
        %2143 = vmatprep.subr.bf16.mxu0 %v1965
        %2144 = vmatpush1.bf16.msra.mxu0 %v1964
        %2145 = vmatprep.subr.bf16.mxu0 %v1961
        %2146 = vmatpush1.bf16.msra.mxu0 %v1960
        %2147 = vmatprep.subr.bf16.mxu0 %v1957
        %2148 = vmatpush1.bf16.msra.mxu0 %v1956
        %2149 = vmatprep.subr.bf16.mxu0 %v1953
        %2150 = vmatpush1.bf16.msra.mxu0 %v1952
        %2151 = vmatprep.subr.bf16.mxu0 %v1949
        %2152 = vmatpush1.bf16.msra.mxu0 %v1948
        %2153 = vmatprep.subr.bf16.mxu0 %v1945
        %2154 = vmatpush1.bf16.msra.mxu0 %v1944
        %2155 = vmatprep.subr.bf16.mxu0 %v1941
        %2156 = vmatpush1.bf16.msra.mxu0 %v1940
        %2157 = vmatprep.subr.bf16.mxu0 %v1937
        %2158 = vmatpush1.bf16.msra.mxu0 %v1936
        %2159 = vmatprep.subr.bf16.mxu0 %v1997
        %2160 = vmatpush2.bf16.msra.mxu0 %v1996
        %2161 = vmatprep.subr.bf16.mxu0 %v1993
        %2162 = vmatpush2.bf16.msra.mxu0 %v1992
        %2163 = vmatprep.subr.bf16.mxu0 %v1989
        %2164 = vmatpush2.bf16.msra.mxu0 %v1988
        %2165 = vmatprep.subr.bf16.mxu0 %v1985
        %2166 = vmatpush2.bf16.msra.mxu0 %v1984
        %2167 = vmatprep.subr.bf16.mxu0 %v1981
        %2168 = vmatpush2.bf16.msra.mxu0 %v1980
        %2169 = vmatprep.subr.bf16.mxu0 %v1977
        %2170 = vmatpush2.bf16.msra.mxu0 %v1976
        %2171 = vmatprep.subr.bf16.mxu0 %v1973
        %2172 = vmatpush2.bf16.msra.mxu0 %v1972
        %2173 = vmatprep.subr.bf16.mxu0 %v1969
        %2174 = vmatpush2.bf16.msra.mxu0 %v1968
        %2175 = vmatprep.mubr.bf16.mxu0 %v1112
        %2176 = vmatmul.mubr.bf16.gmra.mxu0 %v1111
        %v2177 = vpop.f32.mrf.mxu0
        %v2178 = vadd.f32 %v1696, %v2177
        %v2179 = vpop.f32.mrf.mxu0
        %v2180 = vadd.f32 %v1698, %v2179
        %v2181 = vpop.f32.mrf.mxu0
        %v2182 = vadd.f32 %v1700, %v2181
        %v2183 = vpop.f32.mrf.mxu0
        %v2184 = vadd.f32 %v1702, %v2183
        %2185 = vmatprep.mubr.bf16.mxu0 %v1114
        %2186 = vmatmul.mubr.bf16.gmra.mxu0 %v1113
        %v2187 = vpop.f32.mrf.mxu0
        %v2188 = vadd.f32 %v1706, %v2187
        %v2189 = vpop.f32.mrf.mxu0
        %v2190 = vadd.f32 %v1708, %v2189
        %v2191 = vpop.f32.mrf.mxu0
        %v2192 = vadd.f32 %v1710, %v2191
        %v2193 = vpop.f32.mrf.mxu0
        %v2194 = vadd.f32 %v1712, %v2193
        %2195 = vmatprep.mubr.bf16.mxu0 %v1116
        %2196 = vmatmul.mubr.bf16.gmra.mxu0 %v1115
        %v2197 = vpop.f32.mrf.mxu0
        %v2198 = vadd.f32 %v1716, %v2197
        %v2199 = vpop.f32.mrf.mxu0
        %v2200 = vadd.f32 %v1718, %v2199
        %v2201 = vpop.f32.mrf.mxu0
        %v2202 = vadd.f32 %v1720, %v2201
        %v2203 = vpop.f32.mrf.mxu0
        %v2204 = vadd.f32 %v1722, %v2203
        %2205 = vmatprep.mubr.bf16.mxu0 %v1118
        %2206 = vmatmul.mubr.bf16.gmra.mxu0 %v1117
        %v2207 = vpop.f32.mrf.mxu0
        %v2208 = vadd.f32 %v1726, %v2207
        %v2209 = vpop.f32.mrf.mxu0
        %v2210 = vadd.f32 %v1728, %v2209
        %v2211 = vpop.f32.mrf.mxu0
        %v2212 = vadd.f32 %v1730, %v2211
        %v2213 = vpop.f32.mrf.mxu0
        %v2214 = vadd.f32 %v1732, %v2213
        %2215 = vmatprep.mubr.bf16.mxu0 %v1120
        %2216 = vmatmul.mubr.bf16.gmra.mxu0 %v1119
        %v2217 = vpop.f32.mrf.mxu0
        %v2218 = vadd.f32 %v1736, %v2217
        %v2219 = vpop.f32.mrf.mxu0
        %v2220 = vadd.f32 %v1738, %v2219
        %v2221 = vpop.f32.mrf.mxu0
        %v2222 = vpop.f32.mrf.mxu0
        %2223 = vdwg.mxu0
        %v2224 = vpack.c.bf16 %v1064, %v1059
        %v2225 = vpack.c.bf16 %v1066, %v1062
        %v2226 = vpack.c.bf16 %v1072, %v1068
        %v2227 = vpack.c.bf16 %v1074, %v1070
        %v2228 = vpack.c.bf16 %v1080, %v1076
        %v2229 = vpack.c.bf16 %v1082, %v1078
        %v2230 = vpack.c.bf16 %v1088, %v1084
        %v2231 = vpack.c.bf16 %v1090, %v1086
        %v2232 = vpack.c.bf16 %v1109, %v1109
        %v2233 = vpack.c.bf16 %v1110, %v1110
        %s2234 = scalar_lea.vmem %s3, 1024
        %v2235 = vld [vmem:[%s2234] sm:$0xff]
        %v2236 = vld [vmem:[%s2234 + $0x8] sm:$0xff]
        %v2237 = vld [vmem:[%s2234 + $0x10] sm:$0xff]
        %v2238 = vld [vmem:[%s2234 + $0x18] sm:$0xff]
        %v2239 = vld [vmem:[%s2234 + $0x20] sm:$0xff]
        %v2240 = vld [vmem:[%s2234 + $0x28] sm:$0xff]
        %v2241 = vld [vmem:[%s2234 + $0x30] sm:$0xff]
        %v2242 = vld [vmem:[%s2234 + $0x38] sm:$0xff]
        %v2243 = vld [vmem:[%s2234 + $0x40] sm:$0xff]
        %v2244 = vld [vmem:[%s2234 + $0x48] sm:$0xff]
        %v2245 = vld [vmem:[%s2234 + $0x50] sm:$0xff]
        %v2246 = vld [vmem:[%s2234 + $0x58] sm:$0xff]
        %v2247 = vld [vmem:[%s2234 + $0x60] sm:$0xff]
        %v2248 = vld [vmem:[%s2234 + $0x68] sm:$0xff]
        %v2249 = vld [vmem:[%s2234 + $0x70] sm:$0xff]
        %v2250 = vld [vmem:[%s2234 + $0x78] sm:$0xff]
        %v2251 = vld [vmem:[%s2234 + $0x80] sm:$0xff]
        %v2252 = vld [vmem:[%s2234 + $0x88] sm:$0xff]
        %v2253 = vld [vmem:[%s2234 + $0x90] sm:$0xff]
        %v2254 = vld [vmem:[%s2234 + $0x98] sm:$0xff]
        %v2255 = vld [vmem:[%s2234 + $0xa0] sm:$0xff]
        %v2256 = vld [vmem:[%s2234 + $0xa8] sm:$0xff]
        %v2257 = vld [vmem:[%s2234 + $0xb0] sm:$0xff]
        %v2258 = vld [vmem:[%s2234 + $0xb8] sm:$0xff]
        %v2259 = vld [vmem:[%s2234 + $0xc0] sm:$0xff]
        %v2260 = vld [vmem:[%s2234 + $0xc8] sm:$0xff]
        %v2261 = vld [vmem:[%s2234 + $0xd0] sm:$0xff]
        %v2262 = vld [vmem:[%s2234 + $0xd8] sm:$0xff]
        %v2263 = vld [vmem:[%s2234 + $0xe0] sm:$0xff]
        %v2264 = vld [vmem:[%s2234 + $0xe8] sm:$0xff]
        %v2265 = vld [vmem:[%s2234 + $0xf0] sm:$0xff]
        %v2266 = vld [vmem:[%s2234 + $0xf8] sm:$0xff]
        %v2267 = vld [vmem:[%s2234 + $0x100] sm:$0xff]
        %v2268 = vld [vmem:[%s2234 + $0x108] sm:$0xff]
        %v2269 = vld [vmem:[%s2234 + $0x110] sm:$0xff]
        %v2270 = vld [vmem:[%s2234 + $0x118] sm:$0xff]
        %v2271 = vld [vmem:[%s2234 + $0x120] sm:$0xff]
        %v2272 = vld [vmem:[%s2234 + $0x128] sm:$0xff]
        %v2273 = vld [vmem:[%s2234 + $0x130] sm:$0xff]
        %v2274 = vld [vmem:[%s2234 + $0x138] sm:$0xff]
        %v2275 = vld [vmem:[%s2234 + $0x140] sm:$0xff]
        %v2276 = vld [vmem:[%s2234 + $0x148] sm:$0xff]
        %v2277 = vld [vmem:[%s2234 + $0x150] sm:$0xff]
        %v2278 = vld [vmem:[%s2234 + $0x158] sm:$0xff]
        %v2279 = vld [vmem:[%s2234 + $0x160] sm:$0xff]
        %v2280 = vld [vmem:[%s2234 + $0x168] sm:$0xff]
        %v2281 = vld [vmem:[%s2234 + $0x170] sm:$0xff]
        %v2282 = vld [vmem:[%s2234 + $0x178] sm:$0xff]
        %v2283 = vld [vmem:[%s2234 + $0x180] sm:$0xff]
        %v2284 = vld [vmem:[%s2234 + $0x188] sm:$0xff]
        %v2285 = vld [vmem:[%s2234 + $0x190] sm:$0xff]
        %v2286 = vld [vmem:[%s2234 + $0x198] sm:$0xff]
        %v2287 = vld [vmem:[%s2234 + $0x1a0] sm:$0xff]
        %v2288 = vld [vmem:[%s2234 + $0x1a8] sm:$0xff]
        %v2289 = vld [vmem:[%s2234 + $0x1b0] sm:$0xff]
        %v2290 = vld [vmem:[%s2234 + $0x1b8] sm:$0xff]
        %v2291 = vld [vmem:[%s2234 + $0x1c0] sm:$0xff]
        %v2292 = vld [vmem:[%s2234 + $0x1c8] sm:$0xff]
        %v2293 = vld [vmem:[%s2234 + $0x1d0] sm:$0xff]
        %v2294 = vld [vmem:[%s2234 + $0x1d8] sm:$0xff]
        %v2295 = vld [vmem:[%s2234 + $0x1e0] sm:$0xff]
        %v2296 = vld [vmem:[%s2234 + $0x1e8] sm:$0xff]
        %v2297 = vld [vmem:[%s2234 + $0x1f0] sm:$0xff]
        %v2298 = vld [vmem:[%s2234 + $0x1f8] sm:$0xff]
        %v2363 = vunpack.c.l.b16 %v2235
        %v2364 = vunpack.c.h.b16 %v2235
        %v2365 = vunpack.c.l.b16 %v2236
        %v2366 = vunpack.c.h.b16 %v2236
        %v2367 = vunpack.c.l.b16 %v2237
        %v2368 = vunpack.c.h.b16 %v2237
        %v2369 = vunpack.c.l.b16 %v2238
        %v2370 = vunpack.c.h.b16 %v2238
        %v2371 = vunpack.c.l.b16 %v2239
        %v2372 = vunpack.c.h.b16 %v2239
        %v2373 = vunpack.c.l.b16 %v2240
        %v2374 = vunpack.c.h.b16 %v2240
        %v2375 = vunpack.c.l.b16 %v2241
        %v2376 = vunpack.c.h.b16 %v2241
        %v2377 = vunpack.c.l.b16 %v2242
        %v2378 = vunpack.c.h.b16 %v2242
        %v2379 = vunpack.c.l.b16 %v2243
        %v2380 = vunpack.c.h.b16 %v2243
        %v2381 = vunpack.c.l.b16 %v2244
        %v2382 = vunpack.c.h.b16 %v2244
        %v2383 = vunpack.c.l.b16 %v2245
        %v2384 = vunpack.c.h.b16 %v2245
        %v2385 = vunpack.c.l.b16 %v2246
        %v2386 = vunpack.c.h.b16 %v2246
        %v2387 = vunpack.c.l.b16 %v2247
        %v2388 = vunpack.c.h.b16 %v2247
        %v2389 = vunpack.c.l.b16 %v2248
        %v2390 = vunpack.c.h.b16 %v2248
        %v2391 = vunpack.c.l.b16 %v2249
        %v2392 = vunpack.c.h.b16 %v2249
        %v2393 = vunpack.c.l.b16 %v2250
        %v2394 = vunpack.c.h.b16 %v2250
        %v2395 = vunpack.c.l.b16 %v2251
        %v2396 = vunpack.c.h.b16 %v2251
        %v2397 = vunpack.c.l.b16 %v2252
        %v2398 = vunpack.c.h.b16 %v2252
        %v2399 = vunpack.c.l.b16 %v2253
        %v2400 = vunpack.c.h.b16 %v2253
        %v2401 = vunpack.c.l.b16 %v2254
        %v2402 = vunpack.c.h.b16 %v2254
        %v2403 = vunpack.c.l.b16 %v2255
        %v2404 = vunpack.c.h.b16 %v2255
        %v2405 = vunpack.c.l.b16 %v2256
        %v2406 = vunpack.c.h.b16 %v2256
        %v2407 = vunpack.c.l.b16 %v2257
        %v2408 = vunpack.c.h.b16 %v2257
        %v2409 = vunpack.c.l.b16 %v2258
        %v2410 = vunpack.c.h.b16 %v2258
        %v2411 = vunpack.c.l.b16 %v2259
        %v2412 = vunpack.c.h.b16 %v2259
        %v2413 = vunpack.c.l.b16 %v2260
        %v2414 = vunpack.c.h.b16 %v2260
        %v2415 = vunpack.c.l.b16 %v2261
        %v2416 = vunpack.c.h.b16 %v2261
        %v2417 = vunpack.c.l.b16 %v2262
        %v2418 = vunpack.c.h.b16 %v2262
        %v2419 = vunpack.c.l.b16 %v2263
        %v2420 = vunpack.c.h.b16 %v2263
        %v2421 = vunpack.c.l.b16 %v2264
        %v2422 = vunpack.c.h.b16 %v2264
        %v2423 = vunpack.c.l.b16 %v2265
        %v2424 = vunpack.c.h.b16 %v2265
        %v2425 = vunpack.c.l.b16 %v2266
        %v2426 = vunpack.c.h.b16 %v2266
        %v2427 = vunpack.c.l.b16 %v2267
        %v2428 = vunpack.c.h.b16 %v2267
        %v2429 = vunpack.c.l.b16 %v2268
        %v2430 = vunpack.c.h.b16 %v2268
        %v2431 = vunpack.c.l.b16 %v2269
        %v2432 = vunpack.c.h.b16 %v2269
        %v2433 = vunpack.c.l.b16 %v2270
        %v2434 = vunpack.c.h.b16 %v2270
        %v2435 = vunpack.c.l.b16 %v2271
        %v2436 = vunpack.c.h.b16 %v2271
        %v2437 = vunpack.c.l.b16 %v2272
        %v2438 = vunpack.c.h.b16 %v2272
        %v2439 = vunpack.c.l.b16 %v2273
        %v2440 = vunpack.c.h.b16 %v2273
        %v2441 = vunpack.c.l.b16 %v2274
        %v2442 = vunpack.c.h.b16 %v2274
        %v2443 = vunpack.c.l.b16 %v2275
        %v2444 = vunpack.c.h.b16 %v2275
        %v2445 = vunpack.c.l.b16 %v2276
        %v2446 = vunpack.c.h.b16 %v2276
        %v2447 = vunpack.c.l.b16 %v2277
        %v2448 = vunpack.c.h.b16 %v2277
        %v2449 = vunpack.c.l.b16 %v2278
        %v2450 = vunpack.c.h.b16 %v2278
        %v2451 = vunpack.c.l.b16 %v2279
        %v2452 = vunpack.c.h.b16 %v2279
        %v2453 = vunpack.c.l.b16 %v2280
        %v2454 = vunpack.c.h.b16 %v2280
        %v2455 = vunpack.c.l.b16 %v2281
        %v2456 = vunpack.c.h.b16 %v2281
        %v2457 = vunpack.c.l.b16 %v2282
        %v2458 = vunpack.c.h.b16 %v2282
        %v2459 = vunpack.c.l.b16 %v2283
        %v2460 = vunpack.c.h.b16 %v2283
        %v2461 = vunpack.c.l.b16 %v2284
        %v2462 = vunpack.c.h.b16 %v2284
        %v2463 = vunpack.c.l.b16 %v2285
        %v2464 = vunpack.c.h.b16 %v2285
        %v2465 = vunpack.c.l.b16 %v2286
        %v2466 = vunpack.c.h.b16 %v2286
        %v2467 = vunpack.c.l.b16 %v2287
        %v2468 = vunpack.c.h.b16 %v2287
        %v2469 = vunpack.c.l.b16 %v2288
        %v2470 = vunpack.c.h.b16 %v2288
        %v2471 = vunpack.c.l.b16 %v2289
        %v2472 = vunpack.c.h.b16 %v2289
        %v2473 = vunpack.c.l.b16 %v2290
        %v2474 = vunpack.c.h.b16 %v2290
        %v2475 = vunpack.c.l.b16 %v2291
        %v2476 = vunpack.c.h.b16 %v2291
        %v2477 = vunpack.c.l.b16 %v2292
        %v2478 = vunpack.c.h.b16 %v2292
        %v2479 = vunpack.c.l.b16 %v2293
        %v2480 = vunpack.c.h.b16 %v2293
        %v2481 = vunpack.c.l.b16 %v2294
        %v2482 = vunpack.c.h.b16 %v2294
        %v2483 = vunpack.c.l.b16 %v2295
        %v2484 = vunpack.c.h.b16 %v2295
        %v2485 = vunpack.c.l.b16 %v2296
        %v2486 = vunpack.c.h.b16 %v2296
        %v2487 = vunpack.c.l.b16 %v2297
        %v2488 = vunpack.c.h.b16 %v2297
        %v2489 = vunpack.c.l.b16 %v2298
        %v2490 = vunpack.c.h.b16 %v2298
        %v2491 = vpack.c.b16 %v2367, %v2363
        %v2492 = vpack.c.b16 %v2368, %v2364
        %v2493 = vpack.c.b16 %v2369, %v2365
        %v2494 = vpack.c.b16 %v2370, %v2366
        %v2495 = vpack.c.b16 %v2375, %v2371
        %v2496 = vpack.c.b16 %v2376, %v2372
        %v2497 = vpack.c.b16 %v2377, %v2373
        %v2498 = vpack.c.b16 %v2378, %v2374
        %v2499 = vpack.c.b16 %v2383, %v2379
        %v2500 = vpack.c.b16 %v2384, %v2380
        %v2501 = vpack.c.b16 %v2385, %v2381
        %v2502 = vpack.c.b16 %v2386, %v2382
        %v2503 = vpack.c.b16 %v2391, %v2387
        %v2504 = vpack.c.b16 %v2392, %v2388
        %v2505 = vpack.c.b16 %v2393, %v2389
        %v2506 = vpack.c.b16 %v2394, %v2390
        %v2507 = vpack.c.b16 %v2399, %v2395
        %v2508 = vpack.c.b16 %v2400, %v2396
        %v2509 = vpack.c.b16 %v2401, %v2397
        %v2510 = vpack.c.b16 %v2402, %v2398
        %v2511 = vpack.c.b16 %v2407, %v2403
        %v2512 = vpack.c.b16 %v2408, %v2404
        %v2513 = vpack.c.b16 %v2409, %v2405
        %v2514 = vpack.c.b16 %v2410, %v2406
        %v2515 = vpack.c.b16 %v2415, %v2411
        %v2516 = vpack.c.b16 %v2416, %v2412
        %v2517 = vpack.c.b16 %v2417, %v2413
        %v2518 = vpack.c.b16 %v2418, %v2414
        %v2519 = vpack.c.b16 %v2423, %v2419
        %v2520 = vpack.c.b16 %v2424, %v2420
        %v2521 = vpack.c.b16 %v2425, %v2421
        %v2522 = vpack.c.b16 %v2426, %v2422
        %v2523 = vpack.c.b16 %v2431, %v2427
        %v2524 = vpack.c.b16 %v2432, %v2428
        %v2525 = vpack.c.b16 %v2433, %v2429
        %v2526 = vpack.c.b16 %v2434, %v2430
        %v2527 = vpack.c.b16 %v2439, %v2435
        %v2528 = vpack.c.b16 %v2440, %v2436
        %v2529 = vpack.c.b16 %v2441, %v2437
        %v2530 = vpack.c.b16 %v2442, %v2438
        %v2531 = vpack.c.b16 %v2447, %v2443
        %v2532 = vpack.c.b16 %v2448, %v2444
        %v2533 = vpack.c.b16 %v2449, %v2445
        %v2534 = vpack.c.b16 %v2450, %v2446
        %v2535 = vpack.c.b16 %v2455, %v2451
        %v2536 = vpack.c.b16 %v2456, %v2452
        %v2537 = vpack.c.b16 %v2457, %v2453
        %v2538 = vpack.c.b16 %v2458, %v2454
        %v2539 = vpack.c.b16 %v2463, %v2459
        %v2540 = vpack.c.b16 %v2464, %v2460
        %v2541 = vpack.c.b16 %v2465, %v2461
        %v2542 = vpack.c.b16 %v2466, %v2462
        %v2543 = vpack.c.b16 %v2471, %v2467
        %v2544 = vpack.c.b16 %v2472, %v2468
        %v2545 = vpack.c.b16 %v2473, %v2469
        %v2546 = vpack.c.b16 %v2474, %v2470
        %v2547 = vpack.c.b16 %v2479, %v2475
        %v2548 = vpack.c.b16 %v2480, %v2476
        %v2549 = vpack.c.b16 %v2481, %v2477
        %v2550 = vpack.c.b16 %v2482, %v2478
        %v2551 = vpack.c.b16 %v2487, %v2483
        %v2552 = vpack.c.b16 %v2488, %v2484
        %v2553 = vpack.c.b16 %v2489, %v2485
        %v2554 = vpack.c.b16 %v2490, %v2486
        %2619 = vmatprep.subr.bf16.mxu0 %v2520
        %2620 = vmatpush1.bf16.msra.mxu0 %v2519
        %2621 = vmatprep.subr.bf16.mxu0 %v2516
        %2622 = vmatpush1.bf16.msra.mxu0 %v2515
        %2623 = vmatprep.subr.bf16.mxu0 %v2512
        %2624 = vmatpush1.bf16.msra.mxu0 %v2511
        %2625 = vmatprep.subr.bf16.mxu0 %v2508
        %2626 = vmatpush1.bf16.msra.mxu0 %v2507
        %2627 = vmatprep.subr.bf16.mxu0 %v2504
        %2628 = vmatpush1.bf16.msra.mxu0 %v2503
        %2629 = vmatprep.subr.bf16.mxu0 %v2500
        %2630 = vmatpush1.bf16.msra.mxu0 %v2499
        %2631 = vmatprep.subr.bf16.mxu0 %v2496
        %2632 = vmatpush1.bf16.msra.mxu0 %v2495
        %2633 = vmatprep.subr.bf16.mxu0 %v2492
        %2634 = vmatpush1.bf16.msra.mxu0 %v2491
        %2635 = vmatprep.subr.bf16.mxu0 %v2552
        %2636 = vmatpush2.bf16.msra.mxu0 %v2551
        %2637 = vmatprep.subr.bf16.mxu0 %v2548
        %2638 = vmatpush2.bf16.msra.mxu0 %v2547
        %2639 = vmatprep.subr.bf16.mxu0 %v2544
        %2640 = vmatpush2.bf16.msra.mxu0 %v2543
        %2641 = vmatprep.subr.bf16.mxu0 %v2540
        %2642 = vmatpush2.bf16.msra.mxu0 %v2539
        %2643 = vmatprep.subr.bf16.mxu0 %v2536
        %2644 = vmatpush2.bf16.msra.mxu0 %v2535
        %2645 = vmatprep.subr.bf16.mxu0 %v2532
        %2646 = vmatpush2.bf16.msra.mxu0 %v2531
        %2647 = vmatprep.subr.bf16.mxu0 %v2528
        %2648 = vmatpush2.bf16.msra.mxu0 %v2527
        %2649 = vmatprep.subr.bf16.mxu0 %v2524
        %2650 = vmatpush2.bf16.msra.mxu0 %v2523
        %2651 = vmatprep.mubr.bf16.mxu0 %v2225
        %2652 = vmatmul.mubr.bf16.gmra.mxu0 %v2224
        %v2653 = vpop.f32.mrf.mxu0
        %v2654 = vadd.f32 0.0, %v2653
        %v2655 = vpop.f32.mrf.mxu0
        %v2656 = vadd.f32 0.0, %v2655
        %v2657 = vpop.f32.mrf.mxu0
        %v2658 = vadd.f32 0.0, %v2657
        %v2659 = vpop.f32.mrf.mxu0
        %v2660 = vadd.f32 0.0, %v2659
        %2661 = vmatprep.mubr.bf16.mxu0 %v2227
        %2662 = vmatmul.mubr.bf16.gmra.mxu0 %v2226
        %v2663 = vpop.f32.mrf.mxu0
        %v2664 = vadd.f32 0.0, %v2663
        %v2665 = vpop.f32.mrf.mxu0
        %v2666 = vadd.f32 0.0, %v2665
        %v2667 = vpop.f32.mrf.mxu0
        %v2668 = vadd.f32 0.0, %v2667
        %v2669 = vpop.f32.mrf.mxu0
        %v2670 = vadd.f32 0.0, %v2669
        %2671 = vmatprep.mubr.bf16.mxu0 %v2229
        %2672 = vmatmul.mubr.bf16.gmra.mxu0 %v2228
        %v2673 = vpop.f32.mrf.mxu0
        %v2674 = vadd.f32 0.0, %v2673
        %v2675 = vpop.f32.mrf.mxu0
        %v2676 = vadd.f32 0.0, %v2675
        %v2677 = vpop.f32.mrf.mxu0
        %v2678 = vadd.f32 0.0, %v2677
        %v2679 = vpop.f32.mrf.mxu0
        %v2680 = vadd.f32 0.0, %v2679
        %2681 = vmatprep.mubr.bf16.mxu0 %v2231
        %2682 = vmatmul.mubr.bf16.gmra.mxu0 %v2230
        %v2683 = vpop.f32.mrf.mxu0
        %v2684 = vadd.f32 0.0, %v2683
        %v2685 = vpop.f32.mrf.mxu0
        %v2686 = vadd.f32 0.0, %v2685
        %v2687 = vpop.f32.mrf.mxu0
        %v2688 = vadd.f32 0.0, %v2687
        %v2689 = vpop.f32.mrf.mxu0
        %v2690 = vadd.f32 0.0, %v2689
        %2691 = vmatprep.mubr.bf16.mxu0 %v2233
        %2692 = vmatmul.mubr.bf16.gmra.mxu0 %v2232
        %v2693 = vpop.f32.mrf.mxu0
        %v2694 = vadd.f32 0.0, %v2693
        %v2695 = vpop.f32.mrf.mxu0
        %v2696 = vadd.f32 0.0, %v2695
        %v2697 = vpop.f32.mrf.mxu0
        %v2698 = vpop.f32.mrf.mxu0
        %2699 = vdwg.mxu0
        %2700 = vmatprep.subr.bf16.mxu0 %v2522
        %2701 = vmatpush1.bf16.msra.mxu0 %v2521
        %2702 = vmatprep.subr.bf16.mxu0 %v2518
        %2703 = vmatpush1.bf16.msra.mxu0 %v2517
        %2704 = vmatprep.subr.bf16.mxu0 %v2514
        %2705 = vmatpush1.bf16.msra.mxu0 %v2513
        %2706 = vmatprep.subr.bf16.mxu0 %v2510
        %2707 = vmatpush1.bf16.msra.mxu0 %v2509
        %2708 = vmatprep.subr.bf16.mxu0 %v2506
        %2709 = vmatpush1.bf16.msra.mxu0 %v2505
        %2710 = vmatprep.subr.bf16.mxu0 %v2502
        %2711 = vmatpush1.bf16.msra.mxu0 %v2501
        %2712 = vmatprep.subr.bf16.mxu0 %v2498
        %2713 = vmatpush1.bf16.msra.mxu0 %v2497
        %2714 = vmatprep.subr.bf16.mxu0 %v2494
        %2715 = vmatpush1.bf16.msra.mxu0 %v2493
        %2716 = vmatprep.subr.bf16.mxu0 %v2554
        %2717 = vmatpush2.bf16.msra.mxu0 %v2553
        %2718 = vmatprep.subr.bf16.mxu0 %v2550
        %2719 = vmatpush2.bf16.msra.mxu0 %v2549
        %2720 = vmatprep.subr.bf16.mxu0 %v2546
        %2721 = vmatpush2.bf16.msra.mxu0 %v2545
        %2722 = vmatprep.subr.bf16.mxu0 %v2542
        %2723 = vmatpush2.bf16.msra.mxu0 %v2541
        %2724 = vmatprep.subr.bf16.mxu0 %v2538
        %2725 = vmatpush2.bf16.msra.mxu0 %v2537
        %2726 = vmatprep.subr.bf16.mxu0 %v2534
        %2727 = vmatpush2.bf16.msra.mxu0 %v2533
        %2728 = vmatprep.subr.bf16.mxu0 %v2530
        %2729 = vmatpush2.bf16.msra.mxu0 %v2529
        %2730 = vmatprep.subr.bf16.mxu0 %v2526
        %2731 = vmatpush2.bf16.msra.mxu0 %v2525
        %2732 = vmatprep.mubr.bf16.mxu0 %v2225
        %2733 = vmatmul.mubr.bf16.gmra.mxu0 %v2224
        %v2734 = vpop.f32.mrf.mxu0
        %v2735 = vadd.f32 0.0, %v2734
        %v2736 = vpop.f32.mrf.mxu0
        %v2737 = vadd.f32 0.0, %v2736
        %v2738 = vpop.f32.mrf.mxu0
        %v2739 = vadd.f32 0.0, %v2738
        %v2740 = vpop.f32.mrf.mxu0
        %v2741 = vadd.f32 0.0, %v2740
        %2742 = vmatprep.mubr.bf16.mxu0 %v2227
        %2743 = vmatmul.mubr.bf16.gmra.mxu0 %v2226
        %v2744 = vpop.f32.mrf.mxu0
        %v2745 = vadd.f32 0.0, %v2744
        %v2746 = vpop.f32.mrf.mxu0
        %v2747 = vadd.f32 0.0, %v2746
        %v2748 = vpop.f32.mrf.mxu0
        %v2749 = vadd.f32 0.0, %v2748
        %v2750 = vpop.f32.mrf.mxu0
        %v2751 = vadd.f32 0.0, %v2750
        %2752 = vmatprep.mubr.bf16.mxu0 %v2229
        %2753 = vmatmul.mubr.bf16.gmra.mxu0 %v2228
        %v2754 = vpop.f32.mrf.mxu0
        %v2755 = vadd.f32 0.0, %v2754
        %v2756 = vpop.f32.mrf.mxu0
        %v2757 = vadd.f32 0.0, %v2756
        %v2758 = vpop.f32.mrf.mxu0
        %v2759 = vadd.f32 0.0, %v2758
        %v2760 = vpop.f32.mrf.mxu0
        %v2761 = vadd.f32 0.0, %v2760
        %2762 = vmatprep.mubr.bf16.mxu0 %v2231
        %2763 = vmatmul.mubr.bf16.gmra.mxu0 %v2230
        %v2764 = vpop.f32.mrf.mxu0
        %v2765 = vadd.f32 0.0, %v2764
        %v2766 = vpop.f32.mrf.mxu0
        %v2767 = vadd.f32 0.0, %v2766
        %v2768 = vpop.f32.mrf.mxu0
        %v2769 = vadd.f32 0.0, %v2768
        %v2770 = vpop.f32.mrf.mxu0
        %v2771 = vadd.f32 0.0, %v2770
        %2772 = vmatprep.mubr.bf16.mxu0 %v2233
        %2773 = vmatmul.mubr.bf16.gmra.mxu0 %v2232
        %v2774 = vpop.f32.mrf.mxu0
        %v2775 = vadd.f32 0.0, %v2774
        %v2776 = vpop.f32.mrf.mxu0
        %v2777 = vadd.f32 0.0, %v2776
        %v2778 = vpop.f32.mrf.mxu0
        %v2779 = vpop.f32.mrf.mxu0
        %2780 = vdwg.mxu0
        %v2781 = vadd.f32 %v2097, %v2654
        %v2782 = vadd.f32 %v2099, %v2656
        %v2783 = vadd.f32 %v2178, %v2735
        %v2784 = vadd.f32 %v2180, %v2737
        %v2785 = vadd.f32 %v2101, %v2658
        %v2786 = vadd.f32 %v2103, %v2660
        %v2787 = vadd.f32 %v2182, %v2739
        %v2788 = vadd.f32 %v2184, %v2741
        %v2789 = vadd.f32 %v2107, %v2664
        %v2790 = vadd.f32 %v2109, %v2666
        %v2791 = vadd.f32 %v2188, %v2745
        %v2792 = vadd.f32 %v2190, %v2747
        %v2793 = vadd.f32 %v2111, %v2668
        %v2794 = vadd.f32 %v2113, %v2670
        %v2795 = vadd.f32 %v2192, %v2749
        %v2796 = vadd.f32 %v2194, %v2751
        %v2797 = vadd.f32 %v2117, %v2674
        %v2798 = vadd.f32 %v2119, %v2676
        %v2799 = vadd.f32 %v2198, %v2755
        %v2800 = vadd.f32 %v2200, %v2757
        %v2801 = vadd.f32 %v2121, %v2678
        %v2802 = vadd.f32 %v2123, %v2680
        %v2803 = vadd.f32 %v2202, %v2759
        %v2804 = vadd.f32 %v2204, %v2761
        %v2805 = vadd.f32 %v2127, %v2684
        %v2806 = vadd.f32 %v2129, %v2686
        %v2807 = vadd.f32 %v2208, %v2765
        %v2808 = vadd.f32 %v2210, %v2767
        %v2809 = vadd.f32 %v2131, %v2688
        %v2810 = vadd.f32 %v2133, %v2690
        %v2811 = vadd.f32 %v2212, %v2769
        %v2812 = vadd.f32 %v2214, %v2771
        %v2813 = vadd.f32 %v2137, %v2694
        %v2814 = vadd.f32 %v2139, %v2696
        %v2815 = vadd.f32 %v2218, %v2775
        %v2816 = vadd.f32 %v2220, %v2777
        %v2817 = vld [vmem:[%s4] sm:$0xf]
        %v2819 = vlaneseq
        %v2820 = vshrl.u32 %v2819, 7
        %v2821 = vsub.s32 0, %v2820
        %v2822 = vrot.slane %v2817, %v2821
        %v2823 = vlaneseq
        %v2824 = vshrl.u32 %v2823, 7
        %v2825 = vsub.s32 1, %v2824
        %v2826 = vrot.slane %v2817, %v2825
        %v2827 = vlaneseq
        %v2828 = vshrl.u32 %v2827, 7
        %v2829 = vsub.s32 2, %v2828
        %v2830 = vrot.slane %v2817, %v2829
        %v2831 = vlaneseq
        %v2832 = vshrl.u32 %v2831, 7
        %v2833 = vsub.s32 3, %v2832
        %v2834 = vrot.slane %v2817, %v2833
        %v2839 = vadd.f32 %v2781, %v2822
        %v2840 = vadd.f32 %v2782, %v2826
        %v2841 = vadd.f32 %v2783, %v2830
        %v2842 = vadd.f32 %v2784, %v2834
        %v2843 = vadd.f32 %v2785, %v2822
        %v2844 = vadd.f32 %v2786, %v2826
        %v2845 = vadd.f32 %v2787, %v2830
        %v2846 = vadd.f32 %v2788, %v2834
        %v2847 = vadd.f32 %v2789, %v2822
        %v2848 = vadd.f32 %v2790, %v2826
        %v2849 = vadd.f32 %v2791, %v2830
        %v2850 = vadd.f32 %v2792, %v2834
        %v2851 = vadd.f32 %v2793, %v2822
        %v2852 = vadd.f32 %v2794, %v2826
        %v2853 = vadd.f32 %v2795, %v2830
        %v2854 = vadd.f32 %v2796, %v2834
        %v2855 = vadd.f32 %v2797, %v2822
        %v2856 = vadd.f32 %v2798, %v2826
        %v2857 = vadd.f32 %v2799, %v2830
        %v2858 = vadd.f32 %v2800, %v2834
        %v2859 = vadd.f32 %v2801, %v2822
        %v2860 = vadd.f32 %v2802, %v2826
        %v2861 = vadd.f32 %v2803, %v2830
        %v2862 = vadd.f32 %v2804, %v2834
        %v2863 = vadd.f32 %v2805, %v2822
        %v2864 = vadd.f32 %v2806, %v2826
        %v2865 = vadd.f32 %v2807, %v2830
        %v2866 = vadd.f32 %v2808, %v2834
        %v2867 = vadd.f32 %v2809, %v2822
        %v2868 = vadd.f32 %v2810, %v2826
        %v2869 = vadd.f32 %v2811, %v2830
        %v2870 = vadd.f32 %v2812, %v2834
        %v2871 = vadd.f32 %v2813, %v2822
        %v2872 = vadd.f32 %v2814, %v2826
        %v2873 = vadd.f32 %v2815, %v2830
        %v2874 = vadd.f32 %v2816, %v2834
        %v2875 = vmax.f32 %v2839, 0.0
        %v2876 = vmax.f32 %v2840, 0.0
        %v2877 = vmax.f32 %v2841, 0.0
        %v2878 = vmax.f32 %v2842, 0.0
        %v2879 = vmax.f32 %v2843, 0.0
        %v2880 = vmax.f32 %v2844, 0.0
        %v2881 = vmax.f32 %v2845, 0.0
        %v2882 = vmax.f32 %v2846, 0.0
        %v2883 = vmax.f32 %v2847, 0.0
        %v2884 = vmax.f32 %v2848, 0.0
        %v2885 = vmax.f32 %v2849, 0.0
        %v2886 = vmax.f32 %v2850, 0.0
        %v2887 = vmax.f32 %v2851, 0.0
        %v2888 = vmax.f32 %v2852, 0.0
        %v2889 = vmax.f32 %v2853, 0.0
        %v2890 = vmax.f32 %v2854, 0.0
        %v2891 = vmax.f32 %v2855, 0.0
        %v2892 = vmax.f32 %v2856, 0.0
        %v2893 = vmax.f32 %v2857, 0.0
        %v2894 = vmax.f32 %v2858, 0.0
        %v2895 = vmax.f32 %v2859, 0.0
        %v2896 = vmax.f32 %v2860, 0.0
        %v2897 = vmax.f32 %v2861, 0.0
        %v2898 = vmax.f32 %v2862, 0.0
        %v2899 = vmax.f32 %v2863, 0.0
        %v2900 = vmax.f32 %v2864, 0.0
        %v2901 = vmax.f32 %v2865, 0.0
        %v2902 = vmax.f32 %v2866, 0.0
        %v2903 = vmax.f32 %v2867, 0.0
        %v2904 = vmax.f32 %v2868, 0.0
        %v2905 = vmax.f32 %v2869, 0.0
        %v2906 = vmax.f32 %v2870, 0.0
        %v2907 = vmax.f32 %v2871, 0.0
        %v2908 = vmax.f32 %v2872, 0.0
        %v2909 = vmax.f32 %v2873, 0.0
        %v2910 = vmax.f32 %v2874, 0.0
        %v2911 = vld [vmem:[%s6] sm:$0xf]
        %vm2912 = vcmask 588800
        %v2914 = vsel %vm2912, %v2911, 0
        %2916 = vmatprep.subr.mxu0 0.0
        %2917 = vmatpush1.msra.mxu0 0.0
        %2918 = vmatprep.subr.mxu0 0.0
        %2919 = vmatpush1.msra.mxu0 0.0
        %2920 = vmatprep.subr.mxu0 0.0
        %2921 = vmatpush1.msra.mxu0 0.0
        %2922 = vmatprep.subr.mxu0 0.0
        %2923 = vmatpush1.msra.mxu0 0.0
        %2924 = vmatprep.subr.mxu0 0.0
        %2925 = vmatpush1.msra.mxu0 0.0
        %2926 = vmatprep.subr.mxu0 0.0
        %2927 = vmatpush1.msra.mxu0 0.0
        %2928 = vmatprep.subr.mxu0 0.0
        %2929 = vmatpush1.msra.mxu0 0.0
        %2930 = vmatprep.subr.mxu0 %v2908
        %2931 = vmatpush1.msra.mxu0 %v2907
        %2932 = vmatprep.subr.mxu0 %v2904
        %2933 = vmatpush1.msra.mxu0 %v2903
        %2934 = vmatprep.subr.mxu0 %v2900
        %2935 = vmatpush1.msra.mxu0 %v2899
        %2936 = vmatprep.subr.mxu0 %v2896
        %2937 = vmatpush1.msra.mxu0 %v2895
        %2938 = vmatprep.subr.mxu0 %v2892
        %2939 = vmatpush1.msra.mxu0 %v2891
        %2940 = vmatprep.subr.mxu0 %v2888
        %2941 = vmatpush1.msra.mxu0 %v2887
        %2942 = vmatprep.subr.mxu0 %v2884
        %2943 = vmatpush1.msra.mxu0 %v2883
        %2944 = vmatprep.subr.mxu0 %v2880
        %2945 = vmatpush1.msra.mxu0 %v2879
        %2946 = vmatprep.subr.mxu0 %v2876
        %2947 = vmatpush1.msra.mxu0 %v2875
        %2948 = vmatprep.subr.mxu0 0.0
        %2949 = vmatpush2.msra.mxu0 0.0
        %2950 = vmatprep.subr.mxu0 0.0
        %2951 = vmatpush2.msra.mxu0 0.0
        %2952 = vmatprep.subr.mxu0 0.0
        %2953 = vmatpush2.msra.mxu0 0.0
        %2954 = vmatprep.subr.mxu0 0.0
        %2955 = vmatpush2.msra.mxu0 0.0
        %2956 = vmatprep.subr.mxu0 0.0
        %2957 = vmatpush2.msra.mxu0 0.0
        %2958 = vmatprep.subr.mxu0 0.0
        %2959 = vmatpush2.msra.mxu0 0.0
        %2960 = vmatprep.subr.mxu0 0.0
        %2961 = vmatpush2.msra.mxu0 0.0
        %2962 = vmatprep.subr.mxu0 0.0
        %2963 = vmatpush2.msra.mxu0 0.0
        %2964 = vmatprep.subr.mxu0 0.0
        %2965 = vmatpush2.msra.mxu0 0.0
        %2966 = vmatprep.subr.mxu0 0.0
        %2967 = vmatpush2.msra.mxu0 0.0
        %2968 = vmatprep.subr.mxu0 0.0
        %2969 = vmatpush2.msra.mxu0 0.0
        %2970 = vmatprep.subr.mxu0 0.0
        %2971 = vmatpush2.msra.mxu0 0.0
        %2972 = vmatprep.subr.mxu0 0.0
        %2973 = vmatpush2.msra.mxu0 0.0
        %2974 = vmatprep.subr.mxu0 0.0
        %2975 = vmatpush2.msra.mxu0 0.0
        %2976 = vmatprep.subr.mxu0 0.0
        %2977 = vmatpush2.msra.mxu0 0.0
        %2978 = vmatprep.subr.mxu0 0.0
        %2979 = vmatpush2.msra.mxu0 0.0
        %2980 = vmatprep.mubr.f32.mxu0 0.0
        %2981 = vmatmul.mubr.f32.gmra.mxu0 %v2914
        %v2982 = vpop.f32.mrf.mxu0
        %v2983 = vadd.f32 0.0, %v2982
        %v2984 = vpop.f32.mrf.mxu0
        %v2985 = vadd.f32 0.0, %v2984
        %2986 = vdwg.mxu0
        %2987 = vmatprep.subr.mxu0 0.0
        %2988 = vmatpush1.msra.mxu0 0.0
        %2989 = vmatprep.subr.mxu0 0.0
        %2990 = vmatpush1.msra.mxu0 0.0
        %2991 = vmatprep.subr.mxu0 0.0
        %2992 = vmatpush1.msra.mxu0 0.0
        %2993 = vmatprep.subr.mxu0 0.0
        %2994 = vmatpush1.msra.mxu0 0.0
        %2995 = vmatprep.subr.mxu0 0.0
        %2996 = vmatpush1.msra.mxu0 0.0
        %2997 = vmatprep.subr.mxu0 0.0
        %2998 = vmatpush1.msra.mxu0 0.0
        %2999 = vmatprep.subr.mxu0 0.0
        %3000 = vmatpush1.msra.mxu0 0.0
        %3001 = vmatprep.subr.mxu0 %v2910
        %3002 = vmatpush1.msra.mxu0 %v2909
        %3003 = vmatprep.subr.mxu0 %v2906
        %3004 = vmatpush1.msra.mxu0 %v2905
        %3005 = vmatprep.subr.mxu0 %v2902
        %3006 = vmatpush1.msra.mxu0 %v2901
        %3007 = vmatprep.subr.mxu0 %v2898
        %3008 = vmatpush1.msra.mxu0 %v2897
        %3009 = vmatprep.subr.mxu0 %v2894
        %3010 = vmatpush1.msra.mxu0 %v2893
        %3011 = vmatprep.subr.mxu0 %v2890
        %3012 = vmatpush1.msra.mxu0 %v2889
        %3013 = vmatprep.subr.mxu0 %v2886
        %3014 = vmatpush1.msra.mxu0 %v2885
        %3015 = vmatprep.subr.mxu0 %v2882
        %3016 = vmatpush1.msra.mxu0 %v2881
        %3017 = vmatprep.subr.mxu0 %v2878
        %3018 = vmatpush1.msra.mxu0 %v2877
        %3019 = vmatprep.subr.mxu0 0.0
        %3020 = vmatpush2.msra.mxu0 0.0
        %3021 = vmatprep.subr.mxu0 0.0
        %3022 = vmatpush2.msra.mxu0 0.0
        %3023 = vmatprep.subr.mxu0 0.0
        %3024 = vmatpush2.msra.mxu0 0.0
        %3025 = vmatprep.subr.mxu0 0.0
        %3026 = vmatpush2.msra.mxu0 0.0
        %3027 = vmatprep.subr.mxu0 0.0
        %3028 = vmatpush2.msra.mxu0 0.0
        %3029 = vmatprep.subr.mxu0 0.0
        %3030 = vmatpush2.msra.mxu0 0.0
        %3031 = vmatprep.subr.mxu0 0.0
        %3032 = vmatpush2.msra.mxu0 0.0
        %3033 = vmatprep.subr.mxu0 0.0
        %3034 = vmatpush2.msra.mxu0 0.0
        %3035 = vmatprep.subr.mxu0 0.0
        %3036 = vmatpush2.msra.mxu0 0.0
        %3037 = vmatprep.subr.mxu0 0.0
        %3038 = vmatpush2.msra.mxu0 0.0
        %3039 = vmatprep.subr.mxu0 0.0
        %3040 = vmatpush2.msra.mxu0 0.0
        %3041 = vmatprep.subr.mxu0 0.0
        %3042 = vmatpush2.msra.mxu0 0.0
        %3043 = vmatprep.subr.mxu0 0.0
        %3044 = vmatpush2.msra.mxu0 0.0
        %3045 = vmatprep.subr.mxu0 0.0
        %3046 = vmatpush2.msra.mxu0 0.0
        %3047 = vmatprep.subr.mxu0 0.0
        %3048 = vmatpush2.msra.mxu0 0.0
        %3049 = vmatprep.subr.mxu0 0.0
        %3050 = vmatpush2.msra.mxu0 0.0
        %3051 = vmatprep.mubr.f32.mxu0 0.0
        %3052 = vmatmul.mubr.f32.gmra.mxu0 %v2914
        %v3053 = vpop.f32.mrf.mxu0
        %v3054 = vadd.f32 0.0, %v3053
        %v3055 = vpop.f32.mrf.mxu0
        %v3056 = vadd.f32 0.0, %v3055
        %3057 = vdwg.mxu0
        %v3058 = vld [vmem:[%s7] sm:$0xff]
        %v3059 = vld [vmem:[%s7 + $0x8] sm:$0xff]
        %v3060 = vld [vmem:[%s7 + $0x10] sm:$0xff]
        %v3061 = vld [vmem:[%s7 + $0x18] sm:$0xff]
        %v3062 = vld [vmem:[%s7 + $0x20] sm:$0xff]
        %v3063 = vld [vmem:[%s7 + $0x28] sm:$0xff]
        %v3064 = vld [vmem:[%s7 + $0x30] sm:$0xff]
        %v3065 = vld [vmem:[%s7 + $0x38] sm:$0xff]
        %v3066 = vld [vmem:[%s7 + $0x40] sm:$0xff]
        %v3067 = vld [vmem:[%s7 + $0x48] sm:$0xff]
        %v3068 = vld [vmem:[%s7 + $0x50] sm:$0xff]
        %v3069 = vld [vmem:[%s7 + $0x58] sm:$0xff]
        %v3070 = vld [vmem:[%s7 + $0x60] sm:$0xff]
        %v3071 = vld [vmem:[%s7 + $0x68] sm:$0xff]
        %v3072 = vld [vmem:[%s7 + $0x70] sm:$0xff]
        %v3073 = vld [vmem:[%s7 + $0x78] sm:$0xff]
        %v3074 = vld [vmem:[%s7 + $0x80] sm:$0xff]
        %v3075 = vld [vmem:[%s7 + $0x88] sm:$0xff]
        %v3076 = vld [vmem:[%s7 + $0x90] sm:$0xff]
        %v3077 = vld [vmem:[%s7 + $0x98] sm:$0xff]
        %v3078 = vld [vmem:[%s7 + $0xa0] sm:$0xff]
        %v3079 = vld [vmem:[%s7 + $0xa8] sm:$0xff]
        %v3080 = vld [vmem:[%s7 + $0xb0] sm:$0xff]
        %v3081 = vld [vmem:[%s7 + $0xb8] sm:$0xff]
        %v3082 = vld [vmem:[%s7 + $0xc0] sm:$0xff]
        %v3083 = vld [vmem:[%s7 + $0xc8] sm:$0xff]
        %v3084 = vld [vmem:[%s7 + $0xd0] sm:$0xff]
        %v3085 = vld [vmem:[%s7 + $0xd8] sm:$0xff]
        %v3086 = vld [vmem:[%s7 + $0xe0] sm:$0xff]
        %v3087 = vld [vmem:[%s7 + $0xe8] sm:$0xff]
        %v3088 = vld [vmem:[%s7 + $0xf0] sm:$0xff]
        %v3089 = vld [vmem:[%s7 + $0xf8] sm:$0xff]
        %v3090 = vld [vmem:[%s7 + $0x100] sm:$0xff]
        %v3091 = vld [vmem:[%s7 + $0x108] sm:$0xff]
        %v3092 = vld [vmem:[%s7 + $0x110] sm:$0xff]
        %v3093 = vld [vmem:[%s7 + $0x118] sm:$0xff]
        %v3094 = vld [vmem:[%s7 + $0x120] sm:$0xff]
        %v3095 = vld [vmem:[%s7 + $0x128] sm:$0xff]
        %v3096 = vld [vmem:[%s7 + $0x130] sm:$0xff]
        %v3097 = vld [vmem:[%s7 + $0x138] sm:$0xff]
        %v3098 = vld [vmem:[%s7 + $0x140] sm:$0xff]
        %v3099 = vld [vmem:[%s7 + $0x148] sm:$0xff]
        %v3100 = vld [vmem:[%s7 + $0x150] sm:$0xff]
        %v3101 = vld [vmem:[%s7 + $0x158] sm:$0xff]
        %v3102 = vld [vmem:[%s7 + $0x160] sm:$0xff]
        %v3103 = vld [vmem:[%s7 + $0x168] sm:$0xff]
        %v3104 = vld [vmem:[%s7 + $0x170] sm:$0xff]
        %v3105 = vld [vmem:[%s7 + $0x178] sm:$0xff]
        %v3106 = vld [vmem:[%s7 + $0x180] sm:$0xff]
        %v3107 = vld [vmem:[%s7 + $0x188] sm:$0xff]
        %v3108 = vld [vmem:[%s7 + $0x190] sm:$0xff]
        %v3109 = vld [vmem:[%s7 + $0x198] sm:$0xff]
        %v3110 = vld [vmem:[%s7 + $0x1a0] sm:$0xff]
        %v3111 = vld [vmem:[%s7 + $0x1a8] sm:$0xff]
        %v3112 = vld [vmem:[%s7 + $0x1b0] sm:$0xff]
        %v3113 = vld [vmem:[%s7 + $0x1b8] sm:$0xff]
        %v3114 = vld [vmem:[%s7 + $0x1c0] sm:$0xff]
        %v3115 = vld [vmem:[%s7 + $0x1c8] sm:$0xff]
        %v3116 = vld [vmem:[%s7 + $0x1d0] sm:$0xff]
        %v3117 = vld [vmem:[%s7 + $0x1d8] sm:$0xff]
        %v3118 = vld [vmem:[%s7 + $0x1e0] sm:$0xff]
        %v3119 = vld [vmem:[%s7 + $0x1e8] sm:$0xff]
        %v3120 = vld [vmem:[%s7 + $0x1f0] sm:$0xff]
        %v3121 = vld [vmem:[%s7 + $0x1f8] sm:$0xff]
        %v3122 = vld [vmem:[%s8] sm:$0x1]
        %v3124 = vlaneseq
        %v3125 = vshrl.u32 %v3124, 7
        %v3126 = vsub.s32 0, %v3125
        %v3127 = vrot.slane %v3122, %v3126
        %3129 = vmatprep.subr.mxu0 0.0
        %3130 = vmatpush1.msra.mxu0 %v3073
        %3131 = vmatprep.subr.mxu0 0.0
        %3132 = vmatpush1.msra.mxu0 %v3072
        %3133 = vmatprep.subr.mxu0 0.0
        %3134 = vmatpush1.msra.mxu0 %v3071
        %3135 = vmatprep.subr.mxu0 0.0
        %3136 = vmatpush1.msra.mxu0 %v3070
        %3137 = vmatprep.subr.mxu0 0.0
        %3138 = vmatpush1.msra.mxu0 %v3069
        %3139 = vmatprep.subr.mxu0 0.0
        %3140 = vmatpush1.msra.mxu0 %v3068
        %3141 = vmatprep.subr.mxu0 0.0
        %3142 = vmatpush1.msra.mxu0 %v3067
        %3143 = vmatprep.subr.mxu0 0.0
        %3144 = vmatpush1.msra.mxu0 %v3066
        %3145 = vmatprep.subr.mxu0 0.0
        %3146 = vmatpush1.msra.mxu0 %v3065
        %3147 = vmatprep.subr.mxu0 0.0
        %3148 = vmatpush1.msra.mxu0 %v3064
        %3149 = vmatprep.subr.mxu0 0.0
        %3150 = vmatpush1.msra.mxu0 %v3063
        %3151 = vmatprep.subr.mxu0 0.0
        %3152 = vmatpush1.msra.mxu0 %v3062
        %3153 = vmatprep.subr.mxu0 0.0
        %3154 = vmatpush1.msra.mxu0 %v3061
        %3155 = vmatprep.subr.mxu0 0.0
        %3156 = vmatpush1.msra.mxu0 %v3060
        %3157 = vmatprep.subr.mxu0 0.0
        %3158 = vmatpush1.msra.mxu0 %v3059
        %3159 = vmatprep.subr.mxu0 0.0
        %3160 = vmatpush1.msra.mxu0 %v3058
        %3161 = vmatprep.subr.mxu0 0.0
        %3162 = vmatpush2.msra.mxu0 %v3089
        %3163 = vmatprep.subr.mxu0 0.0
        %3164 = vmatpush2.msra.mxu0 %v3088
        %3165 = vmatprep.subr.mxu0 0.0
        %3166 = vmatpush2.msra.mxu0 %v3087
        %3167 = vmatprep.subr.mxu0 0.0
        %3168 = vmatpush2.msra.mxu0 %v3086
        %3169 = vmatprep.subr.mxu0 0.0
        %3170 = vmatpush2.msra.mxu0 %v3085
        %3171 = vmatprep.subr.mxu0 0.0
        %3172 = vmatpush2.msra.mxu0 %v3084
        %3173 = vmatprep.subr.mxu0 0.0
        %3174 = vmatpush2.msra.mxu0 %v3083
        %3175 = vmatprep.subr.mxu0 0.0
        %3176 = vmatpush2.msra.mxu0 %v3082
        %3177 = vmatprep.subr.mxu0 0.0
        %3178 = vmatpush2.msra.mxu0 %v3081
        %3179 = vmatprep.subr.mxu0 0.0
        %3180 = vmatpush2.msra.mxu0 %v3080
        %3181 = vmatprep.subr.mxu0 0.0
        %3182 = vmatpush2.msra.mxu0 %v3079
        %3183 = vmatprep.subr.mxu0 0.0
        %3184 = vmatpush2.msra.mxu0 %v3078
        %3185 = vmatprep.subr.mxu0 0.0
        %3186 = vmatpush2.msra.mxu0 %v3077
        %3187 = vmatprep.subr.mxu0 0.0
        %3188 = vmatpush2.msra.mxu0 %v3076
        %3189 = vmatprep.subr.mxu0 0.0
        %3190 = vmatpush2.msra.mxu0 %v3075
        %3191 = vmatprep.subr.mxu0 0.0
        %3192 = vmatpush2.msra.mxu0 %v3074
        %3193 = vmatprep.mubr.f32.mxu0 %v2985
        %3194 = vmatmul.mubr.f32.gmra.mxu0 %v2983
        %v3195 = vpop.f32.mrf.mxu0
        %v3196 = vadd.f32 %v3127, %v3195
        %v3197 = vpop.f32.mrf.mxu0
        %3198 = vdwg.mxu0
        %3199 = vmatprep.subr.mxu0 0.0
        %3200 = vmatpush1.msra.mxu0 %v3105
        %3201 = vmatprep.subr.mxu0 0.0
        %3202 = vmatpush1.msra.mxu0 %v3104
        %3203 = vmatprep.subr.mxu0 0.0
        %3204 = vmatpush1.msra.mxu0 %v3103
        %3205 = vmatprep.subr.mxu0 0.0
        %3206 = vmatpush1.msra.mxu0 %v3102
        %3207 = vmatprep.subr.mxu0 0.0
        %3208 = vmatpush1.msra.mxu0 %v3101
        %3209 = vmatprep.subr.mxu0 0.0
        %3210 = vmatpush1.msra.mxu0 %v3100
        %3211 = vmatprep.subr.mxu0 0.0
        %3212 = vmatpush1.msra.mxu0 %v3099
        %3213 = vmatprep.subr.mxu0 0.0
        %3214 = vmatpush1.msra.mxu0 %v3098
        %3215 = vmatprep.subr.mxu0 0.0
        %3216 = vmatpush1.msra.mxu0 %v3097
        %3217 = vmatprep.subr.mxu0 0.0
        %3218 = vmatpush1.msra.mxu0 %v3096
        %3219 = vmatprep.subr.mxu0 0.0
        %3220 = vmatpush1.msra.mxu0 %v3095
        %3221 = vmatprep.subr.mxu0 0.0
        %3222 = vmatpush1.msra.mxu0 %v3094
        %3223 = vmatprep.subr.mxu0 0.0
        %3224 = vmatpush1.msra.mxu0 %v3093
        %3225 = vmatprep.subr.mxu0 0.0
        %3226 = vmatpush1.msra.mxu0 %v3092
        %3227 = vmatprep.subr.mxu0 0.0
        %3228 = vmatpush1.msra.mxu0 %v3091
        %3229 = vmatprep.subr.mxu0 0.0
        %3230 = vmatpush1.msra.mxu0 %v3090
        %3231 = vmatprep.subr.mxu0 0.0
        %3232 = vmatpush2.msra.mxu0 %v3121
        %3233 = vmatprep.subr.mxu0 0.0
        %3234 = vmatpush2.msra.mxu0 %v3120
        %3235 = vmatprep.subr.mxu0 0.0
        %3236 = vmatpush2.msra.mxu0 %v3119
        %3237 = vmatprep.subr.mxu0 0.0
        %3238 = vmatpush2.msra.mxu0 %v3118
        %3239 = vmatprep.subr.mxu0 0.0
        %3240 = vmatpush2.msra.mxu0 %v3117
        %3241 = vmatprep.subr.mxu0 0.0
        %3242 = vmatpush2.msra.mxu0 %v3116
        %3243 = vmatprep.subr.mxu0 0.0
        %3244 = vmatpush2.msra.mxu0 %v3115
        %3245 = vmatprep.subr.mxu0 0.0
        %3246 = vmatpush2.msra.mxu0 %v3114
        %3247 = vmatprep.subr.mxu0 0.0
        %3248 = vmatpush2.msra.mxu0 %v3113
        %3249 = vmatprep.subr.mxu0 0.0
        %3250 = vmatpush2.msra.mxu0 %v3112
        %3251 = vmatprep.subr.mxu0 0.0
        %3252 = vmatpush2.msra.mxu0 %v3111
        %3253 = vmatprep.subr.mxu0 0.0
        %3254 = vmatpush2.msra.mxu0 %v3110
        %3255 = vmatprep.subr.mxu0 0.0
        %3256 = vmatpush2.msra.mxu0 %v3109
        %3257 = vmatprep.subr.mxu0 0.0
        %3258 = vmatpush2.msra.mxu0 %v3108
        %3259 = vmatprep.subr.mxu0 0.0
        %3260 = vmatpush2.msra.mxu0 %v3107
        %3261 = vmatprep.subr.mxu0 0.0
        %3262 = vmatpush2.msra.mxu0 %v3106
        %3263 = vmatprep.mubr.f32.mxu0 %v3056
        %3264 = vmatmul.mubr.f32.gmra.mxu0 %v3054
        %v3265 = vpop.f32.mrf.mxu0
        %v3266 = vadd.f32 %v3196, %v3265
        %v3267 = vpop.f32.mrf.mxu0
        %3268 = vdwg.mxu0
        %3269 = vst [vmem:[%s325] sm:$0xf] %v3266
        %s3270 = sand.u32 %s225, 1
        %s3271 = scalar_lea.sflag [#allocation3], %s3270
        %s3272 = sand.u32 %s225, 1
        %s3273 = smul.addr %s3272, 4
        %s3274 = scalar_lea.vmem [#allocation2], %s3273
        // Predicated region
        $region57: #{simple_net_forward.1} parent=55 // pred_check
          %p3275 = pneg %p235
        $region58: #{simple_net_forward.1} parent=55 // pred_check_branch
          %3277 = sbr.rel (%p3275) target = $region60
        $region59: #{simple_net_forward.1} parent=55 // pred_region
          %s3279 = ssub.s32 64, 64
          %3280 = vsyncadd %s3271, %s3279
          %s3281 = smul.addr %s23, 64
          %s3282 = scalar_lea.hbm %s9, %s3281
          %s3284 = sshll.u32 %s3274, 4
          %s3285 = int_to_ptr.vmem [resolvable:$true] %s3284
          %3287 = dma.vmem_to_hbm [thread:$0]  %s3285, 64, %s3282, %s3271
        $region60: #{simple_net_forward.1} parent=55 // pred_fallthru
          _
      $region56: #{simple_net_forward.1} parent=5 // pred_fallthru
        _
      %p3288 = scmp.le.s32.totalorder 2, %s18
      // Predicated region
      $region61: #{simple_net_forward.1} parent=5 // pred_check
        %p3289 = pneg %p3288
      $region62: #{simple_net_forward.1} parent=5 // pred_check_branch
        %3291 = sbr.rel (%p3289) target = $region64
      $region63: #{simple_net_forward.1} parent=5 // pred_region
        %s3292 = ssub.s32 %s18, 2
        // Predicated region
        $region65: #{simple_net_forward.1} parent=63 // pred_check
          %p3293 = pneg %p241
        $region66: #{simple_net_forward.1} parent=63 // pred_check_branch
          %3295 = sbr.rel (%p3293) target = $region68
        $region67: #{simple_net_forward.1} parent=63 // pred_region
          %s3296 = sand.u32 %s226, 1
          %s3297 = scalar_lea.sflag [#allocation3], %s3296
          %s3298 = sand.u32 %s226, 1
          %s3299 = smul.addr %s3298, 4
          %s3300 = scalar_lea.vmem [#allocation2], %s3299
          %3301 = dma.done %s3297, 64
        $region68: #{simple_net_forward.1} parent=63 // pred_fallthru
          _
      $region64: #{simple_net_forward.1} parent=5 // pred_fallthru
        _
    $region6: #{simple_net_forward.1} parent=1 // loop_footer
      %s22 = sadd.s32 1, %s18
    $region7: #{simple_net_forward.1} parent=1 // loop_footer_branch
      %17 = sbr.rel target = $region3
    $region8: #{simple_net_forward.1} parent=1 // loop_exit
      _
    %3302 = vsyncpa [#allocation3], 1
    %s3303 = scalar_lea.sflag [#allocation3], 1
    %3304 = vsyncpa %s3303, 1

</llo_original>
